<compile_context>
chip_gen: v6e
topology: v6e:2x2x1
jax: 0.10.0
libtpu: 0.0.40
codegen_flags: <defaults>
</compile_context>

<pallas_src>
import functools

import jax
import jax.numpy as jnp
from jax import lax
from jax.experimental import pallas as pl
from jax.experimental.pallas import tpu as pltpu


# ---------------------------------------------------------------------------
# Kernel: one (frame, strip) step:
#   conv1 -> (skip) -> conv2 -> PReLU -> conv3 -> (+skip) -> conv4
# Layout: channels on sublanes, gapped flat pixels (rows of Wp = W+2 lanes,
# data at lane 1..W of each row slot) on lanes.
# ---------------------------------------------------------------------------
def _effvsr_strip_kernel(xin_ref,              # (16, R0*Wp) bf16   gapped input strip (+-4 row halo)
                         mask_ref,             # (1, N1) f32        1.0 on real-pixel lanes, 0.0 on gaps
                         w1_ref, b1_ref,       # (mid, 144) bf16, (mid, 1) f32
                         w2_ref, b2_ref,       # (mid, 576) bf16, (mid, 1) f32
                         alpha_ref,            # (mid, 1) f32       PReLU slope
                         w3_ref, b3_ref,       # (mid, 576) bf16, (mid, 1) f32
                         w4_ref, b4_ref,       # (48, 576) bf16, (48, 1) f32
                         out_ref,              # (48, SH*Wp) bf16   lane-dense output (gaps kept)
                         sbuf,                 # VMEM (max(3*mid, 144), LS) bf16 shifted-copy scratch
                         *, W, SH, NS):
    Wp = W + 2
    R0 = SH + 8                               # input rows of this strip (4-row halo each side)
    mid = w2_ref.shape[0]
    K3 = 3 * mid                              # per-dy GEMM depth
    CIN = xin_ref.shape[0]                    # 16 (3 real channels, zero padded)
    N = [(R0 - 2 * k) * Wp for k in range(5)] # lane span of layer-k feature window
    s_idx = pl.program_id(1)                  # strip index

    gap_ok = mask_ref[...] > 0.5              # (1, N1) bool: real-pixel lanes

    # ---- conv1: 9 (dy,dx)-shifted copies of the input, one K=144 GEMM ------
    xin = xin_ref[...]                        # (16, N0) bf16
    for t in range(9):
        dy, dx = divmod(t, 3)
        off = 2 * Wp + 2 - dy * Wp - dx
        sbuf[t * CIN:(t + 1) * CIN, off:off + N[0]] = xin
    x1 = jnp.dot(w1_ref[...], sbuf[0:9 * CIN, 2 * Wp + 1:2 * Wp + 1 + N[1]],
                 preferred_element_type=jnp.float32) + b1_ref[...]      # (mid, N1) f32
    x1 = jnp.where(gap_ok, x1, 0.0)           # zero gap lanes (also stops stale NaNs)
    skip = x1.astype(jnp.bfloat16)            # residual held in bf16 (VMEM relief)

    def put_copies(vbf, k):
        """Store 3 dx-shifted copies of layer-k output (bf16, gap-masked) into
        sbuf, then zero out-of-image halo rows on the boundary strips so the
        next conv sees exact SAME zero padding."""
        nk = vbf.shape[1]
        for dx in range(3):
            sbuf[dx * mid:(dx + 1) * mid, 2 - dx:2 - dx + nk] = vbf
        zl = (4 - k) * Wp                     # lanes of (4-k) out-of-image rows

        @pl.when(s_idx == 0)
        def _():
            for dx in range(3):
                sbuf[dx * mid:(dx + 1) * mid, 2 - dx:2 - dx + zl] = (
                    jnp.zeros((mid, zl), jnp.bfloat16))

        @pl.when(s_idx == NS - 1)
        def _():
            a = (SH + 4 - k) * Wp
            for dx in range(3):
                sbuf[dx * mid:(dx + 1) * mid, 2 - dx + a:2 - dx + a + zl] = (
                    jnp.zeros((mid, zl), jnp.bfloat16))

    def conv3x3(w_ref, b_ref, nout):
        """3 accumulating per-dy GEMMs (K = 3*mid); dy selects the lane window
        of sbuf, dx is baked into the copy index (sublane block)."""
        acc = jnp.dot(w_ref[:, 0:K3], sbuf[0:K3, 1:1 + nout],
                      preferred_element_type=jnp.float32)
        acc = acc + jnp.dot(w_ref[:, K3:2 * K3], sbuf[0:K3, Wp + 1:Wp + 1 + nout],
                            preferred_element_type=jnp.float32)
        acc = acc + jnp.dot(w_ref[:, 2 * K3:3 * K3],
                            sbuf[0:K3, 2 * Wp + 1:2 * Wp + 1 + nout],
                            preferred_element_type=jnp.float32)
        return acc + b_ref[...]

    # ---- conv2 + PReLU ------------------------------------------------------
    put_copies(skip, 1)
    x2 = conv3x3(w2_ref, b2_ref, N[2])
    alpha = alpha_ref[...]
    x2 = jnp.where(x2 > 0, x2, alpha * x2)
    x2 = jnp.where(gap_ok[:, :N[2]], x2, 0.0)

    # ---- conv3 --------------------------------------------------------------
    put_copies(x2.astype(jnp.bfloat16), 2)
    x3 = conv3x3(w3_ref, b3_ref, N[3])

    # ---- conv4 on (x3 + skip) -----------------------------------------------
    x34 = x3 + skip[:, 2 * Wp:2 * Wp + N[3]].astype(jnp.float32)
    x34 = jnp.where(gap_ok[:, :N[3]], x34, 0.0)
    put_copies(x34.astype(jnp.bfloat16), 3)
    x4 = conv3x3(w4_ref, b4_ref, N[4])        # (48, SH*Wp) f32

    out_ref[...] = x4.astype(out_ref.dtype)   # bf16, dense lane store


# ---------------------------------------------------------------------------
# Wrapper helpers
# ---------------------------------------------------------------------------
def _pick_strip_rows(H, max_rows=32):
    if H <= max_rows + 8:
        return H
    for sh in range(max_rows, 2, -1):
        if H % sh == 0 and sh >= 3:
            return sh
    return H   # TODO(synk): ragged last strip for H with no small divisor


def _vmem_limit_bytes():
    try:
        cap = pltpu.get_tpu_info().vmem_capacity_bytes
    except Exception:
        cap = 64 * 1024 * 1024
    return int(cap * 0.85)


# ---------------------------------------------------------------------------
# Wrapper: PyTorch "train" layout in/out.  Params are HWIO conv weights
# (3,3,Cin,Cout), biases (C,), PReLU alpha (mid,).
# ---------------------------------------------------------------------------
def effvsr_forward(lqs, params, strip_rows=None):
    """lqs: (n, H, W, t*3) float32.  Returns (preds, None, None),
    preds: (n, 4H, 4W, t*3) bfloat16."""
    n, H, W, tc = lqs.shape
    t = tc // 3
    F = n * t
    mid = params["w1"].shape[-1]
    assert mid % 16 == 0
    r = 4
    cout4 = 3 * r * r
    CIN = 16

    SH = strip_rows if strip_rows is not None else _pick_strip_rows(H)
    assert H % SH == 0 and (SH >= 3 or SH == H)
    NS = H // SH
    Wp = W + 2
    R0 = SH + 8
    N0 = R0 * Wp
    N1 = (R0 - 2) * Wp
    N4 = SH * Wp
    LS = (R0 + 2) * Wp + 2
    SB = max(3 * mid, 9 * CIN)

    # ---- input: train layout -> per-frame channel-major, bf16, gapped strips
    x = lqs.reshape(n, H, W, t, 3)
    x = jnp.transpose(x, (0, 3, 1, 2, 4)).reshape(F, H, W, 3)
    xc = jnp.transpose(x, (0, 3, 1, 2)).astype(jnp.bfloat16)           # (F, 3, H, W)
    xp = jnp.pad(xc, ((0, 0), (0, CIN - 3), (4, 4), (1, 1)))           # (F,16,H+8,Wp)
    strips = jnp.stack([xp[:, :, s * SH:s * SH + R0, :] for s in range(NS)],
                       axis=1)                                         # (F,NS,16,R0,Wp)
    xin = strips.reshape(F, NS, CIN, N0)

    # ---- gap mask: 1.0 on real-pixel lanes of a feature window --------------
    row_pat = jnp.concatenate([jnp.zeros((1,), jnp.float32),
                               jnp.ones((W,), jnp.float32),
                               jnp.zeros((1,), jnp.float32)])
    maskf = jnp.tile(row_pat, R0 - 2)[None, :]                         # (1, N1)

    # ---- weights: HWIO -> (Cout, dy*K + dx*Cin + c) tap-major, bf16 ---------
    def wflat(w):
        co = w.shape[-1]
        return jnp.transpose(w, (3, 0, 1, 2)).reshape(co, -1).astype(jnp.bfloat16)

    w1p = jnp.pad(params["w1"], ((0, 0), (0, 0), (0, CIN - 3), (0, 0)))
    w1t = wflat(w1p)                                                   # (mid, 144)
    w2t, w3t, w4t = wflat(params["w2"]), wflat(params["w3"]), wflat(params["w4"])
    b1 = params["b1"].reshape(mid, 1).astype(jnp.float32)
    b2 = params["b2"].reshape(mid, 1).astype(jnp.float32)
    b3 = params["b3"].reshape(mid, 1).astype(jnp.float32)
    b4 = params["b4"].reshape(cout4, 1).astype(jnp.float32)
    alpha = params["alpha"].reshape(mid, 1).astype(jnp.float32)

    full = lambda shape: pl.BlockSpec(shape, lambda f, s: (0,) * len(shape))

    out = pl.pallas_call(
        functools.partial(_effvsr_strip_kernel, W=W, SH=SH, NS=NS),
        out_shape=jax.ShapeDtypeStruct((F, NS, cout4, N4), jnp.bfloat16),
        grid_spec=pltpu.PrefetchScalarGridSpec(
            num_scalar_prefetch=0,
            grid=(F, NS),
            in_specs=[
                pl.BlockSpec((None, None, CIN, N0), lambda f, s: (f, s, 0, 0)),
                full((1, N1)),
                full((mid, 9 * CIN)), full((mid, 1)),           # conv1
                full((mid, 9 * mid)), full((mid, 1)),           # conv2
                full((mid, 1)),                                 # PReLU alpha
                full((mid, 9 * mid)), full((mid, 1)),           # conv3
                full((cout4, 9 * mid)), full((cout4, 1)),       # conv4
            ],
            out_specs=pl.BlockSpec((None, None, cout4, N4),
                                   lambda f, s: (f, s, 0, 0)),
            scratch_shapes=[pltpu.VMEM((SB, LS), jnp.bfloat16)],
        ),
        compiler_params=pltpu.CompilerParams(
            dimension_semantics=("parallel", "parallel"),
            vmem_limit_bytes=_vmem_limit_bytes()),
    )(xin, maskf, w1t, b1, w2t, b2, alpha, w3t, b3, w4t, b4)

    # ---- drop gap lanes, stitch strips, PixelShuffle(4), stack frames -------
    y = out.reshape(F, NS, cout4, SH, Wp)[..., 1:1 + W]                # (F,NS,48,SH,W)
    y = jnp.transpose(y, (0, 2, 1, 3, 4)).reshape(F, cout4, H, W)
    hr = y.reshape(F, 3, r, r, H, W)
    hr = jnp.transpose(hr, (0, 4, 2, 5, 3, 1)).reshape(n, t, H * r, W * r, 3)
    preds = jnp.transpose(hr, (0, 2, 3, 1, 4)).reshape(n, H * r, W * r, t * 3)
    return preds, None, None


# ---------------------------------------------------------------------------
# Pure-JAX reference (NHWC lax convs, f32 HIGHEST) for correctness checking.
# ---------------------------------------------------------------------------
def _conv3x3_ref(x, w_hwio, b):
    y = lax.conv_general_dilated(
        x, w_hwio, window_strides=(1, 1), padding="SAME",
        dimension_numbers=("NHWC", "HWIO", "NHWC"),
        precision=lax.Precision.HIGHEST)
    return y + b.reshape(1, 1, 1, -1)


def effvsr_forward_ref(lqs, p):
    n, H, W, tc = lqs.shape
    t = tc // 3
    r = 4
    x = lqs.reshape(n, H, W, t, 3)
    x = jnp.transpose(x, (0, 3, 1, 2, 4)).reshape(n * t, H, W, 3)
    x1 = _conv3x3_ref(x, p["w1"], p["b1"])
    skip = x1
    x2 = _conv3x3_ref(x1, p["w2"], p["b2"])
    a = p["alpha"].reshape(1, 1, 1, -1)
    x2 = jnp.where(x2 > 0, x2, a * x2)
    x3 = _conv3x3_ref(x2, p["w3"], p["b3"])
    x4 = _conv3x3_ref(x3 + skip, p["w4"], p["b4"])
    hr = x4.reshape(n * t, H, W, 3, r, r)
    hr = jnp.transpose(hr, (0, 1, 4, 2, 5, 3)).reshape(n, t, H * r, W * r, 3)
    return jnp.transpose(hr, (0, 2, 3, 1, 4)).reshape(n, H * r, W * r, t * 3)


# ---------------------------------------------------------------------------
if __name__ == "__main__":
    key = jax.random.PRNGKey(0)
    n, H, W, t = 2, 16, 16, 2          # input (n, H, W, t*3)
    mid = 64                           # mid_channels
    r = 4
    cout4 = 3 * r * r

    ks = jax.random.split(key, 10)

    def winit(k, shape, scale=0.05):
        return jax.random.normal(k, shape, jnp.float32) * scale

    params = {
        "w1": winit(ks[0], (3, 3, 3, mid)),       "b1": winit(ks[1], (mid,), 0.01),
        "w2": winit(ks[2], (3, 3, mid, mid)),     "b2": winit(ks[3], (mid,), 0.01),
        "alpha": jnp.full((mid,), 0.25, jnp.float32),
        "w3": winit(ks[4], (3, 3, mid, mid)),     "b3": winit(ks[5], (mid,), 0.01),
        "w4": winit(ks[6], (3, 3, mid, cout4)),   "b4": winit(ks[7], (cout4,), 0.01),
    }

    lqs = jax.random.normal(ks[8], (n, H, W, t * 3), jnp.float32)

    # strip_rows=8 -> 2 strips per frame, exercising halo + boundary zeroing.
    fwd = jax.jit(functools.partial(effvsr_forward, strip_rows=8))
    preds, flow1, flow2 = fwd(lqs, params)
    preds = jax.block_until_ready(preds)
    assert preds.shape == (n, H * r, W * r, t * 3), preds.shape
    assert flow1 is None and flow2 is None

    ref = jax.block_until_ready(effvsr_forward_ref(lqs, params))
    err = float(jnp.max(jnp.abs(preds.astype(jnp.float32) - ref)))
    # bf16 MXU operands, bf16 skip/output (f32 accumulation) -> a few e-3.
    if err > 5e-2:
        raise AssertionError(f"Pallas kernel mismatch vs reference: {err}")

    print("KERNEL_OK")
</pallas_src>

<mosaic_0001>
module attributes {stable_mosaic.version = 11 : i64} {
  func.func @_effvsr_strip_kernel(%arg0: i32, %arg1: i32, %arg2: memref<1x1x16x288xbf16, #tpu.memory_space<vmem>>, %arg3: memref<1x252xf32, #tpu.memory_space<vmem>>, %arg4: memref<64x144xbf16, #tpu.memory_space<vmem>>, %arg5: memref<64x1xf32, #tpu.memory_space<vmem>>, %arg6: memref<64x576xbf16, #tpu.memory_space<vmem>>, %arg7: memref<64x1xf32, #tpu.memory_space<vmem>>, %arg8: memref<64x1xf32, #tpu.memory_space<vmem>>, %arg9: memref<64x576xbf16, #tpu.memory_space<vmem>>, %arg10: memref<64x1xf32, #tpu.memory_space<vmem>>, %arg11: memref<48x576xbf16, #tpu.memory_space<vmem>>, %arg12: memref<48x1xf32, #tpu.memory_space<vmem>>, %arg13: memref<1x1x48x144xbf16, #tpu.memory_space<vmem>>, %arg14: memref<192x326xbf16, #tpu.memory_space<vmem>>) attributes {dimension_semantics = [#tpu.dimension_semantics<parallel>, #tpu.dimension_semantics<parallel>], iteration_bounds = array<i64: 4, 2>, scalar_prefetch = 0 : i64, scratch_operands = 1 : i64, tpu.core_type = #tpu.core_type<tc>, window_params = [{transform_indices = @transform_0, window_bounds = array<i64: 1, 1, 16, 288>}, {pipeline_mode = #tpu.pipeline_mode<synchronous>, transform_indices = @transform_1, window_bounds = array<i64: 1, 252>}, {pipeline_mode = #tpu.pipeline_mode<synchronous>, transform_indices = @transform_2, window_bounds = array<i64: 64, 144>}, {pipeline_mode = #tpu.pipeline_mode<synchronous>, transform_indices = @transform_3, window_bounds = array<i64: 64, 1>}, {pipeline_mode = #tpu.pipeline_mode<synchronous>, transform_indices = @transform_4, window_bounds = array<i64: 64, 576>}, {pipeline_mode = #tpu.pipeline_mode<synchronous>, transform_indices = @transform_5, window_bounds = array<i64: 64, 1>}, {pipeline_mode = #tpu.pipeline_mode<synchronous>, transform_indices = @transform_6, window_bounds = array<i64: 64, 1>}, {pipeline_mode = #tpu.pipeline_mode<synchronous>, transform_indices = @transform_7, window_bounds = array<i64: 64, 576>}, {pipeline_mode = #tpu.pipeline_mode<synchronous>, transform_indices = @transform_8, window_bounds = array<i64: 64, 1>}, {pipeline_mode = #tpu.pipeline_mode<synchronous>, transform_indices = @transform_9, window_bounds = array<i64: 48, 576>}, {pipeline_mode = #tpu.pipeline_mode<synchronous>, transform_indices = @transform_10, window_bounds = array<i64: 48, 1>}, {transform_indices = @transform_11, window_bounds = array<i64: 1, 1, 48, 144>}]} {
    %c0 = arith.constant 0 : index
    %c0_0 = arith.constant 0 : index
    %0 = vector.load %arg3[%c0, %c0_0] : memref<1x252xf32, #tpu.memory_space<vmem>>, vector<1x252xf32>
    %cst = arith.constant 5.000000e-01 : f32
    %1 = vector.broadcast %cst : f32 to vector<1x252xf32>
    %2 = arith.cmpf ogt, %0, %1 : vector<1x252xf32>
    %c0_1 = arith.constant 0 : index
    %c0_2 = arith.constant 0 : index
    %c0_3 = arith.constant 0 : index
    %c0_4 = arith.constant 0 : index
    %3 = vector.load %arg2[%c0_1, %c0_2, %c0_3, %c0_4] : memref<1x1x16x288xbf16, #tpu.memory_space<vmem>>, vector<1x1x16x288xbf16>
    %4 = vector.shape_cast %3 : vector<1x1x16x288xbf16> to vector<16x288xbf16>
    %c0_5 = arith.constant 0 : index
    %c38 = arith.constant 38 : index
    %5 = vector.load %arg14[%c0_5, %c38] : memref<192x326xbf16, #tpu.memory_space<vmem>>, vector<16x288xbf16>
    tpu.vector_store %arg14[%c0_5, %c38], %4 {strides = array<i32>} : memref<192x326xbf16, #tpu.memory_space<vmem>>, vector<16x288xbf16>,
    %c16 = arith.constant 16 : index
    %c37 = arith.constant 37 : index
    %6 = vector.load %arg14[%c16, %c37] : memref<192x326xbf16, #tpu.memory_space<vmem>>, vector<16x288xbf16>
    tpu.vector_store %arg14[%c16, %c37], %4 {strides = array<i32>} : memref<192x326xbf16, #tpu.memory_space<vmem>>, vector<16x288xbf16>,
    %c32 = arith.constant 32 : index
    %c36 = arith.constant 36 : index
    %7 = vector.load %arg14[%c32, %c36] : memref<192x326xbf16, #tpu.memory_space<vmem>>, vector<16x288xbf16>
    tpu.vector_store %arg14[%c32, %c36], %4 {strides = array<i32>} : memref<192x326xbf16, #tpu.memory_space<vmem>>, vector<16x288xbf16>,
    %c48 = arith.constant 48 : index
    %c20 = arith.constant 20 : index
    %8 = vector.load %arg14[%c48, %c20] : memref<192x326xbf16, #tpu.memory_space<vmem>>, vector<16x288xbf16>
    tpu.vector_store %arg14[%c48, %c20], %4 {strides = array<i32>} : memref<192x326xbf16, #tpu.memory_space<vmem>>, vector<16x288xbf16>,
    %c64 = arith.constant 64 : index
    %c19 = arith.constant 19 : index
    %9 = vector.load %arg14[%c64, %c19] : memref<192x326xbf16, #tpu.memory_space<vmem>>, vector<16x288xbf16>
    tpu.vector_store %arg14[%c64, %c19], %4 {strides = array<i32>} : memref<192x326xbf16, #tpu.memory_space<vmem>>, vector<16x288xbf16>,
    %c80 = arith.constant 80 : index
    %c18 = arith.constant 18 : index
    %10 = vector.load %arg14[%c80, %c18] : memref<192x326xbf16, #tpu.memory_space<vmem>>, vector<16x288xbf16>
    tpu.vector_store %arg14[%c80, %c18], %4 {strides = array<i32>} : memref<192x326xbf16, #tpu.memory_space<vmem>>, vector<16x288xbf16>,
    %c96 = arith.constant 96 : index
    %c2 = arith.constant 2 : index
    %11 = vector.load %arg14[%c96, %c2] : memref<192x326xbf16, #tpu.memory_space<vmem>>, vector<16x288xbf16>
    tpu.vector_store %arg14[%c96, %c2], %4 {strides = array<i32>} : memref<192x326xbf16, #tpu.memory_space<vmem>>, vector<16x288xbf16>,
    %c112 = arith.constant 112 : index
    %c1 = arith.constant 1 : index
    %12 = vector.load %arg14[%c112, %c1] : memref<192x326xbf16, #tpu.memory_space<vmem>>, vector<16x288xbf16>
    tpu.vector_store %arg14[%c112, %c1], %4 {strides = array<i32>} : memref<192x326xbf16, #tpu.memory_space<vmem>>, vector<16x288xbf16>,
    %c128 = arith.constant 128 : index
    %c0_6 = arith.constant 0 : index
    %13 = vector.load %arg14[%c128, %c0_6] : memref<192x326xbf16, #tpu.memory_space<vmem>>, vector<16x288xbf16>
    tpu.vector_store %arg14[%c128, %c0_6], %4 {strides = array<i32>} : memref<192x326xbf16, #tpu.memory_space<vmem>>, vector<16x288xbf16>,
    %c0_7 = arith.constant 0 : index
    %c0_8 = arith.constant 0 : index
    %14 = vector.load %arg4[%c0_7, %c0_8] : memref<64x144xbf16, #tpu.memory_space<vmem>>, vector<64x144xbf16>
    %c0_9 = arith.constant 0 : index
    %c37_10 = arith.constant 37 : index
    %15 = vector.load %arg14[%c0_9, %c37_10] : memref<192x326xbf16, #tpu.memory_space<vmem>>, vector<144x252xbf16>
    %cst_11 = arith.constant dense<0.000000e+00> : vector<64x252xf32>
    %16 = tpu.matmul %14, %15, %cst_11 {dimension_numbers = #tpu.dot_dimension_numbers<[1], [0], [0], [1], [0, 0, 1, 1], [], []>} : vector<64x144xbf16>, vector<144x252xbf16>, vector<64x252xf32> -> vector<64x252xf32>
    %c0_12 = arith.constant 0 : index
    %c0_13 = arith.constant 0 : index
    %17 = vector.load %arg5[%c0_12, %c0_13] : memref<64x1xf32, #tpu.memory_space<vmem>>, vector<64x1xf32>
    %18 = vector.broadcast %17 : vector<64x1xf32> to vector<64x252xf32>
    %19 = arith.addf %16, %18 : vector<64x252xf32>
    %cst_14 = arith.constant 0.000000e+00 : f32
    %20 = vector.shape_cast %2 : vector<1x252xi1> to vector<1x252xi1>
    %21 = vector.broadcast %20 : vector<1x252xi1> to vector<64x252xi1>
    %22 = vector.broadcast %cst_14 : f32 to vector<64x252xf32>
    %23 = arith.select %21, %19, %22 : vector<64x252xi1>, vector<64x252xf32>
    %24 = arith.truncf %23 : vector<64x252xf32> to vector<64x252xbf16>
    %c0_15 = arith.constant 0 : index
    %c2_16 = arith.constant 2 : index
    %25 = vector.load %arg14[%c0_15, %c2_16] : memref<192x326xbf16, #tpu.memory_space<vmem>>, vector<64x252xbf16>
    tpu.vector_store %arg14[%c0_15, %c2_16], %24 {strides = array<i32>} : memref<192x326xbf16, #tpu.memory_space<vmem>>, vector<64x252xbf16>,
    %c64_17 = arith.constant 64 : index
    %c1_18 = arith.constant 1 : index
    %26 = vector.load %arg14[%c64_17, %c1_18] : memref<192x326xbf16, #tpu.memory_space<vmem>>, vector<64x252xbf16>
    tpu.vector_store %arg14[%c64_17, %c1_18], %24 {strides = array<i32>} : memref<192x326xbf16, #tpu.memory_space<vmem>>, vector<64x252xbf16>,
    %c128_19 = arith.constant 128 : index
    %c0_20 = arith.constant 0 : index
    %27 = vector.load %arg14[%c128_19, %c0_20] : memref<192x326xbf16, #tpu.memory_space<vmem>>, vector<64x252xbf16>
    tpu.vector_store %arg14[%c128_19, %c0_20], %24 {strides = array<i32>} : memref<192x326xbf16, #tpu.memory_space<vmem>>, vector<64x252xbf16>,
    %c0_i32 = arith.constant 0 : i32
    %28 = arith.cmpi eq, %arg1, %c0_i32 : i32
    %29 = arith.extui %28 : i1 to i32
    %c0_i32_21 = arith.constant 0 : i32
    %30 = arith.cmpi ne, %29, %c0_i32_21 : i32
    scf.if %30 {
      %cst_101 = arith.constant 0.000000e+00 : bf16
      %119 = vector.broadcast %cst_101 : bf16 to vector<64x54xbf16>
      %c0_102 = arith.constant 0 : index
      %c2_103 = arith.constant 2 : index
      %120 = vector.load %arg14[%c0_102, %c2_103] : memref<192x326xbf16, #tpu.memory_space<vmem>>, vector<64x54xbf16>
      tpu.vector_store %arg14[%c0_102, %c2_103], %119 {strides = array<i32>} : memref<192x326xbf16, #tpu.memory_space<vmem>>, vector<64x54xbf16>,
      %cst_104 = arith.constant 0.000000e+00 : bf16
      %121 = vector.broadcast %cst_104 : bf16 to vector<64x54xbf16>
      %c64_105 = arith.constant 64 : index
      %c1_106 = arith.constant 1 : index
      %122 = vector.load %arg14[%c64_105, %c1_106] : memref<192x326xbf16, #tpu.memory_space<vmem>>, vector<64x54xbf16>
      tpu.vector_store %arg14[%c64_105, %c1_106], %121 {strides = array<i32>} : memref<192x326xbf16, #tpu.memory_space<vmem>>, vector<64x54xbf16>,
      %cst_107 = arith.constant 0.000000e+00 : bf16
      %123 = vector.broadcast %cst_107 : bf16 to vector<64x54xbf16>
      %c128_108 = arith.constant 128 : index
      %c0_109 = arith.constant 0 : index
      %124 = vector.load %arg14[%c128_108, %c0_109] : memref<192x326xbf16, #tpu.memory_space<vmem>>, vector<64x54xbf16>
      tpu.vector_store %arg14[%c128_108, %c0_109], %123 {strides = array<i32>} : memref<192x326xbf16, #tpu.memory_space<vmem>>, vector<64x54xbf16>,
    } else {
    }
    %c1_i32 = arith.constant 1 : i32
    %31 = arith.cmpi eq, %arg1, %c1_i32 : i32
    %32 = arith.extui %31 : i1 to i32
    %c0_i32_22 = arith.constant 0 : i32
    %33 = arith.cmpi ne, %32, %c0_i32_22 : i32
    scf.if %33 {
      %cst_101 = arith.constant 0.000000e+00 : bf16
      %119 = vector.broadcast %cst_101 : bf16 to vector<64x54xbf16>
      %c0_102 = arith.constant 0 : index
      %c200 = arith.constant 200 : index
      %120 = vector.load %arg14[%c0_102, %c200] : memref<192x326xbf16, #tpu.memory_space<vmem>>, vector<64x54xbf16>
      tpu.vector_store %arg14[%c0_102, %c200], %119 {strides = array<i32>} : memref<192x326xbf16, #tpu.memory_space<vmem>>, vector<64x54xbf16>,
      %cst_103 = arith.constant 0.000000e+00 : bf16
      %121 = vector.broadcast %cst_103 : bf16 to vector<64x54xbf16>
      %c64_104 = arith.constant 64 : index
      %c199 = arith.constant 199 : index
      %122 = vector.load %arg14[%c64_104, %c199] : memref<192x326xbf16, #tpu.memory_space<vmem>>, vector<64x54xbf16>
      tpu.vector_store %arg14[%c64_104, %c199], %121 {strides = array<i32>} : memref<192x326xbf16, #tpu.memory_space<vmem>>, vector<64x54xbf16>,
      %cst_105 = arith.constant 0.000000e+00 : bf16
      %123 = vector.broadcast %cst_105 : bf16 to vector<64x54xbf16>
      %c128_106 = arith.constant 128 : index
      %c198 = arith.constant 198 : index
      %124 = vector.load %arg14[%c128_106, %c198] : memref<192x326xbf16, #tpu.memory_space<vmem>>, vector<64x54xbf16>
      tpu.vector_store %arg14[%c128_106, %c198], %123 {strides = array<i32>} : memref<192x326xbf16, #tpu.memory_space<vmem>>, vector<64x54xbf16>,
    } else {
    }
    %c0_23 = arith.constant 0 : index
    %c0_24 = arith.constant 0 : index
    %34 = vector.load %arg6[%c0_23, %c0_24] : memref<64x576xbf16, #tpu.memory_space<vmem>>, vector<64x192xbf16>
    %c0_25 = arith.constant 0 : index
    %c1_26 = arith.constant 1 : index
    %35 = vector.load %arg14[%c0_25, %c1_26] : memref<192x326xbf16, #tpu.memory_space<vmem>>, vector<192x216xbf16>
    %cst_27 = arith.constant dense<0.000000e+00> : vector<64x216xf32>
    %36 = tpu.matmul %34, %35, %cst_27 {dimension_numbers = #tpu.dot_dimension_numbers<[1], [0], [0], [1], [0, 0, 1, 1], [], []>} : vector<64x192xbf16>, vector<192x216xbf16>, vector<64x216xf32> -> vector<64x216xf32>
    %c0_28 = arith.constant 0 : index
    %c192 = arith.constant 192 : index
    %37 = vector.load %arg6[%c0_28, %c192] : memref<64x576xbf16, #tpu.memory_space<vmem>>, vector<64x192xbf16>
    %c0_29 = arith.constant 0 : index
    %c19_30 = arith.constant 19 : index
    %38 = vector.load %arg14[%c0_29, %c19_30] : memref<192x326xbf16, #tpu.memory_space<vmem>>, vector<192x216xbf16>
    %cst_31 = arith.constant dense<0.000000e+00> : vector<64x216xf32>
    %39 = tpu.matmul %37, %38, %cst_31 {dimension_numbers = #tpu.dot_dimension_numbers<[1], [0], [0], [1], [0, 0, 1, 1], [], []>} : vector<64x192xbf16>, vector<192x216xbf16>, vector<64x216xf32> -> vector<64x216xf32>
    %40 = arith.addf %36, %39 : vector<64x216xf32>
    %c0_32 = arith.constant 0 : index
    %c384 = arith.constant 384 : index
    %41 = vector.load %arg6[%c0_32, %c384] : memref<64x576xbf16, #tpu.memory_space<vmem>>, vector<64x192xbf16>
    %c0_33 = arith.constant 0 : index
    %c37_34 = arith.constant 37 : index
    %42 = vector.load %arg14[%c0_33, %c37_34] : memref<192x326xbf16, #tpu.memory_space<vmem>>, vector<192x216xbf16>
    %cst_35 = arith.constant dense<0.000000e+00> : vector<64x216xf32>
    %43 = tpu.matmul %41, %42, %cst_35 {dimension_numbers = #tpu.dot_dimension_numbers<[1], [0], [0], [1], [0, 0, 1, 1], [], []>} : vector<64x192xbf16>, vector<192x216xbf16>, vector<64x216xf32> -> vector<64x216xf32>
    %44 = arith.addf %40, %43 : vector<64x216xf32>
    %c0_36 = arith.constant 0 : index
    %c0_37 = arith.constant 0 : index
    %45 = vector.load %arg7[%c0_36, %c0_37] : memref<64x1xf32, #tpu.memory_space<vmem>>, vector<64x1xf32>
    %46 = vector.broadcast %45 : vector<64x1xf32> to vector<64x216xf32>
    %47 = arith.addf %44, %46 : vector<64x216xf32>
    %c0_38 = arith.constant 0 : index
    %c0_39 = arith.constant 0 : index
    %48 = vector.load %arg8[%c0_38, %c0_39] : memref<64x1xf32, #tpu.memory_space<vmem>>, vector<64x1xf32>
    %cst_40 = arith.constant 0.000000e+00 : f32
    %49 = vector.broadcast %cst_40 : f32 to vector<64x216xf32>
    %50 = arith.cmpf ogt, %47, %49 : vector<64x216xf32>
    %51 = vector.broadcast %48 : vector<64x1xf32> to vector<64x216xf32>
    %52 = arith.mulf %51, %47 : vector<64x216xf32>
    %53 = arith.select %50, %47, %52 : vector<64x216xi1>, vector<64x216xf32>
    %54 = vector.extract_strided_slice %2 {offsets = [0, 0], sizes = [1, 216], strides = [1, 1]} : vector<1x252xi1> to vector<1x216xi1>
    %cst_41 = arith.constant 0.000000e+00 : f32
    %55 = vector.shape_cast %54 : vector<1x216xi1> to vector<1x216xi1>
    %56 = vector.broadcast %55 : vector<1x216xi1> to vector<64x216xi1>
    %57 = vector.broadcast %cst_41 : f32 to vector<64x216xf32>
    %58 = arith.select %56, %53, %57 : vector<64x216xi1>, vector<64x216xf32>
    %59 = arith.truncf %58 : vector<64x216xf32> to vector<64x216xbf16>
    %c0_42 = arith.constant 0 : index
    %c2_43 = arith.constant 2 : index
    %60 = vector.load %arg14[%c0_42, %c2_43] : memref<192x326xbf16, #tpu.memory_space<vmem>>, vector<64x216xbf16>
    tpu.vector_store %arg14[%c0_42, %c2_43], %59 {strides = array<i32>} : memref<192x326xbf16, #tpu.memory_space<vmem>>, vector<64x216xbf16>,
    %c64_44 = arith.constant 64 : index
    %c1_45 = arith.constant 1 : index
    %61 = vector.load %arg14[%c64_44, %c1_45] : memref<192x326xbf16, #tpu.memory_space<vmem>>, vector<64x216xbf16>
    tpu.vector_store %arg14[%c64_44, %c1_45], %59 {strides = array<i32>} : memref<192x326xbf16, #tpu.memory_space<vmem>>, vector<64x216xbf16>,
    %c128_46 = arith.constant 128 : index
    %c0_47 = arith.constant 0 : index
    %62 = vector.load %arg14[%c128_46, %c0_47] : memref<192x326xbf16, #tpu.memory_space<vmem>>, vector<64x216xbf16>
    tpu.vector_store %arg14[%c128_46, %c0_47], %59 {strides = array<i32>} : memref<192x326xbf16, #tpu.memory_space<vmem>>, vector<64x216xbf16>,
    %c0_i32_48 = arith.constant 0 : i32
    %63 = arith.cmpi eq, %arg1, %c0_i32_48 : i32
    %64 = arith.extui %63 : i1 to i32
    %c0_i32_49 = arith.constant 0 : i32
    %65 = arith.cmpi ne, %64, %c0_i32_49 : i32
    scf.if %65 {
      %cst_101 = arith.constant 0.000000e+00 : bf16
      %119 = vector.broadcast %cst_101 : bf16 to vector<64x36xbf16>
      %c0_102 = arith.constant 0 : index
      %c2_103 = arith.constant 2 : index
      %120 = vector.load %arg14[%c0_102, %c2_103] : memref<192x326xbf16, #tpu.memory_space<vmem>>, vector<64x36xbf16>
      tpu.vector_store %arg14[%c0_102, %c2_103], %119 {strides = array<i32>} : memref<192x326xbf16, #tpu.memory_space<vmem>>, vector<64x36xbf16>,
      %cst_104 = arith.constant 0.000000e+00 : bf16
      %121 = vector.broadcast %cst_104 : bf16 to vector<64x36xbf16>
      %c64_105 = arith.constant 64 : index
      %c1_106 = arith.constant 1 : index
      %122 = vector.load %arg14[%c64_105, %c1_106] : memref<192x326xbf16, #tpu.memory_space<vmem>>, vector<64x36xbf16>
      tpu.vector_store %arg14[%c64_105, %c1_106], %121 {strides = array<i32>} : memref<192x326xbf16, #tpu.memory_space<vmem>>, vector<64x36xbf16>,
      %cst_107 = arith.constant 0.000000e+00 : bf16
      %123 = vector.broadcast %cst_107 : bf16 to vector<64x36xbf16>
      %c128_108 = arith.constant 128 : index
      %c0_109 = arith.constant 0 : index
      %124 = vector.load %arg14[%c128_108, %c0_109] : memref<192x326xbf16, #tpu.memory_space<vmem>>, vector<64x36xbf16>
      tpu.vector_store %arg14[%c128_108, %c0_109], %123 {strides = array<i32>} : memref<192x326xbf16, #tpu.memory_space<vmem>>, vector<64x36xbf16>,
    } else {
    }
    %c1_i32_50 = arith.constant 1 : i32
    %66 = arith.cmpi eq, %arg1, %c1_i32_50 : i32
    %67 = arith.extui %66 : i1 to i32
    %c0_i32_51 = arith.constant 0 : i32
    %68 = arith.cmpi ne, %67, %c0_i32_51 : i32
    scf.if %68 {
      %cst_101 = arith.constant 0.000000e+00 : bf16
      %119 = vector.broadcast %cst_101 : bf16 to vector<64x36xbf16>
      %c0_102 = arith.constant 0 : index
      %c182 = arith.constant 182 : index
      %120 = vector.load %arg14[%c0_102, %c182] : memref<192x326xbf16, #tpu.memory_space<vmem>>, vector<64x36xbf16>
      tpu.vector_store %arg14[%c0_102, %c182], %119 {strides = array<i32>} : memref<192x326xbf16, #tpu.memory_space<vmem>>, vector<64x36xbf16>,
      %cst_103 = arith.constant 0.000000e+00 : bf16
      %121 = vector.broadcast %cst_103 : bf16 to vector<64x36xbf16>
      %c64_104 = arith.constant 64 : index
      %c181 = arith.constant 181 : index
      %122 = vector.load %arg14[%c64_104, %c181] : memref<192x326xbf16, #tpu.memory_space<vmem>>, vector<64x36xbf16>
      tpu.vector_store %arg14[%c64_104, %c181], %121 {strides = array<i32>} : memref<192x326xbf16, #tpu.memory_space<vmem>>, vector<64x36xbf16>,
      %cst_105 = arith.constant 0.000000e+00 : bf16
      %123 = vector.broadcast %cst_105 : bf16 to vector<64x36xbf16>
      %c128_106 = arith.constant 128 : index
      %c180 = arith.constant 180 : index
      %124 = vector.load %arg14[%c128_106, %c180] : memref<192x326xbf16, #tpu.memory_space<vmem>>, vector<64x36xbf16>
      tpu.vector_store %arg14[%c128_106, %c180], %123 {strides = array<i32>} : memref<192x326xbf16, #tpu.memory_space<vmem>>, vector<64x36xbf16>,
    } else {
    }
    %c0_52 = arith.constant 0 : index
    %c0_53 = arith.constant 0 : index
    %69 = vector.load %arg9[%c0_52, %c0_53] : memref<64x576xbf16, #tpu.memory_space<vmem>>, vector<64x192xbf16>
    %c0_54 = arith.constant 0 : index
    %c1_55 = arith.constant 1 : index
    %70 = vector.load %arg14[%c0_54, %c1_55] : memref<192x326xbf16, #tpu.memory_space<vmem>>, vector<192x180xbf16>
    %cst_56 = arith.constant dense<0.000000e+00> : vector<64x180xf32>
    %71 = tpu.matmul %69, %70, %cst_56 {dimension_numbers = #tpu.dot_dimension_numbers<[1], [0], [0], [1], [0, 0, 1, 1], [], []>} : vector<64x192xbf16>, vector<192x180xbf16>, vector<64x180xf32> -> vector<64x180xf32>
    %c0_57 = arith.constant 0 : index
    %c192_58 = arith.constant 192 : index
    %72 = vector.load %arg9[%c0_57, %c192_58] : memref<64x576xbf16, #tpu.memory_space<vmem>>, vector<64x192xbf16>
    %c0_59 = arith.constant 0 : index
    %c19_60 = arith.constant 19 : index
    %73 = vector.load %arg14[%c0_59, %c19_60] : memref<192x326xbf16, #tpu.memory_space<vmem>>, vector<192x180xbf16>
    %cst_61 = arith.constant dense<0.000000e+00> : vector<64x180xf32>
    %74 = tpu.matmul %72, %73, %cst_61 {dimension_numbers = #tpu.dot_dimension_numbers<[1], [0], [0], [1], [0, 0, 1, 1], [], []>} : vector<64x192xbf16>, vector<192x180xbf16>, vector<64x180xf32> -> vector<64x180xf32>
    %75 = arith.addf %71, %74 : vector<64x180xf32>
    %c0_62 = arith.constant 0 : index
    %c384_63 = arith.constant 384 : index
    %76 = vector.load %arg9[%c0_62, %c384_63] : memref<64x576xbf16, #tpu.memory_space<vmem>>, vector<64x192xbf16>
    %c0_64 = arith.constant 0 : index
    %c37_65 = arith.constant 37 : index
    %77 = vector.load %arg14[%c0_64, %c37_65] : memref<192x326xbf16, #tpu.memory_space<vmem>>, vector<192x180xbf16>
    %cst_66 = arith.constant dense<0.000000e+00> : vector<64x180xf32>
    %78 = tpu.matmul %76, %77, %cst_66 {dimension_numbers = #tpu.dot_dimension_numbers<[1], [0], [0], [1], [0, 0, 1, 1], [], []>} : vector<64x192xbf16>, vector<192x180xbf16>, vector<64x180xf32> -> vector<64x180xf32>
    %79 = arith.addf %75, %78 : vector<64x180xf32>
    %c0_67 = arith.constant 0 : index
    %c0_68 = arith.constant 0 : index
    %80 = vector.load %arg10[%c0_67, %c0_68] : memref<64x1xf32, #tpu.memory_space<vmem>>, vector<64x1xf32>
    %81 = vector.broadcast %80 : vector<64x1xf32> to vector<64x180xf32>
    %82 = arith.addf %79, %81 : vector<64x180xf32>
    %83 = vector.extract_strided_slice %24 {offsets = [0, 36], sizes = [64, 180], strides = [1, 1]} : vector<64x252xbf16> to vector<64x180xbf16>
    %84 = arith.extf %83 : vector<64x180xbf16> to vector<64x180xf32>
    %85 = arith.addf %82, %84 : vector<64x180xf32>
    %86 = vector.extract_strided_slice %2 {offsets = [0, 0], sizes = [1, 180], strides = [1, 1]} : vector<1x252xi1> to vector<1x180xi1>
    %cst_69 = arith.constant 0.000000e+00 : f32
    %87 = vector.shape_cast %86 : vector<1x180xi1> to vector<1x180xi1>
    %88 = vector.broadcast %87 : vector<1x180xi1> to vector<64x180xi1>
    %89 = vector.broadcast %cst_69 : f32 to vector<64x180xf32>
    %90 = arith.select %88, %85, %89 : vector<64x180xi1>, vector<64x180xf32>
    %91 = arith.truncf %90 : vector<64x180xf32> to vector<64x180xbf16>
    %c0_70 = arith.constant 0 : index
    %c2_71 = arith.constant 2 : index
    %92 = vector.load %arg14[%c0_70, %c2_71] : memref<192x326xbf16, #tpu.memory_space<vmem>>, vector<64x180xbf16>
    tpu.vector_store %arg14[%c0_70, %c2_71], %91 {strides = array<i32>} : memref<192x326xbf16, #tpu.memory_space<vmem>>, vector<64x180xbf16>,
    %c64_72 = arith.constant 64 : index
    %c1_73 = arith.constant 1 : index
    %93 = vector.load %arg14[%c64_72, %c1_73] : memref<192x326xbf16, #tpu.memory_space<vmem>>, vector<64x180xbf16>
    tpu.vector_store %arg14[%c64_72, %c1_73], %91 {strides = array<i32>} : memref<192x326xbf16, #tpu.memory_space<vmem>>, vector<64x180xbf16>,
    %c128_74 = arith.constant 128 : index
    %c0_75 = arith.constant 0 : index
    %94 = vector.load %arg14[%c128_74, %c0_75] : memref<192x326xbf16, #tpu.memory_space<vmem>>, vector<64x180xbf16>
    tpu.vector_store %arg14[%c128_74, %c0_75], %91 {strides = array<i32>} : memref<192x326xbf16, #tpu.memory_space<vmem>>, vector<64x180xbf16>,
    %c0_i32_76 = arith.constant 0 : i32
    %95 = arith.cmpi eq, %arg1, %c0_i32_76 : i32
    %96 = arith.extui %95 : i1 to i32
    %c0_i32_77 = arith.constant 0 : i32
    %97 = arith.cmpi ne, %96, %c0_i32_77 : i32
    scf.if %97 {
      %cst_101 = arith.constant 0.000000e+00 : bf16
      %119 = vector.broadcast %cst_101 : bf16 to vector<64x18xbf16>
      %c0_102 = arith.constant 0 : index
      %c2_103 = arith.constant 2 : index
      %120 = vector.load %arg14[%c0_102, %c2_103] : memref<192x326xbf16, #tpu.memory_space<vmem>>, vector<64x18xbf16>
      tpu.vector_store %arg14[%c0_102, %c2_103], %119 {strides = array<i32>} : memref<192x326xbf16, #tpu.memory_space<vmem>>, vector<64x18xbf16>,
      %cst_104 = arith.constant 0.000000e+00 : bf16
      %121 = vector.broadcast %cst_104 : bf16 to vector<64x18xbf16>
      %c64_105 = arith.constant 64 : index
      %c1_106 = arith.constant 1 : index
      %122 = vector.load %arg14[%c64_105, %c1_106] : memref<192x326xbf16, #tpu.memory_space<vmem>>, vector<64x18xbf16>
      tpu.vector_store %arg14[%c64_105, %c1_106], %121 {strides = array<i32>} : memref<192x326xbf16, #tpu.memory_space<vmem>>, vector<64x18xbf16>,
      %cst_107 = arith.constant 0.000000e+00 : bf16
      %123 = vector.broadcast %cst_107 : bf16 to vector<64x18xbf16>
      %c128_108 = arith.constant 128 : index
      %c0_109 = arith.constant 0 : index
      %124 = vector.load %arg14[%c128_108, %c0_109] : memref<192x326xbf16, #tpu.memory_space<vmem>>, vector<64x18xbf16>
      tpu.vector_store %arg14[%c128_108, %c0_109], %123 {strides = array<i32>} : memref<192x326xbf16, #tpu.memory_space<vmem>>, vector<64x18xbf16>,
    } else {
    }
    %c1_i32_78 = arith.constant 1 : i32
    %98 = arith.cmpi eq, %arg1, %c1_i32_78 : i32
    %99 = arith.extui %98 : i1 to i32
    %c0_i32_79 = arith.constant 0 : i32
    %100 = arith.cmpi ne, %99, %c0_i32_79 : i32
    scf.if %100 {
      %cst_101 = arith.constant 0.000000e+00 : bf16
      %119 = vector.broadcast %cst_101 : bf16 to vector<64x18xbf16>
      %c0_102 = arith.constant 0 : index
      %c164 = arith.constant 164 : index
      %120 = vector.load %arg14[%c0_102, %c164] : memref<192x326xbf16, #tpu.memory_space<vmem>>, vector<64x18xbf16>
      tpu.vector_store %arg14[%c0_102, %c164], %119 {strides = array<i32>} : memref<192x326xbf16, #tpu.memory_space<vmem>>, vector<64x18xbf16>,
      %cst_103 = arith.constant 0.000000e+00 : bf16
      %121 = vector.broadcast %cst_103 : bf16 to vector<64x18xbf16>
      %c64_104 = arith.constant 64 : index
      %c163 = arith.constant 163 : index
      %122 = vector.load %arg14[%c64_104, %c163] : memref<192x326xbf16, #tpu.memory_space<vmem>>, vector<64x18xbf16>
      tpu.vector_store %arg14[%c64_104, %c163], %121 {strides = array<i32>} : memref<192x326xbf16, #tpu.memory_space<vmem>>, vector<64x18xbf16>,
      %cst_105 = arith.constant 0.000000e+00 : bf16
      %123 = vector.broadcast %cst_105 : bf16 to vector<64x18xbf16>
      %c128_106 = arith.constant 128 : index
      %c162 = arith.constant 162 : index
      %124 = vector.load %arg14[%c128_106, %c162] : memref<192x326xbf16, #tpu.memory_space<vmem>>, vector<64x18xbf16>
      tpu.vector_store %arg14[%c128_106, %c162], %123 {strides = array<i32>} : memref<192x326xbf16, #tpu.memory_space<vmem>>, vector<64x18xbf16>,
    } else {
    }
    %c0_80 = arith.constant 0 : index
    %c0_81 = arith.constant 0 : index
    %101 = vector.load %arg11[%c0_80, %c0_81] : memref<48x576xbf16, #tpu.memory_space<vmem>>, vector<48x192xbf16>
    %c0_82 = arith.constant 0 : index
    %c1_83 = arith.constant 1 : index
    %102 = vector.load %arg14[%c0_82, %c1_83] : memref<192x326xbf16, #tpu.memory_space<vmem>>, vector<192x144xbf16>
    %cst_84 = arith.constant dense<0.000000e+00> : vector<48x144xf32>
    %103 = tpu.matmul %101, %102, %cst_84 {dimension_numbers = #tpu.dot_dimension_numbers<[1], [0], [0], [1], [0, 0, 1, 1], [], []>} : vector<48x192xbf16>, vector<192x144xbf16>, vector<48x144xf32> -> vector<48x144xf32>
    %c0_85 = arith.constant 0 : index
    %c192_86 = arith.constant 192 : index
    %104 = vector.load %arg11[%c0_85, %c192_86] : memref<48x576xbf16, #tpu.memory_space<vmem>>, vector<48x192xbf16>
    %c0_87 = arith.constant 0 : index
    %c19_88 = arith.constant 19 : index
    %105 = vector.load %arg14[%c0_87, %c19_88] : memref<192x326xbf16, #tpu.memory_space<vmem>>, vector<192x144xbf16>
    %cst_89 = arith.constant dense<0.000000e+00> : vector<48x144xf32>
    %106 = tpu.matmul %104, %105, %cst_89 {dimension_numbers = #tpu.dot_dimension_numbers<[1], [0], [0], [1], [0, 0, 1, 1], [], []>} : vector<48x192xbf16>, vector<192x144xbf16>, vector<48x144xf32> -> vector<48x144xf32>
    %107 = arith.addf %103, %106 : vector<48x144xf32>
    %c0_90 = arith.constant 0 : index
    %c384_91 = arith.constant 384 : index
    %108 = vector.load %arg11[%c0_90, %c384_91] : memref<48x576xbf16, #tpu.memory_space<vmem>>, vector<48x192xbf16>
    %c0_92 = arith.constant 0 : index
    %c37_93 = arith.constant 37 : index
    %109 = vector.load %arg14[%c0_92, %c37_93] : memref<192x326xbf16, #tpu.memory_space<vmem>>, vector<192x144xbf16>
    %cst_94 = arith.constant dense<0.000000e+00> : vector<48x144xf32>
    %110 = tpu.matmul %108, %109, %cst_94 {dimension_numbers = #tpu.dot_dimension_numbers<[1], [0], [0], [1], [0, 0, 1, 1], [], []>} : vector<48x192xbf16>, vector<192x144xbf16>, vector<48x144xf32> -> vector<48x144xf32>
    %111 = arith.addf %107, %110 : vector<48x144xf32>
    %c0_95 = arith.constant 0 : index
    %c0_96 = arith.constant 0 : index
    %112 = vector.load %arg12[%c0_95, %c0_96] : memref<48x1xf32, #tpu.memory_space<vmem>>, vector<48x1xf32>
    %113 = vector.broadcast %112 : vector<48x1xf32> to vector<48x144xf32>
    %114 = arith.addf %111, %113 : vector<48x144xf32>
    %115 = arith.truncf %114 : vector<48x144xf32> to vector<48x144xbf16>
    %c0_97 = arith.constant 0 : index
    %c0_98 = arith.constant 0 : index
    %c0_99 = arith.constant 0 : index
    %c0_100 = arith.constant 0 : index
    %116 = vector.load %arg13[%c0_97, %c0_98, %c0_99, %c0_100] : memref<1x1x48x144xbf16, #tpu.memory_space<vmem>>, vector<1x1x48x144xbf16>
    %117 = vector.shape_cast %116 : vector<1x1x48x144xbf16> to vector<48x144xbf16>
    %118 = vector.shape_cast %115 : vector<48x144xbf16> to vector<1x1x48x144xbf16>
    tpu.vector_store %arg13[%c0_97, %c0_98, %c0_99, %c0_100], %118 {strides = array<i32>} : memref<1x1x48x144xbf16, #tpu.memory_space<vmem>>, vector<1x1x48x144xbf16>,
    return
  }
  func.func @transform_0(%arg0: i32, %arg1: i32) -> (i32, i32, i32, i32) {
    %c0_i32 = arith.constant 0 : i32
    %c0_i32_0 = arith.constant 0 : i32
    %c0_i32_1 = arith.constant 0 : i32
    return %arg0, %arg1, %c0_i32, %c0_i32_0 : i32, i32, i32, i32
  }
  func.func @transform_1(%arg0: i32, %arg1: i32) -> (i32, i32) {
    %c0_i32 = arith.constant 0 : i32
    %c0_i32_0 = arith.constant 0 : i32
    %c0_i32_1 = arith.constant 0 : i32
    return %c0_i32, %c0_i32_0 : i32, i32
  }
  func.func @transform_2(%arg0: i32, %arg1: i32) -> (i32, i32) {
    %c0_i32 = arith.constant 0 : i32
    %c0_i32_0 = arith.constant 0 : i32
    %c0_i32_1 = arith.constant 0 : i32
    return %c0_i32, %c0_i32_0 : i32, i32
  }
  func.func @transform_3(%arg0: i32, %arg1: i32) -> (i32, i32) {
    %c0_i32 = arith.constant 0 : i32
    %c0_i32_0 = arith.constant 0 : i32
    %c0_i32_1 = arith.constant 0 : i32
    return %c0_i32, %c0_i32_0 : i32, i32
  }
  func.func @transform_4(%arg0: i32, %arg1: i32) -> (i32, i32) {
    %c0_i32 = arith.constant 0 : i32
    %c0_i32_0 = arith.constant 0 : i32
    %c0_i32_1 = arith.constant 0 : i32
    return %c0_i32, %c0_i32_0 : i32, i32
  }
  func.func @transform_5(%arg0: i32, %arg1: i32) -> (i32, i32) {
    %c0_i32 = arith.constant 0 : i32
    %c0_i32_0 = arith.constant 0 : i32
    %c0_i32_1 = arith.constant 0 : i32
    return %c0_i32, %c0_i32_0 : i32, i32
  }
  func.func @transform_6(%arg0: i32, %arg1: i32) -> (i32, i32) {
    %c0_i32 = arith.constant 0 : i32
    %c0_i32_0 = arith.constant 0 : i32
    %c0_i32_1 = arith.constant 0 : i32
    return %c0_i32, %c0_i32_0 : i32, i32
  }
  func.func @transform_7(%arg0: i32, %arg1: i32) -> (i32, i32) {
    %c0_i32 = arith.constant 0 : i32
    %c0_i32_0 = arith.constant 0 : i32
    %c0_i32_1 = arith.constant 0 : i32
    return %c0_i32, %c0_i32_0 : i32, i32
  }
  func.func @transform_8(%arg0: i32, %arg1: i32) -> (i32, i32) {
    %c0_i32 = arith.constant 0 : i32
    %c0_i32_0 = arith.constant 0 : i32
    %c0_i32_1 = arith.constant 0 : i32
    return %c0_i32, %c0_i32_0 : i32, i32
  }
  func.func @transform_9(%arg0: i32, %arg1: i32) -> (i32, i32) {
    %c0_i32 = arith.constant 0 : i32
    %c0_i32_0 = arith.constant 0 : i32
    %c0_i32_1 = arith.constant 0 : i32
    return %c0_i32, %c0_i32_0 : i32, i32
  }
  func.func @transform_10(%arg0: i32, %arg1: i32) -> (i32, i32) {
    %c0_i32 = arith.constant 0 : i32
    %c0_i32_0 = arith.constant 0 : i32
    %c0_i32_1 = arith.constant 0 : i32
    return %c0_i32, %c0_i32_0 : i32, i32
  }
  func.func @transform_11(%arg0: i32, %arg1: i32) -> (i32, i32, i32, i32) {
    %c0_i32 = arith.constant 0 : i32
    %c0_i32_0 = arith.constant 0 : i32
    %c0_i32_1 = arith.constant 0 : i32
    return %arg0, %arg1, %c0_i32, %c0_i32_0 : i32, i32, i32, i32
  }
}

</mosaic_0001>

<llo_original>
// kernel: tile.7
$region0: #{tile.7}
  %s0 = inlined_call_operand.vmem [shape: f32[14,18], index: 0, kind: input, shape index: {}]
  %s1 = inlined_call_operand.vmem [shape: f32[1,252], index: 1, kind: output, shape index: {}]
  $region1: #{tile.7} parent=0
    #allocation0 [shape = 'u8[8192]{0}', space=vmem, size = 0x2000, scoped, tag = 'scoped mem for output reshape']
    %v2 = vld [vmem:[%s0] sm:$0x1]
    %vm3 = vcmask 146432
    %4 = vst.msk [vmem:[#allocation0] sm:$0x1] %vm3, %v2
    %s5 = scalar_lea.vmem %s0, 7
    %v6 = vld [vmem:[%s5] sm:$0x1]
    %s7 = scalar_lea.vmem %s0, 7
    %v8 = vld [vmem:[%s7] sm:$0x1]
    %vm9 = vcmask 15360
    %v10 = vsel %vm9, %v8, %v6
    %11 = vrot.lane.b32.xlu0 %v10, 126
    %v12 = vpop.permute.xlu0 %11
    %vm13 = vcmask 130048
    %s14 = scalar_lea.vmem [#allocation0], 8
    %15 = vst.msk [vmem:[%s14] sm:$0x1] %vm13, %v12
    %vm16 = vcmask 1048560
    %17 = vst.msk [vmem:[#allocation0] sm:$0x1] %vm16, %v12
    %s18 = scalar_lea.vmem %s0, 6
    %v19 = vld [vmem:[%s18] sm:$0x1]
    %20 = vrot.lane.b32.xlu0 %v19, 108
    %v21 = vpop.permute.xlu0 %20
    %vm22 = vcmask 1032032
    %23 = vst.msk [vmem:[#allocation0] sm:$0x1] %vm22, %v21
    %s24 = scalar_lea.vmem %s0, 13
    %v25 = vld [vmem:[%s24] sm:$0x1]
    %26 = vrot.lane.b32.xlu0 %v25, 106
    %v27 = vpop.permute.xlu0 %26
    %vm28 = vcmask 1015632
    %s29 = scalar_lea.vmem [#allocation0], 8
    %30 = vst.msk [vmem:[%s29] sm:$0x1] %vm28, %v27
    %s31 = scalar_lea.vmem %s0, 5
    %v32 = vld [vmem:[%s31] sm:$0x1]
    %33 = vrot.lane.b32.xlu0 %v32, 90
    %v34 = vpop.permute.xlu0 %33
    %vm35 = vcmask 884432
    %36 = vst.msk [vmem:[#allocation0] sm:$0x1] %vm35, %v34
    %s37 = scalar_lea.vmem %s0, 12
    %v38 = vld [vmem:[%s37] sm:$0x1]
    %39 = vrot.lane.b32.xlu0 %v38, 88
    %v40 = vpop.permute.xlu0 %39
    %vm41 = vcmask 868032
    %s42 = scalar_lea.vmem [#allocation0], 8
    %43 = vst.msk [vmem:[%s42] sm:$0x1] %vm41, %v40
    %s44 = scalar_lea.vmem %s0, 4
    %v45 = vld [vmem:[%s44] sm:$0x1]
    %46 = vrot.lane.b32.xlu0 %v45, 72
    %v47 = vpop.permute.xlu0 %46
    %vm48 = vcmask 736832
    %49 = vst.msk [vmem:[#allocation0] sm:$0x1] %vm48, %v47
    %s50 = scalar_lea.vmem %s0, 11
    %v51 = vld [vmem:[%s50] sm:$0x1]
    %52 = vrot.lane.b32.xlu0 %v51, 70
    %v53 = vpop.permute.xlu0 %52
    %vm54 = vcmask 720432
    %s55 = scalar_lea.vmem [#allocation0], 8
    %56 = vst.msk [vmem:[%s55] sm:$0x1] %vm54, %v53
    %s57 = scalar_lea.vmem %s0, 3
    %v58 = vld [vmem:[%s57] sm:$0x1]
    %59 = vrot.lane.b32.xlu0 %v58, 54
    %v60 = vpop.permute.xlu0 %59
    %vm61 = vcmask 589232
    %62 = vst.msk [vmem:[#allocation0] sm:$0x1] %vm61, %v60
    %s63 = scalar_lea.vmem %s0, 10
    %v64 = vld [vmem:[%s63] sm:$0x1]
    %65 = vrot.lane.b32.xlu0 %v64, 52
    %v66 = vpop.permute.xlu0 %65
    %vm67 = vcmask 572832
    %s68 = scalar_lea.vmem [#allocation0], 8
    %69 = vst.msk [vmem:[%s68] sm:$0x1] %vm67, %v66
    %s70 = scalar_lea.vmem %s0, 2
    %v71 = vld [vmem:[%s70] sm:$0x1]
    %72 = vrot.lane.b32.xlu0 %v71, 36
    %v73 = vpop.permute.xlu0 %72
    %vm74 = vcmask 441632
    %75 = vst.msk [vmem:[#allocation0] sm:$0x1] %vm74, %v73
    %s76 = scalar_lea.vmem %s0, 9
    %v77 = vld [vmem:[%s76] sm:$0x1]
    %78 = vrot.lane.b32.xlu0 %v77, 34
    %v79 = vpop.permute.xlu0 %78
    %vm80 = vcmask 425232
    %s81 = scalar_lea.vmem [#allocation0], 8
    %82 = vst.msk [vmem:[%s81] sm:$0x1] %vm80, %v79
    %s83 = scalar_lea.vmem %s0, 1
    %v84 = vld [vmem:[%s83] sm:$0x1]
    %85 = vrot.lane.b32.xlu0 %v84, 18
    %v86 = vpop.permute.xlu0 %85
    %vm87 = vcmask 294032
    %88 = vst.msk [vmem:[#allocation0] sm:$0x1] %vm87, %v86
    %s89 = scalar_lea.vmem %s0, 8
    %v90 = vld [vmem:[%s89] sm:$0x1]
    %91 = vrot.lane.b32.xlu0 %v90, 16
    %v92 = vpop.permute.xlu0 %91
    %vm93 = vcmask 277632
    %s94 = scalar_lea.vmem [#allocation0], 8
    %95 = vst.msk [vmem:[%s94] sm:$0x1] %vm93, %v92
    %s97 = sshll.u32 1, 1
    %s98 = ssub.s32 %s97, 1
    %v100 = vld [vmem:[#allocation0] sm:%s98]
    %s101 = sshll.u32 1, 1
    %s102 = ssub.s32 %s101, 1
    %103 = vst [vmem:[%s1] sm:%s102] %v100
    %s104 = scalar_lea.vmem [#allocation0], 8
    %v105 = vld [vmem:[%s104] sm:%s98]
    %s106 = sshll.u32 1, 1
    %s107 = ssub.s32 %s106, 1
    %s108 = scalar_lea.vmem %s1, 1
    %109 = vst [vmem:[%s108] sm:%s107] %v105

// kernel: tile.6
$region0: #{tile.6}
  #allocation2 [shape = 's32[1]{0}', space=sflag, size = 0x4, scoped, tag = 'scoped memory for tile.6']
  %s0 = inlined_call_operand.hbm [shape: f32[18], index: 0, kind: input, shape index: {}]
  %s1 = inlined_call_operand.vmem [shape: f32[14,18], index: 1, kind: output, shape index: {}]
  $region1: #{tile.6} parent=0
    #allocation0 [shape = 'u8[512]{0}', space=vmem, size = 0x400, scoped, tag = 'operand span for operand 0']
    #allocation1 [shape = 's32[1]{0}', space=sflag, size = 0x4, scoped, tag = 'scoped memory for tile.6']
    %2 = vsyncpa [#allocation1], 0
    // Predicated region
    $region2: #{tile.6} parent=1 // pred_check
      _
    $region3: #{tile.6} parent=1 // pred_check_branch
      %4 = sbr.rel (0) target = $region5
    $region4: #{tile.6} parent=1 // pred_region
      %s6 = ssub.s32 16, 16
      %7 = vsyncadd [#allocation1], %s6
      %s9 = sshll.u32 [#allocation0], 4
      %s10 = int_to_ptr.vmem [resolvable:$true] %s9
      %12 = dma.hbm_to_vmem [thread:$0]  %s0, 16, %s10, [#allocation1]
    $region5: #{tile.6} parent=1 // pred_fallthru
      _
    // Predicated region
    $region6: #{tile.6} parent=1 // pred_check
      _
    $region7: #{tile.6} parent=1 // pred_check_branch
      %14 = sbr.rel (0) target = $region9
    $region8: #{tile.6} parent=1 // pred_region
      %15 = dma.done [#allocation1], 16
    $region9: #{tile.6} parent=1 // pred_fallthru
      _
    %v16 = vld [vmem:[#allocation0] ss:$0 sm:$0xff]
    %17 = vst [vmem:[%s1] sm:$0xff] %v16
    %s18 = scalar_lea.vmem %s1, 8
    %19 = vst [vmem:[%s18] sm:$0xff] %v16
    %20 = vsyncpa [#allocation1], 1

// kernel: effvsr_forward.1
$region0: #{effvsr_forward.1}
  #allocation0 [shape = 'u32[]', space=smem, size = 0x4, offset = 0x4, fixed_abs, tag = 'smem constant byte address 0x4 - core index']
  #allocation1 [shape = 'u32[144,128]{1,0:T(1,128)}', space=vmem, size = 0x12000, scoped, tag = 'internal scratch']
  #allocation2 [shape = 'bf16[192,326]{1,0:T(8,128)(2,1)}', space=vmem, size = 0x24000, scoped, tag = 'scratch operand']
  %s0 = inlined_call_operand.vmem [shape: bf16[4,2,16,288], index: 0, kind: input, shape index: {}]
  %s1 = inlined_call_operand.vmem [shape: f32[1,252], index: 1, kind: input, shape index: {}]
  %s2 = inlined_call_operand.vmem [shape: bf16[64,144], index: 2, kind: input, shape index: {}]
  %s3 = inlined_call_operand.vmem [shape: f32[64,1], index: 3, kind: input, shape index: {}]
  %s4 = inlined_call_operand.vmem [shape: bf16[64,576], index: 4, kind: input, shape index: {}]
  %s5 = inlined_call_operand.vmem [shape: f32[64,1], index: 5, kind: input, shape index: {}]
  %s6 = inlined_call_operand.vmem [shape: f32[64,1], index: 6, kind: input, shape index: {}]
  %s7 = inlined_call_operand.vmem [shape: bf16[64,576], index: 7, kind: input, shape index: {}]
  %s8 = inlined_call_operand.vmem [shape: f32[64,1], index: 8, kind: input, shape index: {}]
  %s9 = inlined_call_operand.vmem [shape: bf16[48,576], index: 9, kind: input, shape index: {}]
  %s10 = inlined_call_operand.vmem [shape: f32[48,1], index: 10, kind: input, shape index: {}]
  %s11 = inlined_call_operand.vmem [shape: bf16[4,2,48,144], index: 11, kind: output, shape index: {}]
  %s12 = sld [smem:[#allocation0]]
  $region101: #{effvsr_forward.1} parent=0
    _
  %s14 = ssub.s32 1, %s12
  %s15 = scalar_select 0, %s14, %s12
  loop: start=0, step=1, limit=10
  $region2: #{effvsr_forward.1} parent=0 // loop_pre_header
    _
  $region3: #{effvsr_forward.1} parent=0 // loop_header
    %s17 = sphi 0, %s21
    %p18 = scmp.ge.s32.totalorder %s17, 10
    %s24 = sphi 0, %s36
    %s25 = sphi 0, %s32
    %s26 = sphi 0, %s24
    %s27 = sphi 0, %s25
    %s28 = sphi 0, %s26
    %s29 = sphi 0, %s27
    %s41 = sphi 0, %s43
    %s44 = sphi 0, %s41
    %s45 = sphi 0, %s44
    %s61 = sphi 0, %s45
    %s65 = sphi 0, %s65
    %s67 = sphi 0, %s65
    %s68 = sphi 0, %s67
    %s82 = sphi 0, %s68
    %s86 = sphi 0, %s86
    %s88 = sphi 0, %s86
    %s89 = sphi 0, %s88
    %s103 = sphi 0, %s89
    %s107 = sphi 0, %s107
    %s109 = sphi 0, %s107
    %s110 = sphi 0, %s109
    %s124 = sphi 0, %s110
    %s128 = sphi 0, %s128
    %s130 = sphi 0, %s128
    %s131 = sphi 0, %s130
    %s145 = sphi 0, %s131
    %s149 = sphi 0, %s149
    %s151 = sphi 0, %s149
    %s152 = sphi 0, %s151
    %s166 = sphi 0, %s152
    %s170 = sphi 0, %s170
    %s172 = sphi 0, %s170
    %s173 = sphi 0, %s172
    %s187 = sphi 0, %s173
    %s191 = sphi 0, %s191
    %s193 = sphi 0, %s191
    %s194 = sphi 0, %s193
    %s208 = sphi 0, %s194
    %s212 = sphi 0, %s212
    %s214 = sphi 0, %s212
    %s215 = sphi 0, %s214
    %s229 = sphi 0, %s215
    %s233 = sphi 0, %s233
    %s235 = sphi 0, %s233
    %s236 = sphi 0, %s235
    %s250 = sphi 0, %s236
    %s254 = sphi 0, %s254
    %s256 = sphi 0, %s254
    %s257 = sphi 0, %s256
    %s271 = sphi 0, %s257
    %s279 = sphi 0, %s281
    %s282 = sphi 0, %s279
    %s283 = sphi 0, %s282
    %s299 = sphi 0, %s283
  $region4: #{effvsr_forward.1} parent=0 // loop_header_branch
    %20 = sbr.rel (%p18) target = $region8
  $region5: #{effvsr_forward.1} parent=0 // loop_body
    %s22 = ssub.s32 %s17, 1
    %s23 = ssub.s32 %s17, 2
    %s30 = sadd.s32 1, %s25
    %p31 = scmp.ge.s32.totalorder %s30, 2
    %s32 = scalar_select %p31, 0, %s30
    %s33 = sadd.s32 1, %s24
    %s34 = scalar_select %p31, %s33, %s24
    %p35 = scmp.ge.s32.totalorder %s34, 4
    %s36 = scalar_select %p35, 0, %s34
    %s37 = ssub.s32 %s24, %s36
    %s38 = ssub.s32 %s25, %s32
    %s39 = sor.u32 %s37, %s38
    %p40 = scmp.eq.s32.totalorder %s39, 0
    %s42 = sadd.s32 %s41, 1
    %s43 = scalar_select %p40, %s41, %s42
    %p46 = pneg %p40
    %p47 = scmp.eq.s32.totalorder %s17, 7
    %p48 = por %p46, %p47
    %p49 = scmp.ne.s32.totalorder %s41, %s44
    %p50 = scmp.eq.s32.totalorder %s17, 0
    %p51 = por %p49, %p50
    %p52 = scmp.ne.s32.totalorder %s41, %s44
    %p53 = scmp.eq.s32.totalorder %s22, 7
    %p54 = por %p52, %p53
    %p55 = scmp.ne.s32.totalorder %s44, %s45
    %p56 = scmp.eq.s32.totalorder %s22, 0
    %p57 = por %p55, %p56
    %p58 = scmp.ne.s32.totalorder %s44, %s45
    %p59 = scmp.eq.s32.totalorder %s23, 7
    %p60 = por %p58, %p59
    %p62 = scmp.ne.s32.totalorder %s45, %s61
    %p63 = scmp.eq.s32.totalorder %s23, 0
    %p64 = por %p62, %p63
    %s66 = sadd.s32 %s65, 1
    %p69 = scmp.eq.s32.totalorder %s17, 7
    %p70 = scmp.ne.s32.totalorder %s65, %s67
    %p71 = scmp.eq.s32.totalorder %s17, 0
    %p72 = por %p70, %p71
    %p73 = scmp.ne.s32.totalorder %s65, %s67
    %p74 = scmp.eq.s32.totalorder %s22, 7
    %p75 = por %p73, %p74
    %p76 = scmp.ne.s32.totalorder %s67, %s68
    %p77 = scmp.eq.s32.totalorder %s22, 0
    %p78 = por %p76, %p77
    %p79 = scmp.ne.s32.totalorder %s67, %s68
    %p80 = scmp.eq.s32.totalorder %s23, 7
    %p81 = por %p79, %p80
    %p83 = scmp.ne.s32.totalorder %s68, %s82
    %p84 = scmp.eq.s32.totalorder %s23, 0
    %p85 = por %p83, %p84
    %s87 = sadd.s32 %s86, 1
    %p90 = scmp.eq.s32.totalorder %s17, 7
    %p91 = scmp.ne.s32.totalorder %s86, %s88
    %p92 = scmp.eq.s32.totalorder %s17, 0
    %p93 = por %p91, %p92
    %p94 = scmp.ne.s32.totalorder %s86, %s88
    %p95 = scmp.eq.s32.totalorder %s22, 7
    %p96 = por %p94, %p95
    %p97 = scmp.ne.s32.totalorder %s88, %s89
    %p98 = scmp.eq.s32.totalorder %s22, 0
    %p99 = por %p97, %p98
    %p100 = scmp.ne.s32.totalorder %s88, %s89
    %p101 = scmp.eq.s32.totalorder %s23, 7
    %p102 = por %p100, %p101
    %p104 = scmp.ne.s32.totalorder %s89, %s103
    %p105 = scmp.eq.s32.totalorder %s23, 0
    %p106 = por %p104, %p105
    %s108 = sadd.s32 %s107, 1
    %p111 = scmp.eq.s32.totalorder %s17, 7
    %p112 = scmp.ne.s32.totalorder %s107, %s109
    %p113 = scmp.eq.s32.totalorder %s17, 0
    %p114 = por %p112, %p113
    %p115 = scmp.ne.s32.totalorder %s107, %s109
    %p116 = scmp.eq.s32.totalorder %s22, 7
    %p117 = por %p115, %p116
    %p118 = scmp.ne.s32.totalorder %s109, %s110
    %p119 = scmp.eq.s32.totalorder %s22, 0
    %p120 = por %p118, %p119
    %p121 = scmp.ne.s32.totalorder %s109, %s110
    %p122 = scmp.eq.s32.totalorder %s23, 7
    %p123 = por %p121, %p122
    %p125 = scmp.ne.s32.totalorder %s110, %s124
    %p126 = scmp.eq.s32.totalorder %s23, 0
    %p127 = por %p125, %p126
    %s129 = sadd.s32 %s128, 1
    %p132 = scmp.eq.s32.totalorder %s17, 7
    %p133 = scmp.ne.s32.totalorder %s128, %s130
    %p134 = scmp.eq.s32.totalorder %s17, 0
    %p135 = por %p133, %p134
    %p136 = scmp.ne.s32.totalorder %s128, %s130
    %p137 = scmp.eq.s32.totalorder %s22, 7
    %p138 = por %p136, %p137
    %p139 = scmp.ne.s32.totalorder %s130, %s131
    %p140 = scmp.eq.s32.totalorder %s22, 0
    %p141 = por %p139, %p140
    %p142 = scmp.ne.s32.totalorder %s130, %s131
    %p143 = scmp.eq.s32.totalorder %s23, 7
    %p144 = por %p142, %p143
    %p146 = scmp.ne.s32.totalorder %s131, %s145
    %p147 = scmp.eq.s32.totalorder %s23, 0
    %p148 = por %p146, %p147
    %s150 = sadd.s32 %s149, 1
    %p153 = scmp.eq.s32.totalorder %s17, 7
    %p154 = scmp.ne.s32.totalorder %s149, %s151
    %p155 = scmp.eq.s32.totalorder %s17, 0
    %p156 = por %p154, %p155
    %p157 = scmp.ne.s32.totalorder %s149, %s151
    %p158 = scmp.eq.s32.totalorder %s22, 7
    %p159 = por %p157, %p158
    %p160 = scmp.ne.s32.totalorder %s151, %s152
    %p161 = scmp.eq.s32.totalorder %s22, 0
    %p162 = por %p160, %p161
    %p163 = scmp.ne.s32.totalorder %s151, %s152
    %p164 = scmp.eq.s32.totalorder %s23, 7
    %p165 = por %p163, %p164
    %p167 = scmp.ne.s32.totalorder %s152, %s166
    %p168 = scmp.eq.s32.totalorder %s23, 0
    %p169 = por %p167, %p168
    %s171 = sadd.s32 %s170, 1
    %p174 = scmp.eq.s32.totalorder %s17, 7
    %p175 = scmp.ne.s32.totalorder %s170, %s172
    %p176 = scmp.eq.s32.totalorder %s17, 0
    %p177 = por %p175, %p176
    %p178 = scmp.ne.s32.totalorder %s170, %s172
    %p179 = scmp.eq.s32.totalorder %s22, 7
    %p180 = por %p178, %p179
    %p181 = scmp.ne.s32.totalorder %s172, %s173
    %p182 = scmp.eq.s32.totalorder %s22, 0
    %p183 = por %p181, %p182
    %p184 = scmp.ne.s32.totalorder %s172, %s173
    %p185 = scmp.eq.s32.totalorder %s23, 7
    %p186 = por %p184, %p185
    %p188 = scmp.ne.s32.totalorder %s173, %s187
    %p189 = scmp.eq.s32.totalorder %s23, 0
    %p190 = por %p188, %p189
    %s192 = sadd.s32 %s191, 1
    %p195 = scmp.eq.s32.totalorder %s17, 7
    %p196 = scmp.ne.s32.totalorder %s191, %s193
    %p197 = scmp.eq.s32.totalorder %s17, 0
    %p198 = por %p196, %p197
    %p199 = scmp.ne.s32.totalorder %s191, %s193
    %p200 = scmp.eq.s32.totalorder %s22, 7
    %p201 = por %p199, %p200
    %p202 = scmp.ne.s32.totalorder %s193, %s194
    %p203 = scmp.eq.s32.totalorder %s22, 0
    %p204 = por %p202, %p203
    %p205 = scmp.ne.s32.totalorder %s193, %s194
    %p206 = scmp.eq.s32.totalorder %s23, 7
    %p207 = por %p205, %p206
    %p209 = scmp.ne.s32.totalorder %s194, %s208
    %p210 = scmp.eq.s32.totalorder %s23, 0
    %p211 = por %p209, %p210
    %s213 = sadd.s32 %s212, 1
    %p216 = scmp.eq.s32.totalorder %s17, 7
    %p217 = scmp.ne.s32.totalorder %s212, %s214
    %p218 = scmp.eq.s32.totalorder %s17, 0
    %p219 = por %p217, %p218
    %p220 = scmp.ne.s32.totalorder %s212, %s214
    %p221 = scmp.eq.s32.totalorder %s22, 7
    %p222 = por %p220, %p221
    %p223 = scmp.ne.s32.totalorder %s214, %s215
    %p224 = scmp.eq.s32.totalorder %s22, 0
    %p225 = por %p223, %p224
    %p226 = scmp.ne.s32.totalorder %s214, %s215
    %p227 = scmp.eq.s32.totalorder %s23, 7
    %p228 = por %p226, %p227
    %p230 = scmp.ne.s32.totalorder %s215, %s229
    %p231 = scmp.eq.s32.totalorder %s23, 0
    %p232 = por %p230, %p231
    %s234 = sadd.s32 %s233, 1
    %p237 = scmp.eq.s32.totalorder %s17, 7
    %p238 = scmp.ne.s32.totalorder %s233, %s235
    %p239 = scmp.eq.s32.totalorder %s17, 0
    %p240 = por %p238, %p239
    %p241 = scmp.ne.s32.totalorder %s233, %s235
    %p242 = scmp.eq.s32.totalorder %s22, 7
    %p243 = por %p241, %p242
    %p244 = scmp.ne.s32.totalorder %s235, %s236
    %p245 = scmp.eq.s32.totalorder %s22, 0
    %p246 = por %p244, %p245
    %p247 = scmp.ne.s32.totalorder %s235, %s236
    %p248 = scmp.eq.s32.totalorder %s23, 7
    %p249 = por %p247, %p248
    %p251 = scmp.ne.s32.totalorder %s236, %s250
    %p252 = scmp.eq.s32.totalorder %s23, 0
    %p253 = por %p251, %p252
    %s255 = sadd.s32 %s254, 1
    %p258 = scmp.eq.s32.totalorder %s17, 7
    %p259 = scmp.ne.s32.totalorder %s254, %s256
    %p260 = scmp.eq.s32.totalorder %s17, 0
    %p261 = por %p259, %p260
    %p262 = scmp.ne.s32.totalorder %s254, %s256
    %p263 = scmp.eq.s32.totalorder %s22, 7
    %p264 = por %p262, %p263
    %p265 = scmp.ne.s32.totalorder %s256, %s257
    %p266 = scmp.eq.s32.totalorder %s22, 0
    %p267 = por %p265, %p266
    %p268 = scmp.ne.s32.totalorder %s256, %s257
    %p269 = scmp.eq.s32.totalorder %s23, 7
    %p270 = por %p268, %p269
    %p272 = scmp.ne.s32.totalorder %s257, %s271
    %p273 = scmp.eq.s32.totalorder %s23, 0
    %p274 = por %p272, %p273
    %s275 = ssub.s32 %s24, %s36
    %s276 = ssub.s32 %s25, %s32
    %s277 = sor.u32 %s275, %s276
    %p278 = scmp.eq.s32.totalorder %s277, 0
    %s280 = sadd.s32 %s279, 1
    %s281 = scalar_select %p278, %s279, %s280
    %p284 = pneg %p278
    %p285 = scmp.eq.s32.totalorder %s17, 7
    %p286 = por %p284, %p285
    %p287 = scmp.ne.s32.totalorder %s279, %s282
    %p288 = scmp.eq.s32.totalorder %s17, 0
    %p289 = por %p287, %p288
    %p290 = scmp.ne.s32.totalorder %s279, %s282
    %p291 = scmp.eq.s32.totalorder %s22, 7
    %p292 = por %p290, %p291
    %p293 = scmp.ne.s32.totalorder %s282, %s283
    %p294 = scmp.eq.s32.totalorder %s22, 0
    %p295 = por %p293, %p294
    %p296 = scmp.ne.s32.totalorder %s282, %s283
    %p297 = scmp.eq.s32.totalorder %s23, 7
    %p298 = por %p296, %p297
    %p300 = scmp.ne.s32.totalorder %s283, %s299
    %p301 = scmp.eq.s32.totalorder %s23, 0
    %p302 = por %p300, %p301
    %p303 = scmp.le.s32.totalorder 1, %s17
    %p304 = scmp.lt.s32.totalorder %s17, 9
    %p305 = pnand %p303, %p304
    %p306 = pneg %p305
    // Predicated region
    $region9: #{effvsr_forward.1} parent=5 // pred_check
      _
    $region10: #{effvsr_forward.1} parent=5 // pred_check_branch
      %308 = sbr.rel (%p305) target = $region12
    $region11: #{effvsr_forward.1} parent=5 // pred_region
      %s309 = ssub.s32 %s17, 1
      // Predicated region
      $region13: #{effvsr_forward.1} parent=11 // pred_check
        %p310 = pneg %p78
      $region14: #{effvsr_forward.1} parent=11 // pred_check_branch
        %312 = sbr.rel (%p310) target = $region16
      $region15: #{effvsr_forward.1} parent=11 // pred_region
        _
      $region16: #{effvsr_forward.1} parent=11 // pred_fallthru
        _
      // Predicated region
      $region17: #{effvsr_forward.1} parent=11 // pred_check
        %p313 = pneg %p99
      $region18: #{effvsr_forward.1} parent=11 // pred_check_branch
        %315 = sbr.rel (%p313) target = $region20
      $region19: #{effvsr_forward.1} parent=11 // pred_region
        _
      $region20: #{effvsr_forward.1} parent=11 // pred_fallthru
        _
      // Predicated region
      $region21: #{effvsr_forward.1} parent=11 // pred_check
        %p316 = pneg %p120
      $region22: #{effvsr_forward.1} parent=11 // pred_check_branch
        %318 = sbr.rel (%p316) target = $region24
      $region23: #{effvsr_forward.1} parent=11 // pred_region
        _
      $region24: #{effvsr_forward.1} parent=11 // pred_fallthru
        _
      // Predicated region
      $region25: #{effvsr_forward.1} parent=11 // pred_check
        %p319 = pneg %p141
      $region26: #{effvsr_forward.1} parent=11 // pred_check_branch
        %321 = sbr.rel (%p319) target = $region28
      $region27: #{effvsr_forward.1} parent=11 // pred_region
        _
      $region28: #{effvsr_forward.1} parent=11 // pred_fallthru
        _
      // Predicated region
      $region29: #{effvsr_forward.1} parent=11 // pred_check
        %p322 = pneg %p162
      $region30: #{effvsr_forward.1} parent=11 // pred_check_branch
        %324 = sbr.rel (%p322) target = $region32
      $region31: #{effvsr_forward.1} parent=11 // pred_region
        _
      $region32: #{effvsr_forward.1} parent=11 // pred_fallthru
        _
      // Predicated region
      $region33: #{effvsr_forward.1} parent=11 // pred_check
        %p325 = pneg %p183
      $region34: #{effvsr_forward.1} parent=11 // pred_check_branch
        %327 = sbr.rel (%p325) target = $region36
      $region35: #{effvsr_forward.1} parent=11 // pred_region
        _
      $region36: #{effvsr_forward.1} parent=11 // pred_fallthru
        _
      // Predicated region
      $region37: #{effvsr_forward.1} parent=11 // pred_check
        %p328 = pneg %p204
      $region38: #{effvsr_forward.1} parent=11 // pred_check_branch
        %330 = sbr.rel (%p328) target = $region40
      $region39: #{effvsr_forward.1} parent=11 // pred_region
        _
      $region40: #{effvsr_forward.1} parent=11 // pred_fallthru
        _
      // Predicated region
      $region41: #{effvsr_forward.1} parent=11 // pred_check
        %p331 = pneg %p225
      $region42: #{effvsr_forward.1} parent=11 // pred_check_branch
        %333 = sbr.rel (%p331) target = $region44
      $region43: #{effvsr_forward.1} parent=11 // pred_region
        _
      $region44: #{effvsr_forward.1} parent=11 // pred_fallthru
        _
      // Predicated region
      $region45: #{effvsr_forward.1} parent=11 // pred_check
        %p334 = pneg %p246
      $region46: #{effvsr_forward.1} parent=11 // pred_check_branch
        %336 = sbr.rel (%p334) target = $region48
      $region47: #{effvsr_forward.1} parent=11 // pred_region
        _
      $region48: #{effvsr_forward.1} parent=11 // pred_fallthru
        _
      // Predicated region
      $region49: #{effvsr_forward.1} parent=11 // pred_check
        %p337 = pneg %p267
      $region50: #{effvsr_forward.1} parent=11 // pred_check_branch
        %339 = sbr.rel (%p337) target = $region52
      $region51: #{effvsr_forward.1} parent=11 // pred_region
        _
      $region52: #{effvsr_forward.1} parent=11 // pred_fallthru
        _
    $region12: #{effvsr_forward.1} parent=5 // pred_fallthru
      _
    %p340 = scmp.lt.s32.totalorder %s17, 8
    // Predicated region
    $region53: #{effvsr_forward.1} parent=5 // pred_check
      %p341 = pneg %p340
    $region54: #{effvsr_forward.1} parent=5 // pred_check_branch
      %343 = sbr.rel (%p341) target = $region56
    $region55: #{effvsr_forward.1} parent=5 // pred_region
      // Predicated region
      $region57: #{effvsr_forward.1} parent=55 // pred_check
        %p344 = pneg %p51
      $region58: #{effvsr_forward.1} parent=55 // pred_check_branch
        %346 = sbr.rel (%p344) target = $region60
      $region59: #{effvsr_forward.1} parent=55 // pred_region
        %p347 = scmp.lt.s32.totalorder %s24, 3
        %s348 = scalar_select %p347, %s24, 3
        %p349 = scmp.lt.s32.totalorder %s25, 1
        %s350 = scalar_select %p349, %s25, 1
        %s351 = smul.addr %s350, 6
        %s352 = smul.addr %s348, 12
        %s353 = sadd.s32 %s351, %s352
        %s354 = smul.addr %s353, 4
        %s355 = scalar_lea.vmem %s0, %s354
      $region60: #{effvsr_forward.1} parent=55 // pred_fallthru
        _
    $region56: #{effvsr_forward.1} parent=5 // pred_fallthru
      _
    %p356 = scmp.le.s32.totalorder 1, %s17
    %p357 = scmp.lt.s32.totalorder %s17, 9
    %p358 = pnand %p356, %p357
    %p359 = pneg %p358
    // Predicated region
    $region61: #{effvsr_forward.1} parent=5 // pred_check
      _
    $region62: #{effvsr_forward.1} parent=5 // pred_check_branch
      %361 = sbr.rel (%p358) target = $region64
    $region63: #{effvsr_forward.1} parent=5 // pred_region
      %s362 = ssub.s32 %s17, 1
      %p363 = scmp.lt.s32.totalorder %s26, 3
      %s364 = scalar_select %p363, %s26, 3
      %p365 = scmp.lt.s32.totalorder %s27, 1
      %s366 = scalar_select %p365, %s27, 1
      %s367 = smul.addr %s366, 6
      %s368 = smul.addr %s364, 12
      %s369 = sadd.s32 %s367, %s368
      %s370 = smul.addr %s369, 4
      %s371 = scalar_lea.vmem %s0, %s370
      %p372 = pneg %p57
      %p373 = pneg %p54
      %p374 = pneg %p78
      %p375 = pneg %p75
      %p376 = pneg %p99
      %p377 = pneg %p96
      %p378 = pneg %p120
      %p379 = pneg %p117
      %p380 = pneg %p141
      %p381 = pneg %p138
      %p382 = pneg %p162
      %p383 = pneg %p159
      %p384 = pneg %p183
      %p385 = pneg %p180
      %p386 = pneg %p204
      %p387 = pneg %p201
      %p388 = pneg %p225
      %p389 = pneg %p222
      %p390 = pneg %p246
      %p391 = pneg %p243
      %p392 = pneg %p267
      %p393 = pneg %p264
      %p394 = pneg %p295
      %p395 = pneg %p292
      %p396 = scmp.lt.s32.totalorder %s26, 3
      %s397 = scalar_select %p396, %s26, 3
      %p398 = scmp.lt.s32.totalorder %s27, 1
      %s399 = scalar_select %p398, %s27, 1
      %s400 = smul.addr %s399, 12
      %s401 = smul.addr %s397, 24
      %s402 = sadd.s32 %s400, %s401
      %s403 = smul.addr %s402, 4
      %s404 = scalar_lea.vmem %s11, %s403
      %p405 = scmp.lt.s32.totalorder %s26, 3
      %s406 = scalar_select %p405, %s26, 3
      %p407 = scmp.lt.s32.totalorder %s27, 1
      %s408 = scalar_select %p407, %s27, 1
      %s409 = smul.addr %s408, 6
      %s410 = smul.addr %s406, 12
      %s411 = sadd.s32 %s409, %s410
      %s412 = smul.addr %s411, 4
      %s413 = scalar_lea.vmem %s0, %s412
      %p414 = scmp.lt.s32.totalorder %s26, 3
      %s415 = scalar_select %p414, %s26, 3
      %p416 = scmp.lt.s32.totalorder %s27, 1
      %s417 = scalar_select %p416, %s27, 1
      %s418 = smul.addr %s417, 12
      %s419 = smul.addr %s415, 24
      %s420 = sadd.s32 %s418, %s419
      %s421 = smul.addr %s420, 4
      %s422 = scalar_lea.vmem %s11, %s421
      %v424 = vld [vmem:[%s1] sm:$0x3]
      %vm425 = vcmp.gt.f32.partialorder %v424, 0.5
      %v426 = vld [vmem:[%s413] sm:$0xff]
      %v427 = vld [vmem:[%s413 + $0x8] sm:$0xf]
      %v428 = vld [vmem:[%s413 + $0xc] sm:$0xff]
      %v429 = vld [vmem:[%s413 + $0x14] sm:$0xf]
      %434 = vrot.lane.b32.xlu0 %v426, 38
      %v435 = vpop.permute.xlu0 %434
      %436 = vrot.lane.b32.xlu0 %v427, 38
      %v437 = vpop.permute.xlu0 %436
      %438 = vrot.lane.b32.xlu0 %v428, 38
      %v439 = vpop.permute.xlu0 %438
      %440 = vrot.lane.b32.xlu0 %v429, 38
      %v441 = vpop.permute.xlu0 %440
      %v442 = vrot.slane %v435, 4
      %v443 = vrot.slane %v439, 4
      %vm444 = vcmask 310272
      %v445 = vsel %vm444, %v442, %v435
      %v446 = vsel %vm444, %v442, %v437
      %v447 = vsel %vm444, %v443, %v439
      %v448 = vsel %vm444, %v443, %v441
      %vm453 = vcmask 1043760
      %vm454 = vcmask 1047556
      %vm455 = vmor %vm454, %vm453
      %456 = vst.msk [vmem:[#allocation2] sm:$0xff] %vm455, %v445
      %vm457 = vcmask 568320
      %458 = vst.msk [vmem:[#allocation2 + $0x8] sm:$0xf] %vm457, %v446
      %459 = vst.msk [vmem:[#allocation2 + $0xc] sm:$0xff] %vm455, %v447
      %460 = vst.msk [vmem:[#allocation2 + $0x14] sm:$0xf] %vm457, %v448
      %461 = vrot.lane.b32.xlu0 %v426, 37
      %v462 = vpop.permute.xlu0 %461
      %463 = vrot.lane.b32.xlu0 %v427, 37
      %v464 = vpop.permute.xlu0 %463
      %465 = vrot.lane.b32.xlu0 %v428, 37
      %v466 = vpop.permute.xlu0 %465
      %467 = vrot.lane.b32.xlu0 %v429, 37
      %v468 = vpop.permute.xlu0 %467
      %v469 = vrot.slane %v462, 4
      %v470 = vrot.slane %v466, 4
      %vm471 = vcmask 302080
      %v472 = vsel %vm471, %v469, %v462
      %v473 = vsel %vm471, %v469, %v464
      %v474 = vsel %vm471, %v470, %v466
      %v475 = vsel %vm471, %v470, %v468
      %vm480 = vcmask 1043752
      %vm481 = vmor %vm454, %vm480
      %482 = vst.msk [vmem:[#allocation2 + $0x18] sm:$0xff] %vm481, %v472
      %vm483 = vcmask 560128
      %484 = vst.msk [vmem:[#allocation2 + $0x20] sm:$0xf] %vm483, %v473
      %485 = vst.msk [vmem:[#allocation2 + $0x24] sm:$0xff] %vm481, %v474
      %486 = vst.msk [vmem:[#allocation2 + $0x2c] sm:$0xf] %vm483, %v475
      %487 = vrot.lane.b32.xlu0 %v426, 36
      %v488 = vpop.permute.xlu0 %487
      %489 = vrot.lane.b32.xlu0 %v427, 36
      %v490 = vpop.permute.xlu0 %489
      %491 = vrot.lane.b32.xlu0 %v428, 36
      %v492 = vpop.permute.xlu0 %491
      %493 = vrot.lane.b32.xlu0 %v429, 36
      %v494 = vpop.permute.xlu0 %493
      %v495 = vrot.slane %v488, 4
      %v496 = vrot.slane %v492, 4
      %vm497 = vcmask 293888
      %v498 = vsel %vm497, %v495, %v488
      %v499 = vsel %vm497, %v495, %v490
      %v500 = vsel %vm497, %v496, %v492
      %v501 = vsel %vm497, %v496, %v494
      %vm506 = vcmask 1043744
      %vm507 = vmor %vm454, %vm506
      %508 = vst.msk [vmem:[#allocation2 + $0x30] sm:$0xff] %vm507, %v498
      %vm509 = vcmask 551936
      %510 = vst.msk [vmem:[#allocation2 + $0x38] sm:$0xf] %vm509, %v499
      %511 = vst.msk [vmem:[#allocation2 + $0x3c] sm:$0xff] %vm507, %v500
      %512 = vst.msk [vmem:[#allocation2 + $0x44] sm:$0xf] %vm509, %v501
      %513 = vrot.lane.b32.xlu0 %v426, 20
      %v514 = vpop.permute.xlu0 %513
      %515 = vrot.lane.b32.xlu0 %v427, 20
      %v516 = vpop.permute.xlu0 %515
      %517 = vrot.lane.b32.xlu0 %v428, 20
      %v518 = vpop.permute.xlu0 %517
      %519 = vrot.lane.b32.xlu0 %v429, 20
      %v520 = vpop.permute.xlu0 %519
      %v521 = vrot.slane %v514, 4
      %v522 = vrot.slane %v518, 4
      %vm523 = vcmask 162816
      %v524 = vsel %vm523, %v521, %v514
      %v525 = vsel %vm523, %v521, %v516
      %v526 = vsel %vm523, %v522, %v518
      %v527 = vsel %vm523, %v522, %v520
      %vm532 = vcmask 1043616
      %vm533 = vmor %vm454, %vm532
      %534 = vst.msk [vmem:[#allocation2 + $0x48] sm:$0xff] %vm533, %v524
      %vm535 = vcmask 420864
      %536 = vst.msk [vmem:[#allocation2 + $0x50] sm:$0xf] %vm535, %v525
      %537 = vst.msk [vmem:[#allocation2 + $0x54] sm:$0xff] %vm533, %v526
      %538 = vst.msk [vmem:[#allocation2 + $0x5c] sm:$0xf] %vm535, %v527
      %539 = vrot.lane.b32.xlu0 %v426, 19
      %v540 = vpop.permute.xlu0 %539
      %541 = vrot.lane.b32.xlu0 %v427, 19
      %v542 = vpop.permute.xlu0 %541
      %543 = vrot.lane.b32.xlu0 %v428, 19
      %v544 = vpop.permute.xlu0 %543
      %545 = vrot.lane.b32.xlu0 %v429, 19
      %v546 = vpop.permute.xlu0 %545
      %v547 = vrot.slane %v540, 4
      %v548 = vrot.slane %v544, 4
      %vm549 = vcmask 154624
      %v550 = vsel %vm549, %v547, %v540
      %v551 = vsel %vm549, %v547, %v542
      %v552 = vsel %vm549, %v548, %v544
      %v553 = vsel %vm549, %v548, %v546
      %vm558 = vcmask 1043608
      %vm559 = vmor %vm454, %vm558
      %560 = vst.msk [vmem:[#allocation2 + $0x60] sm:$0xff] %vm559, %v550
      %vm561 = vcmask 412672
      %562 = vst.msk [vmem:[#allocation2 + $0x68] sm:$0xf] %vm561, %v551
      %563 = vst.msk [vmem:[#allocation2 + $0x6c] sm:$0xff] %vm559, %v552
      %564 = vst.msk [vmem:[#allocation2 + $0x74] sm:$0xf] %vm561, %v553
      %565 = vrot.lane.b32.xlu0 %v426, 18
      %v566 = vpop.permute.xlu0 %565
      %567 = vrot.lane.b32.xlu0 %v427, 18
      %v568 = vpop.permute.xlu0 %567
      %569 = vrot.lane.b32.xlu0 %v428, 18
      %v570 = vpop.permute.xlu0 %569
      %571 = vrot.lane.b32.xlu0 %v429, 18
      %v572 = vpop.permute.xlu0 %571
      %v573 = vrot.slane %v566, 4
      %v574 = vrot.slane %v570, 4
      %vm575 = vcmask 146432
      %v576 = vsel %vm575, %v573, %v566
      %v577 = vsel %vm575, %v573, %v568
      %v578 = vsel %vm575, %v574, %v570
      %v579 = vsel %vm575, %v574, %v572
      %vm584 = vcmask 1043600
      %vm585 = vmor %vm454, %vm584
      %586 = vst.msk [vmem:[#allocation2 + $0x78] sm:$0xff] %vm585, %v576
      %vm587 = vcmask 404480
      %588 = vst.msk [vmem:[#allocation2 + $0x80] sm:$0xf] %vm587, %v577
      %589 = vst.msk [vmem:[#allocation2 + $0x84] sm:$0xff] %vm585, %v578
      %590 = vst.msk [vmem:[#allocation2 + $0x8c] sm:$0xf] %vm587, %v579
      %591 = vrot.lane.b32.xlu0 %v426, 2
      %v592 = vpop.permute.xlu0 %591
      %593 = vrot.lane.b32.xlu0 %v427, 2
      %v594 = vpop.permute.xlu0 %593
      %595 = vrot.lane.b32.xlu0 %v428, 2
      %v596 = vpop.permute.xlu0 %595
      %597 = vrot.lane.b32.xlu0 %v429, 2
      %v598 = vpop.permute.xlu0 %597
      %v599 = vrot.slane %v592, 4
      %v600 = vrot.slane %v596, 4
      %vm601 = vcmask 15360
      %v602 = vsel %vm601, %v599, %v592
      %v603 = vsel %vm601, %v599, %v594
      %v604 = vsel %vm601, %v600, %v596
      %v605 = vsel %vm601, %v600, %v598
      %vm610 = vcmask 1043472
      %vm611 = vmor %vm454, %vm610
      %612 = vst.msk [vmem:[#allocation2 + $0x90] sm:$0xff] %vm611, %v602
      %vm613 = vcmask 273408
      %614 = vst.msk [vmem:[#allocation2 + $0x98] sm:$0xf] %vm613, %v603
      %615 = vst.msk [vmem:[#allocation2 + $0x9c] sm:$0xff] %vm611, %v604
      %616 = vst.msk [vmem:[#allocation2 + $0xa4] sm:$0xf] %vm613, %v605
      %617 = vrot.lane.b32.xlu0 %v426, 1
      %v618 = vpop.permute.xlu0 %617
      %619 = vrot.lane.b32.xlu0 %v427, 1
      %v620 = vpop.permute.xlu0 %619
      %621 = vrot.lane.b32.xlu0 %v428, 1
      %v622 = vpop.permute.xlu0 %621
      %623 = vrot.lane.b32.xlu0 %v429, 1
      %v624 = vpop.permute.xlu0 %623
      %v625 = vrot.slane %v618, 4
      %v626 = vrot.slane %v622, 4
      %vm627 = vcmask 7168
      %v628 = vsel %vm627, %v625, %v618
      %v629 = vsel %vm627, %v625, %v620
      %v630 = vsel %vm627, %v626, %v622
      %v631 = vsel %vm627, %v626, %v624
      %vm636 = vcmask 1043464
      %vm637 = vmor %vm454, %vm636
      %638 = vst.msk [vmem:[#allocation2 + $0xa8] sm:$0xff] %vm637, %v628
      %vm639 = vcmask 265216
      %640 = vst.msk [vmem:[#allocation2 + $0xb0] sm:$0xf] %vm639, %v629
      %641 = vst.msk [vmem:[#allocation2 + $0xb4] sm:$0xff] %vm637, %v630
      %642 = vst.msk [vmem:[#allocation2 + $0xbc] sm:$0xf] %vm639, %v631
      %643 = vst [vmem:[#allocation2 + $0xc0] sm:$0xff] %v426
      %vm644 = vcmask 257024
      %645 = vst.msk [vmem:[#allocation2 + $0xc8] sm:$0xf] %vm644, %v427
      %646 = vst [vmem:[#allocation2 + $0xcc] sm:$0xff] %v428
      %647 = vst.msk [vmem:[#allocation2 + $0xd4] sm:$0xf] %vm644, %v429
      %v648 = vld [vmem:[%s2] sm:$0xff]
      %v649 = vld [vmem:[%s2 + $0x8] sm:$0xff]
      %v650 = vld [vmem:[%s2 + $0x10] sm:$0xff]
      %v651 = vld [vmem:[%s2 + $0x18] sm:$0xff]
      %v652 = vld [vmem:[%s2 + $0x20] sm:$0xff]
      %v653 = vld [vmem:[%s2 + $0x28] sm:$0xff]
      %v654 = vld [vmem:[%s2 + $0x30] sm:$0xff]
      %v655 = vld [vmem:[%s2 + $0x38] sm:$0xff]
      %v656 = vld [vmem:[#allocation2] sm:$0xff]
      %v657 = vld [vmem:[#allocation2 + $0x8] sm:$0xf]
      %v658 = vld [vmem:[#allocation2 + $0xc] sm:$0xff]
      %v659 = vld [vmem:[#allocation2 + $0x14] sm:$0xf]
      %v660 = vld [vmem:[#allocation2 + $0x18] sm:$0xff]
      %v661 = vld [vmem:[#allocation2 + $0x20] sm:$0xf]
      %v662 = vld [vmem:[#allocation2 + $0x24] sm:$0xff]
      %v663 = vld [vmem:[#allocation2 + $0x2c] sm:$0xf]
      %v664 = vld [vmem:[#allocation2 + $0x30] sm:$0xff]
      %v665 = vld [vmem:[#allocation2 + $0x38] sm:$0xf]
      %v666 = vld [vmem:[#allocation2 + $0x3c] sm:$0xff]
      %v667 = vld [vmem:[#allocation2 + $0x44] sm:$0xf]
      %v668 = vld [vmem:[#allocation2 + $0x48] sm:$0xff]
      %v669 = vld [vmem:[#allocation2 + $0x50] sm:$0xf]
      %v670 = vld [vmem:[#allocation2 + $0x54] sm:$0xff]
      %v671 = vld [vmem:[#allocation2 + $0x5c] sm:$0xf]
      %v672 = vld [vmem:[#allocation2 + $0x60] sm:$0xff]
      %v673 = vld [vmem:[#allocation2 + $0x68] sm:$0xf]
      %v674 = vld [vmem:[#allocation2 + $0x6c] sm:$0xff]
      %v675 = vld [vmem:[#allocation2 + $0x74] sm:$0xf]
      %v676 = vld [vmem:[#allocation2 + $0x78] sm:$0xff]
      %v677 = vld [vmem:[#allocation2 + $0x80] sm:$0xf]
      %v678 = vld [vmem:[#allocation2 + $0x84] sm:$0xff]
      %v679 = vld [vmem:[#allocation2 + $0x8c] sm:$0xf]
      %v680 = vld [vmem:[#allocation2 + $0x90] sm:$0xff]
      %v681 = vld [vmem:[#allocation2 + $0x98] sm:$0xf]
      %v682 = vld [vmem:[#allocation2 + $0x9c] sm:$0xff]
      %v683 = vld [vmem:[#allocation2 + $0xa4] sm:$0xf]
      %v684 = vld [vmem:[#allocation2 + $0xa8] sm:$0xff]
      %v685 = vld [vmem:[#allocation2 + $0xb0] sm:$0xf]
      %v686 = vld [vmem:[#allocation2 + $0xb4] sm:$0xff]
      %v687 = vld [vmem:[#allocation2 + $0xbc] sm:$0xf]
      %v688 = vld [vmem:[#allocation2 + $0xc0] sm:$0xff]
      %v689 = vld [vmem:[#allocation2 + $0xc8] sm:$0xf]
      %v690 = vld [vmem:[#allocation2 + $0xcc] sm:$0xff]
      %v691 = vld [vmem:[#allocation2 + $0xd4] sm:$0xf]
      %v692 = vld [vmem:[%s3] sm:$0xff]
      %v693 = vld [vmem:[%s3 + $0x8] sm:$0xff]
      %v694 = vld [vmem:[%s3 + $0x10] sm:$0xff]
      %v695 = vld [vmem:[%s3 + $0x18] sm:$0xff]
      %v696 = vld [vmem:[%s3 + $0x20] sm:$0xff]
      %v697 = vld [vmem:[%s3 + $0x28] sm:$0xff]
      %v698 = vld [vmem:[%s3 + $0x30] sm:$0xff]
      %v699 = vld [vmem:[%s3 + $0x38] sm:$0xff]
      %701 = vset.pattern.permute.xlu0 0
      %702 = vperm.xlu0 %701, %v692
      %v703 = vpop.permute.xlu0 %702
      %706 = vset.pattern.permute.xlu0 0
      %707 = vperm.xlu0 %706, %v693
      %v708 = vpop.permute.xlu0 %707
      %711 = vset.pattern.permute.xlu0 0
      %712 = vperm.xlu0 %711, %v694
      %v713 = vpop.permute.xlu0 %712
      %716 = vset.pattern.permute.xlu0 0
      %717 = vperm.xlu0 %716, %v695
      %v718 = vpop.permute.xlu0 %717
      %721 = vset.pattern.permute.xlu0 0
      %722 = vperm.xlu0 %721, %v696
      %v723 = vpop.permute.xlu0 %722
      %726 = vset.pattern.permute.xlu0 0
      %727 = vperm.xlu0 %726, %v697
      %v728 = vpop.permute.xlu0 %727
      %731 = vset.pattern.permute.xlu0 0
      %732 = vperm.xlu0 %731, %v698
      %v733 = vpop.permute.xlu0 %732
      %736 = vset.pattern.permute.xlu0 0
      %737 = vperm.xlu0 %736, %v699
      %v738 = vpop.permute.xlu0 %737
      %v748 = vunpack.c.l.b16 %v648
      %v749 = vunpack.c.h.b16 %v648
      %v750 = vunpack.c.l.b16 %v649
      %v751 = vunpack.c.h.b16 %v649
      %v752 = vunpack.c.l.b16 %v650
      %v753 = vunpack.c.h.b16 %v650
      %v754 = vunpack.c.l.b16 %v651
      %v755 = vunpack.c.h.b16 %v651
      %v756 = vunpack.c.l.b16 %v652
      %v757 = vunpack.c.h.b16 %v652
      %v758 = vunpack.c.l.b16 %v653
      %v759 = vunpack.c.h.b16 %v653
      %v760 = vunpack.c.l.b16 %v654
      %v761 = vunpack.c.h.b16 %v654
      %v762 = vunpack.c.l.b16 %v655
      %v763 = vunpack.c.h.b16 %v655
      %v764 = vpack.c.b16 %v750, %v748
      %v765 = vpack.c.b16 %v751, %v749
      %v766 = vpack.c.b16 %v754, %v752
      %v767 = vpack.c.b16 %v755, %v753
      %v768 = vpack.c.b16 %v758, %v756
      %v769 = vpack.c.b16 %v759, %v757
      %v770 = vpack.c.b16 %v762, %v760
      %v771 = vpack.c.b16 %v763, %v761
      %v812 = vunpack.c.l.b16 %v656
      %v813 = vunpack.c.h.b16 %v656
      %v814 = vunpack.c.l.b16 %v657
      %v815 = vunpack.c.l.b16 %v658
      %v816 = vunpack.c.h.b16 %v658
      %v817 = vunpack.c.l.b16 %v659
      %v818 = vunpack.c.l.b16 %v660
      %v819 = vunpack.c.h.b16 %v660
      %v820 = vunpack.c.l.b16 %v661
      %v821 = vunpack.c.l.b16 %v662
      %v822 = vunpack.c.h.b16 %v662
      %v823 = vunpack.c.l.b16 %v663
      %v824 = vunpack.c.l.b16 %v664
      %v825 = vunpack.c.h.b16 %v664
      %v826 = vunpack.c.l.b16 %v665
      %v827 = vunpack.c.l.b16 %v666
      %v828 = vunpack.c.h.b16 %v666
      %v829 = vunpack.c.l.b16 %v667
      %v830 = vunpack.c.l.b16 %v668
      %v831 = vunpack.c.h.b16 %v668
      %v832 = vunpack.c.l.b16 %v669
      %v833 = vunpack.c.l.b16 %v670
      %v834 = vunpack.c.h.b16 %v670
      %v835 = vunpack.c.l.b16 %v671
      %v836 = vunpack.c.l.b16 %v672
      %v837 = vunpack.c.h.b16 %v672
      %v838 = vunpack.c.l.b16 %v673
      %v839 = vunpack.c.l.b16 %v674
      %v840 = vunpack.c.h.b16 %v674
      %v841 = vunpack.c.l.b16 %v675
      %v842 = vunpack.c.l.b16 %v676
      %v843 = vunpack.c.h.b16 %v676
      %v844 = vunpack.c.l.b16 %v677
      %v845 = vunpack.c.l.b16 %v678
      %v846 = vunpack.c.h.b16 %v678
      %v847 = vunpack.c.l.b16 %v679
      %v848 = vunpack.c.l.b16 %v680
      %v849 = vunpack.c.h.b16 %v680
      %v850 = vunpack.c.l.b16 %v681
      %v851 = vunpack.c.l.b16 %v682
      %v852 = vunpack.c.h.b16 %v682
      %v853 = vunpack.c.l.b16 %v683
      %v854 = vunpack.c.l.b16 %v684
      %v855 = vunpack.c.h.b16 %v684
      %v856 = vunpack.c.l.b16 %v685
      %v857 = vunpack.c.l.b16 %v686
      %v858 = vunpack.c.h.b16 %v686
      %v859 = vunpack.c.l.b16 %v687
      %v860 = vunpack.c.l.b16 %v688
      %v861 = vunpack.c.h.b16 %v688
      %v862 = vunpack.c.l.b16 %v689
      %v863 = vunpack.c.l.b16 %v690
      %v864 = vunpack.c.h.b16 %v690
      %v865 = vunpack.c.l.b16 %v691
      %v866 = vpack.c.b16 %v815, %v812
      %v867 = vpack.c.b16 %v816, %v813
      %v868 = vpack.c.b16 %v817, %v814
      %v869 = vpack.c.b16 %v821, %v818
      %v870 = vpack.c.b16 %v822, %v819
      %v871 = vpack.c.b16 %v823, %v820
      %v872 = vpack.c.b16 %v827, %v824
      %v873 = vpack.c.b16 %v828, %v825
      %v874 = vpack.c.b16 %v829, %v826
      %v875 = vpack.c.b16 %v833, %v830
      %v876 = vpack.c.b16 %v834, %v831
      %v877 = vpack.c.b16 %v835, %v832
      %v878 = vpack.c.b16 %v839, %v836
      %v879 = vpack.c.b16 %v840, %v837
      %v880 = vpack.c.b16 %v841, %v838
      %v881 = vpack.c.b16 %v845, %v842
      %v882 = vpack.c.b16 %v846, %v843
      %v883 = vpack.c.b16 %v847, %v844
      %v884 = vpack.c.b16 %v851, %v848
      %v885 = vpack.c.b16 %v852, %v849
      %v886 = vpack.c.b16 %v853, %v850
      %v887 = vpack.c.b16 %v857, %v854
      %v888 = vpack.c.b16 %v858, %v855
      %v889 = vpack.c.b16 %v859, %v856
      %v890 = vpack.c.b16 %v863, %v860
      %v891 = vpack.c.b16 %v864, %v861
      %v892 = vpack.c.b16 %v865, %v862
      %893 = vrot.lane.b32.xlu0 %v866, 91
      %v894 = vpop.permute.xlu0 %893
      %895 = vrot.lane.b32.xlu0 %v867, 91
      %v896 = vpop.permute.xlu0 %895
      %897 = vrot.lane.b32.xlu0 %v868, 91
      %v898 = vpop.permute.xlu0 %897
      %899 = vrot.lane.b32.xlu0 %v869, 91
      %v900 = vpop.permute.xlu0 %899
      %901 = vrot.lane.b32.xlu0 %v870, 91
      %v902 = vpop.permute.xlu0 %901
      %903 = vrot.lane.b32.xlu0 %v871, 91
      %v904 = vpop.permute.xlu0 %903
      %905 = vrot.lane.b32.xlu0 %v872, 91
      %v906 = vpop.permute.xlu0 %905
      %907 = vrot.lane.b32.xlu0 %v873, 91
      %v908 = vpop.permute.xlu0 %907
      %909 = vrot.lane.b32.xlu0 %v874, 91
      %v910 = vpop.permute.xlu0 %909
      %911 = vrot.lane.b32.xlu0 %v875, 91
      %v912 = vpop.permute.xlu0 %911
      %913 = vrot.lane.b32.xlu0 %v876, 91
      %v914 = vpop.permute.xlu0 %913
      %915 = vrot.lane.b32.xlu0 %v877, 91
      %v916 = vpop.permute.xlu0 %915
      %917 = vrot.lane.b32.xlu0 %v878, 91
      %v918 = vpop.permute.xlu0 %917
      %919 = vrot.lane.b32.xlu0 %v879, 91
      %v920 = vpop.permute.xlu0 %919
      %921 = vrot.lane.b32.xlu0 %v880, 91
      %v922 = vpop.permute.xlu0 %921
      %923 = vrot.lane.b32.xlu0 %v881, 91
      %v924 = vpop.permute.xlu0 %923
      %925 = vrot.lane.b32.xlu0 %v882, 91
      %v926 = vpop.permute.xlu0 %925
      %927 = vrot.lane.b32.xlu0 %v883, 91
      %v928 = vpop.permute.xlu0 %927
      %929 = vrot.lane.b32.xlu0 %v884, 91
      %v930 = vpop.permute.xlu0 %929
      %931 = vrot.lane.b32.xlu0 %v885, 91
      %v932 = vpop.permute.xlu0 %931
      %933 = vrot.lane.b32.xlu0 %v886, 91
      %v934 = vpop.permute.xlu0 %933
      %935 = vrot.lane.b32.xlu0 %v887, 91
      %v936 = vpop.permute.xlu0 %935
      %937 = vrot.lane.b32.xlu0 %v888, 91
      %v938 = vpop.permute.xlu0 %937
      %939 = vrot.lane.b32.xlu0 %v889, 91
      %v940 = vpop.permute.xlu0 %939
      %941 = vrot.lane.b32.xlu0 %v890, 91
      %v942 = vpop.permute.xlu0 %941
      %943 = vrot.lane.b32.xlu0 %v891, 91
      %v944 = vpop.permute.xlu0 %943
      %945 = vrot.lane.b32.xlu0 %v892, 91
      %v946 = vpop.permute.xlu0 %945
      %vm947 = vcmask 744448
      %v948 = vsel %vm947, %v894, %v896
      %v949 = vsel %vm947, %v896, %v898
      %v950 = vsel %vm947, %v900, %v902
      %v951 = vsel %vm947, %v902, %v904
      %v952 = vsel %vm947, %v906, %v908
      %v953 = vsel %vm947, %v908, %v910
      %v954 = vsel %vm947, %v912, %v914
      %v955 = vsel %vm947, %v914, %v916
      %v956 = vsel %vm947, %v918, %v920
      %v957 = vsel %vm947, %v920, %v922
      %v958 = vsel %vm947, %v924, %v926
      %v959 = vsel %vm947, %v926, %v928
      %v960 = vsel %vm947, %v930, %v932
      %v961 = vsel %vm947, %v932, %v934
      %v962 = vsel %vm947, %v936, %v938
      %v963 = vsel %vm947, %v938, %v940
      %v964 = vsel %vm947, %v942, %v944
      %v965 = vsel %vm947, %v944, %v946
      %vm984 = vcmask 130048
      %v986 = vsel %vm984, %v765, 0
      %v989 = vsel %vm984, %v767, 0
      %v992 = vsel %vm984, %v769, 0
      %v995 = vsel %vm984, %v771, 0
      %997 = vmatprep.subr.bf16.mxu0 %v963
      %998 = vmatpush1.bf16.msra.mxu0 %v962
      %999 = vmatprep.subr.bf16.mxu0 %v961
      %1000 = vmatpush1.bf16.msra.mxu0 %v960
      %1001 = vmatprep.subr.bf16.mxu0 %v959
      %1002 = vmatpush1.bf16.msra.mxu0 %v958
      %1003 = vmatprep.subr.bf16.mxu0 %v957
      %1004 = vmatpush1.bf16.msra.mxu0 %v956
      %1005 = vmatprep.subr.bf16.mxu0 %v955
      %1006 = vmatpush1.bf16.msra.mxu0 %v954
      %1007 = vmatprep.subr.bf16.mxu0 %v953
      %1008 = vmatpush1.bf16.msra.mxu0 %v952
      %1009 = vmatprep.subr.bf16.mxu0 %v951
      %1010 = vmatpush1.bf16.msra.mxu0 %v950
      %1011 = vmatprep.subr.bf16.mxu0 %v949
      %1012 = vmatpush1.bf16.msra.mxu0 %v948
      %1013 = vmatprep.subr.bf16.mxu0 0
      %1014 = vmatpush2.bf16.msra.mxu0 0
      %1015 = vmatprep.subr.bf16.mxu0 0
      %1016 = vmatpush2.bf16.msra.mxu0 0
      %1017 = vmatprep.subr.bf16.mxu0 0
      %1018 = vmatpush2.bf16.msra.mxu0 0
      %1019 = vmatprep.subr.bf16.mxu0 0
      %1020 = vmatpush2.bf16.msra.mxu0 0
      %1021 = vmatprep.subr.bf16.mxu0 0
      %1022 = vmatpush2.bf16.msra.mxu0 0
      %1023 = vmatprep.subr.bf16.mxu0 0
      %1024 = vmatpush2.bf16.msra.mxu0 0
      %1025 = vmatprep.subr.bf16.mxu0 0
      %1026 = vmatpush2.bf16.msra.mxu0 0
      %1027 = vmatprep.subr.bf16.mxu0 %v965
      %1028 = vmatpush2.bf16.msra.mxu0 %v964
      %1029 = vmatprep.mubr.bf16.mxu0 %v986
      %1030 = vmatmul.mubr.bf16.gmra.mxu0 %v764
      %v1031 = vpop.f32.mrf.mxu0
      %v1032 = vadd.f32 %v703, %v1031
      %v1033 = vpop.f32.mrf.mxu0
      %v1034 = vadd.f32 %v703, %v1033
      %v1035 = vpop.f32.mrf.mxu0
      %v1036 = vadd.f32 %v708, %v1035
      %v1037 = vpop.f32.mrf.mxu0
      %v1038 = vadd.f32 %v708, %v1037
      %1039 = vmatprep.mubr.bf16.mxu0 %v989
      %1040 = vmatmul.mubr.bf16.gmra.mxu0 %v766
      %v1041 = vpop.f32.mrf.mxu0
      %v1042 = vadd.f32 %v713, %v1041
      %v1043 = vpop.f32.mrf.mxu0
      %v1044 = vadd.f32 %v713, %v1043
      %v1045 = vpop.f32.mrf.mxu0
      %v1046 = vadd.f32 %v718, %v1045
      %v1047 = vpop.f32.mrf.mxu0
      %v1048 = vadd.f32 %v718, %v1047
      %1049 = vmatprep.mubr.bf16.mxu0 %v992
      %1050 = vmatmul.mubr.bf16.gmra.mxu0 %v768
      %v1051 = vpop.f32.mrf.mxu0
      %v1052 = vadd.f32 %v723, %v1051
      %v1053 = vpop.f32.mrf.mxu0
      %v1054 = vadd.f32 %v723, %v1053
      %v1055 = vpop.f32.mrf.mxu0
      %v1056 = vadd.f32 %v728, %v1055
      %v1057 = vpop.f32.mrf.mxu0
      %v1058 = vadd.f32 %v728, %v1057
      %1059 = vmatprep.mubr.bf16.mxu0 %v995
      %1060 = vmatmul.mubr.bf16.gmra.mxu0 %v770
      %v1061 = vpop.f32.mrf.mxu0
      %v1062 = vadd.f32 %v733, %v1061
      %v1063 = vpop.f32.mrf.mxu0
      %v1064 = vadd.f32 %v733, %v1063
      %v1065 = vpop.f32.mrf.mxu0
      %v1066 = vadd.f32 %v738, %v1065
      %v1067 = vpop.f32.mrf.mxu0
      %v1068 = vadd.f32 %v738, %v1067
      %1069 = vdwg.mxu0
      %v1070 = vsel %vm425, 1, 0
      %v1071 = vlaneseq
      %v1072 = vshrl.u32 %v1071, 7
      %v1073 = vsub.s32 0, %v1072
      %v1074 = vrot.slane %v1070, %v1073
      %v1075 = vlaneseq
      %v1076 = vshrl.u32 %v1075, 7
      %v1077 = vsub.s32 1, %v1076
      %v1078 = vrot.slane %v1070, %v1077
      %vm1079 = vcmp.eq.s32.totalorder %v1074, 1
      %vm1080 = vcmp.eq.s32.totalorder %v1078, 1
      %v1081 = vsel %vm1079, %v1032, 0.0
      %v1082 = vsel %vm1080, %v1034, 0.0
      %v1083 = vsel %vm1079, %v1036, 0.0
      %v1084 = vsel %vm1080, %v1038, 0.0
      %v1085 = vsel %vm1079, %v1042, 0.0
      %v1086 = vsel %vm1080, %v1044, 0.0
      %v1087 = vsel %vm1079, %v1046, 0.0
      %v1088 = vsel %vm1080, %v1048, 0.0
      %v1089 = vsel %vm1079, %v1052, 0.0
      %v1090 = vsel %vm1080, %v1054, 0.0
      %v1091 = vsel %vm1079, %v1056, 0.0
      %v1092 = vsel %vm1080, %v1058, 0.0
      %v1093 = vsel %vm1079, %v1062, 0.0
      %v1094 = vsel %vm1080, %v1064, 0.0
      %v1095 = vsel %vm1079, %v1066, 0.0
      %v1096 = vsel %vm1080, %v1068, 0.0
      %v1097 = vpack.c.bf16 %v1083, %v1081
      %v1098 = vpack.c.bf16 %v1084, %v1082
      %v1099 = vpack.c.bf16 %v1087, %v1085
      %v1100 = vpack.c.bf16 %v1088, %v1086
      %v1101 = vpack.c.bf16 %v1091, %v1089
      %v1102 = vpack.c.bf16 %v1092, %v1090
      %v1103 = vpack.c.bf16 %v1095, %v1093
      %v1104 = vpack.c.bf16 %v1096, %v1094
      %v1113 = vunpack.c.l.b16 %v1097
      %v1114 = vunpack.c.l.b16 %v1098
      %v1115 = vunpack.c.h.b16 %v1097
      %v1116 = vunpack.c.h.b16 %v1098
      %v1117 = vunpack.c.l.b16 %v1099
      %v1118 = vunpack.c.l.b16 %v1100
      %v1119 = vunpack.c.h.b16 %v1099
      %v1120 = vunpack.c.h.b16 %v1100
      %v1121 = vunpack.c.l.b16 %v1101
      %v1122 = vunpack.c.l.b16 %v1102
      %v1123 = vunpack.c.h.b16 %v1101
      %v1124 = vunpack.c.h.b16 %v1102
      %v1125 = vunpack.c.l.b16 %v1103
      %v1126 = vunpack.c.l.b16 %v1104
      %v1127 = vunpack.c.h.b16 %v1103
      %v1128 = vunpack.c.h.b16 %v1104
      %v1129 = vpack.c.b16 %v1114, %v1113
      %v1130 = vpack.c.b16 %v1116, %v1115
      %v1131 = vpack.c.b16 %v1118, %v1117
      %v1132 = vpack.c.b16 %v1120, %v1119
      %v1133 = vpack.c.b16 %v1122, %v1121
      %v1134 = vpack.c.b16 %v1124, %v1123
      %v1135 = vpack.c.b16 %v1126, %v1125
      %v1136 = vpack.c.b16 %v1128, %v1127
      %1137 = vrot.lane.b32.xlu0 %v1129, 2
      %v1138 = vpop.permute.xlu0 %1137
      %1139 = vrot.lane.b32.xlu0 %v1130, 2
      %v1140 = vpop.permute.xlu0 %1139
      %1141 = vrot.lane.b32.xlu0 %v1131, 2
      %v1142 = vpop.permute.xlu0 %1141
      %1143 = vrot.lane.b32.xlu0 %v1132, 2
      %v1144 = vpop.permute.xlu0 %1143
      %1145 = vrot.lane.b32.xlu0 %v1133, 2
      %v1146 = vpop.permute.xlu0 %1145
      %1147 = vrot.lane.b32.xlu0 %v1134, 2
      %v1148 = vpop.permute.xlu0 %1147
      %1149 = vrot.lane.b32.xlu0 %v1135, 2
      %v1150 = vpop.permute.xlu0 %1149
      %1151 = vrot.lane.b32.xlu0 %v1136, 2
      %v1152 = vpop.permute.xlu0 %1151
      %v1153 = vrot.slane %v1138, 4
      %v1154 = vrot.slane %v1140, 4
      %v1155 = vrot.slane %v1142, 4
      %v1156 = vrot.slane %v1144, 4
      %v1157 = vrot.slane %v1146, 4
      %v1158 = vrot.slane %v1148, 4
      %v1159 = vrot.slane %v1150, 4
      %v1160 = vrot.slane %v1152, 4
      %v1161 = vsel %vm601, %v1153, %v1138
      %v1162 = vsel %vm601, %v1154, %v1140
      %v1163 = vsel %vm601, %v1155, %v1142
      %v1164 = vsel %vm601, %v1156, %v1144
      %v1165 = vsel %vm601, %v1157, %v1146
      %v1166 = vsel %vm601, %v1158, %v1148
      %v1167 = vsel %vm601, %v1159, %v1150
      %v1168 = vsel %vm601, %v1160, %v1152
      %vm1177 = vcmask 1031172
      %vm1178 = vmor %vm1177, %vm610
      %1179 = vst.msk [vmem:[#allocation2] sm:$0xff] %vm1178, %v1161
      %1180 = vst.msk [vmem:[#allocation2 + $0xc] sm:$0xff] %vm1178, %v1162
      %1181 = vst.msk [vmem:[#allocation2 + $0x18] sm:$0xff] %vm1178, %v1163
      %1182 = vst.msk [vmem:[#allocation2 + $0x24] sm:$0xff] %vm1178, %v1164
      %1183 = vst.msk [vmem:[#allocation2 + $0x30] sm:$0xff] %vm1178, %v1165
      %1184 = vst.msk [vmem:[#allocation2 + $0x3c] sm:$0xff] %vm1178, %v1166
      %1185 = vst.msk [vmem:[#allocation2 + $0x48] sm:$0xff] %vm1178, %v1167
      %1186 = vst.msk [vmem:[#allocation2 + $0x54] sm:$0xff] %vm1178, %v1168
      %1187 = vrot.lane.b32.xlu0 %v1129, 1
      %v1188 = vpop.permute.xlu0 %1187
      %1189 = vrot.lane.b32.xlu0 %v1130, 1
      %v1190 = vpop.permute.xlu0 %1189
      %1191 = vrot.lane.b32.xlu0 %v1131, 1
      %v1192 = vpop.permute.xlu0 %1191
      %1193 = vrot.lane.b32.xlu0 %v1132, 1
      %v1194 = vpop.permute.xlu0 %1193
      %1195 = vrot.lane.b32.xlu0 %v1133, 1
      %v1196 = vpop.permute.xlu0 %1195
      %1197 = vrot.lane.b32.xlu0 %v1134, 1
      %v1198 = vpop.permute.xlu0 %1197
      %1199 = vrot.lane.b32.xlu0 %v1135, 1
      %v1200 = vpop.permute.xlu0 %1199
      %1201 = vrot.lane.b32.xlu0 %v1136, 1
      %v1202 = vpop.permute.xlu0 %1201
      %v1203 = vrot.slane %v1188, 4
      %v1204 = vrot.slane %v1190, 4
      %v1205 = vrot.slane %v1192, 4
      %v1206 = vrot.slane %v1194, 4
      %v1207 = vrot.slane %v1196, 4
      %v1208 = vrot.slane %v1198, 4
      %v1209 = vrot.slane %v1200, 4
      %v1210 = vrot.slane %v1202, 4
      %v1211 = vsel %vm627, %v1203, %v1188
      %v1212 = vsel %vm627, %v1204, %v1190
      %v1213 = vsel %vm627, %v1205, %v1192
      %v1214 = vsel %vm627, %v1206, %v1194
      %v1215 = vsel %vm627, %v1207, %v1196
      %v1216 = vsel %vm627, %v1208, %v1198
      %v1217 = vsel %vm627, %v1209, %v1200
      %v1218 = vsel %vm627, %v1210, %v1202
      %vm1227 = vcmask 1022980
      %vm1228 = vmor %vm1227, %vm636
      %1229 = vst.msk [vmem:[#allocation2 + $0x60] sm:$0xff] %vm1228, %v1211
      %1230 = vst.msk [vmem:[#allocation2 + $0x6c] sm:$0xff] %vm1228, %v1212
      %1231 = vst.msk [vmem:[#allocation2 + $0x78] sm:$0xff] %vm1228, %v1213
      %1232 = vst.msk [vmem:[#allocation2 + $0x84] sm:$0xff] %vm1228, %v1214
      %1233 = vst.msk [vmem:[#allocation2 + $0x90] sm:$0xff] %vm1228, %v1215
      %1234 = vst.msk [vmem:[#allocation2 + $0x9c] sm:$0xff] %vm1228, %v1216
      %1235 = vst.msk [vmem:[#allocation2 + $0xa8] sm:$0xff] %vm1228, %v1217
      %1236 = vst.msk [vmem:[#allocation2 + $0xb4] sm:$0xff] %vm1228, %v1218
      %vm1245 = vcmask 1043456
      %vm1246 = vcmask 1014788
      %vm1247 = vmor %vm1246, %vm1245
      %1248 = vst.msk [vmem:[#allocation2 + $0xc0] sm:$0xff] %vm1247, %v1129
      %1249 = vst.msk [vmem:[#allocation2 + $0xcc] sm:$0xff] %vm1247, %v1130
      %1250 = vst.msk [vmem:[#allocation2 + $0xd8] sm:$0xff] %vm1247, %v1131
      %1251 = vst.msk [vmem:[#allocation2 + $0xe4] sm:$0xff] %vm1247, %v1132
      %1252 = vst.msk [vmem:[#allocation2 + $0xf0] sm:$0xff] %vm1247, %v1133
      %1253 = vst.msk [vmem:[#allocation2 + $0xfc] sm:$0xff] %vm1247, %v1134
      %1254 = vst.msk [vmem:[#allocation2 + $0x108] sm:$0xff] %vm1247, %v1135
      %1255 = vst.msk [vmem:[#allocation2 + $0x114] sm:$0xff] %vm1247, %v1136
      %p1256 = scmp.eq.s32.totalorder %s27, 0
      // Predicated region
      $region65: #{effvsr_forward.1} parent=63 // pred_check
        %p1257 = pneg %p1256
      $region66: #{effvsr_forward.1} parent=63 // pred_check_branch
        %1259 = sbr.rel (%p1257) target = $region68
      $region67: #{effvsr_forward.1} parent=63 // pred_region
        %vm1260 = vcmask 453648
        %1261 = vst.msk [vmem:[#allocation2] sm:$0xf] %vm1260, 0
        %1262 = vst.msk [vmem:[#allocation2 + $0xc] sm:$0xf] %vm1260, 0
        %1263 = vst.msk [vmem:[#allocation2 + $0x18] sm:$0xf] %vm1260, 0
        %1264 = vst.msk [vmem:[#allocation2 + $0x24] sm:$0xf] %vm1260, 0
        %1265 = vst.msk [vmem:[#allocation2 + $0x30] sm:$0xf] %vm1260, 0
        %1266 = vst.msk [vmem:[#allocation2 + $0x3c] sm:$0xf] %vm1260, 0
        %1267 = vst.msk [vmem:[#allocation2 + $0x48] sm:$0xf] %vm1260, 0
        %1268 = vst.msk [vmem:[#allocation2 + $0x54] sm:$0xf] %vm1260, 0
        %vm1269 = vcmask 445448
        %1270 = vst.msk [vmem:[#allocation2 + $0x60] sm:$0xf] %vm1269, 0
        %1271 = vst.msk [vmem:[#allocation2 + $0x6c] sm:$0xf] %vm1269, 0
        %1272 = vst.msk [vmem:[#allocation2 + $0x78] sm:$0xf] %vm1269, 0
        %1273 = vst.msk [vmem:[#allocation2 + $0x84] sm:$0xf] %vm1269, 0
        %1274 = vst.msk [vmem:[#allocation2 + $0x90] sm:$0xf] %vm1269, 0
        %1275 = vst.msk [vmem:[#allocation2 + $0x9c] sm:$0xf] %vm1269, 0
        %1276 = vst.msk [vmem:[#allocation2 + $0xa8] sm:$0xf] %vm1269, 0
        %1277 = vst.msk [vmem:[#allocation2 + $0xb4] sm:$0xf] %vm1269, 0
        %vm1278 = vcmask 437248
        %1279 = vst.msk [vmem:[#allocation2 + $0xc0] sm:$0xf] %vm1278, 0
        %1280 = vst.msk [vmem:[#allocation2 + $0xcc] sm:$0xf] %vm1278, 0
        %1281 = vst.msk [vmem:[#allocation2 + $0xd8] sm:$0xf] %vm1278, 0
        %1282 = vst.msk [vmem:[#allocation2 + $0xe4] sm:$0xf] %vm1278, 0
        %1283 = vst.msk [vmem:[#allocation2 + $0xf0] sm:$0xf] %vm1278, 0
        %1284 = vst.msk [vmem:[#allocation2 + $0xfc] sm:$0xf] %vm1278, 0
        %1285 = vst.msk [vmem:[#allocation2 + $0x108] sm:$0xf] %vm1278, 0
        %1286 = vst.msk [vmem:[#allocation2 + $0x114] sm:$0xf] %vm1278, 0
      $region68: #{effvsr_forward.1} parent=63 // pred_fallthru
        _
      %p1287 = scmp.eq.s32.totalorder %s27, 1
      // Predicated region
      $region69: #{effvsr_forward.1} parent=63 // pred_check
        %p1288 = pneg %p1287
      $region70: #{effvsr_forward.1} parent=63 // pred_check_branch
        %1290 = sbr.rel (%p1288) target = $region72
      $region71: #{effvsr_forward.1} parent=63 // pred_region
        %vm1291 = vcmask 1027648
        %1292 = vst.msk [vmem:[#allocation2 + $0x4] sm:$0xf] %vm1291, 0
        %1293 = vst.msk [vmem:[#allocation2 + $0x10] sm:$0xf] %vm1291, 0
        %1294 = vst.msk [vmem:[#allocation2 + $0x1c] sm:$0xf] %vm1291, 0
        %1295 = vst.msk [vmem:[#allocation2 + $0x28] sm:$0xf] %vm1291, 0
        %1296 = vst.msk [vmem:[#allocation2 + $0x34] sm:$0xf] %vm1291, 0
        %1297 = vst.msk [vmem:[#allocation2 + $0x40] sm:$0xf] %vm1291, 0
        %1298 = vst.msk [vmem:[#allocation2 + $0x4c] sm:$0xf] %vm1291, 0
        %1299 = vst.msk [vmem:[#allocation2 + $0x58] sm:$0xf] %vm1291, 0
        %vm1300 = vcmask 1019448
        %1301 = vst.msk [vmem:[#allocation2 + $0x64] sm:$0xf] %vm1300, 0
        %1302 = vst.msk [vmem:[#allocation2 + $0x70] sm:$0xf] %vm1300, 0
        %1303 = vst.msk [vmem:[#allocation2 + $0x7c] sm:$0xf] %vm1300, 0
        %1304 = vst.msk [vmem:[#allocation2 + $0x88] sm:$0xf] %vm1300, 0
        %1305 = vst.msk [vmem:[#allocation2 + $0x94] sm:$0xf] %vm1300, 0
        %1306 = vst.msk [vmem:[#allocation2 + $0xa0] sm:$0xf] %vm1300, 0
        %1307 = vst.msk [vmem:[#allocation2 + $0xac] sm:$0xf] %vm1300, 0
        %1308 = vst.msk [vmem:[#allocation2 + $0xb8] sm:$0xf] %vm1300, 0
        %vm1309 = vcmask 1011248
        %1310 = vst.msk [vmem:[#allocation2 + $0xc4] sm:$0xf] %vm1309, 0
        %1311 = vst.msk [vmem:[#allocation2 + $0xd0] sm:$0xf] %vm1309, 0
        %1312 = vst.msk [vmem:[#allocation2 + $0xdc] sm:$0xf] %vm1309, 0
        %1313 = vst.msk [vmem:[#allocation2 + $0xe8] sm:$0xf] %vm1309, 0
        %1314 = vst.msk [vmem:[#allocation2 + $0xf4] sm:$0xf] %vm1309, 0
        %1315 = vst.msk [vmem:[#allocation2 + $0x100] sm:$0xf] %vm1309, 0
        %1316 = vst.msk [vmem:[#allocation2 + $0x10c] sm:$0xf] %vm1309, 0
        %1317 = vst.msk [vmem:[#allocation2 + $0x118] sm:$0xf] %vm1309, 0
      $region72: #{effvsr_forward.1} parent=63 // pred_fallthru
        _
      %v1318 = vld [vmem:[%s4] sm:$0xff]
      %v1319 = vld [vmem:[%s4 + $0x14] sm:$0xff]
      %v1320 = vld [vmem:[%s4 + $0x28] sm:$0xff]
      %v1321 = vld [vmem:[%s4 + $0x3c] sm:$0xff]
      %v1322 = vld [vmem:[%s4 + $0x50] sm:$0xff]
      %v1323 = vld [vmem:[%s4 + $0x64] sm:$0xff]
      %v1324 = vld [vmem:[%s4 + $0x78] sm:$0xff]
      %v1325 = vld [vmem:[%s4 + $0x8c] sm:$0xff]
      %v1326 = vld [vmem:[#allocation2] sm:$0xff]
      %v1327 = vld [vmem:[#allocation2 + $0xc] sm:$0xff]
      %v1328 = vld [vmem:[#allocation2 + $0x18] sm:$0xff]
      %v1329 = vld [vmem:[#allocation2 + $0x24] sm:$0xff]
      %v1330 = vld [vmem:[#allocation2 + $0x30] sm:$0xff]
      %v1331 = vld [vmem:[#allocation2 + $0x3c] sm:$0xff]
      %v1332 = vld [vmem:[#allocation2 + $0x48] sm:$0xff]
      %v1333 = vld [vmem:[#allocation2 + $0x54] sm:$0xff]
      %v1334 = vld [vmem:[#allocation2 + $0x60] sm:$0xff]
      %v1335 = vld [vmem:[#allocation2 + $0x6c] sm:$0xff]
      %v1336 = vld [vmem:[#allocation2 + $0x78] sm:$0xff]
      %v1337 = vld [vmem:[#allocation2 + $0x84] sm:$0xff]
      %v1338 = vld [vmem:[#allocation2 + $0x90] sm:$0xff]
      %v1339 = vld [vmem:[#allocation2 + $0x9c] sm:$0xff]
      %v1340 = vld [vmem:[#allocation2 + $0xa8] sm:$0xff]
      %v1341 = vld [vmem:[#allocation2 + $0xb4] sm:$0xff]
      %v1342 = vld [vmem:[#allocation2 + $0xc0] sm:$0xff]
      %v1343 = vld [vmem:[#allocation2 + $0xcc] sm:$0xff]
      %v1344 = vld [vmem:[#allocation2 + $0xd8] sm:$0xff]
      %v1345 = vld [vmem:[#allocation2 + $0xe4] sm:$0xff]
      %v1346 = vld [vmem:[#allocation2 + $0xf0] sm:$0xff]
      %v1347 = vld [vmem:[#allocation2 + $0xfc] sm:$0xff]
      %v1348 = vld [vmem:[#allocation2 + $0x108] sm:$0xff]
      %v1349 = vld [vmem:[#allocation2 + $0x114] sm:$0xff]
      %v1350 = vld [vmem:[%s4 + $0x4] sm:$0xff]
      %v1351 = vld [vmem:[%s4 + $0x18] sm:$0xff]
      %v1352 = vld [vmem:[%s4 + $0x2c] sm:$0xff]
      %v1353 = vld [vmem:[%s4 + $0x40] sm:$0xff]
      %v1354 = vld [vmem:[%s4 + $0x54] sm:$0xff]
      %v1355 = vld [vmem:[%s4 + $0x68] sm:$0xff]
      %v1356 = vld [vmem:[%s4 + $0x7c] sm:$0xff]
      %v1357 = vld [vmem:[%s4 + $0x90] sm:$0xff]
      %v1366 = vunpack.c.l.b16 %v1350
      %v1367 = vunpack.c.h.b16 %v1350
      %v1368 = vunpack.c.l.b16 %v1351
      %v1369 = vunpack.c.h.b16 %v1351
      %v1370 = vunpack.c.l.b16 %v1352
      %v1371 = vunpack.c.h.b16 %v1352
      %v1372 = vunpack.c.l.b16 %v1353
      %v1373 = vunpack.c.h.b16 %v1353
      %v1374 = vunpack.c.l.b16 %v1354
      %v1375 = vunpack.c.h.b16 %v1354
      %v1376 = vunpack.c.l.b16 %v1355
      %v1377 = vunpack.c.h.b16 %v1355
      %v1378 = vunpack.c.l.b16 %v1356
      %v1379 = vunpack.c.h.b16 %v1356
      %v1380 = vunpack.c.l.b16 %v1357
      %v1381 = vunpack.c.h.b16 %v1357
      %v1382 = vpack.c.b16 %v1368, %v1366
      %v1383 = vpack.c.b16 %v1369, %v1367
      %v1384 = vpack.c.b16 %v1372, %v1370
      %v1385 = vpack.c.b16 %v1373, %v1371
      %v1386 = vpack.c.b16 %v1376, %v1374
      %v1387 = vpack.c.b16 %v1377, %v1375
      %v1388 = vpack.c.b16 %v1380, %v1378
      %v1389 = vpack.c.b16 %v1381, %v1379
      %1390 = vrot.lane.b32.xlu0 %v1382, 64
      %v1391 = vpop.permute.xlu0 %1390
      %1392 = vrot.lane.b32.xlu0 %v1383, 64
      %v1393 = vpop.permute.xlu0 %1392
      %1394 = vrot.lane.b32.xlu0 %v1384, 64
      %v1395 = vpop.permute.xlu0 %1394
      %1396 = vrot.lane.b32.xlu0 %v1385, 64
      %v1397 = vpop.permute.xlu0 %1396
      %1398 = vrot.lane.b32.xlu0 %v1386, 64
      %v1399 = vpop.permute.xlu0 %1398
      %1400 = vrot.lane.b32.xlu0 %v1387, 64
      %v1401 = vpop.permute.xlu0 %1400
      %1402 = vrot.lane.b32.xlu0 %v1388, 64
      %v1403 = vpop.permute.xlu0 %1402
      %1404 = vrot.lane.b32.xlu0 %v1389, 64
      %v1405 = vpop.permute.xlu0 %1404
      %vm1406 = vcmask 523264
      %v1407 = vsel %vm1406, %v1391, %v1393
      %v1408 = vsel %vm1406, %v1395, %v1397
      %v1409 = vsel %vm1406, %v1399, %v1401
      %v1410 = vsel %vm1406, %v1403, %v1405
      %v1439 = vunpack.c.l.b16 %v1326
      %v1440 = vunpack.c.h.b16 %v1326
      %v1441 = vunpack.c.l.b16 %v1327
      %v1442 = vunpack.c.h.b16 %v1327
      %v1443 = vunpack.c.l.b16 %v1328
      %v1444 = vunpack.c.h.b16 %v1328
      %v1445 = vunpack.c.l.b16 %v1329
      %v1446 = vunpack.c.h.b16 %v1329
      %v1447 = vunpack.c.l.b16 %v1330
      %v1448 = vunpack.c.h.b16 %v1330
      %v1449 = vunpack.c.l.b16 %v1331
      %v1450 = vunpack.c.h.b16 %v1331
      %v1451 = vunpack.c.l.b16 %v1332
      %v1452 = vunpack.c.h.b16 %v1332
      %v1453 = vunpack.c.l.b16 %v1333
      %v1454 = vunpack.c.h.b16 %v1333
      %v1455 = vunpack.c.l.b16 %v1334
      %v1456 = vunpack.c.h.b16 %v1334
      %v1457 = vunpack.c.l.b16 %v1335
      %v1458 = vunpack.c.h.b16 %v1335
      %v1459 = vunpack.c.l.b16 %v1336
      %v1460 = vunpack.c.h.b16 %v1336
      %v1461 = vunpack.c.l.b16 %v1337
      %v1462 = vunpack.c.h.b16 %v1337
      %v1463 = vunpack.c.l.b16 %v1338
      %v1464 = vunpack.c.h.b16 %v1338
      %v1465 = vunpack.c.l.b16 %v1339
      %v1466 = vunpack.c.h.b16 %v1339
      %v1467 = vunpack.c.l.b16 %v1340
      %v1468 = vunpack.c.h.b16 %v1340
      %v1469 = vunpack.c.l.b16 %v1341
      %v1470 = vunpack.c.h.b16 %v1341
      %v1471 = vunpack.c.l.b16 %v1342
      %v1472 = vunpack.c.h.b16 %v1342
      %v1473 = vunpack.c.l.b16 %v1343
      %v1474 = vunpack.c.h.b16 %v1343
      %v1475 = vunpack.c.l.b16 %v1344
      %v1476 = vunpack.c.h.b16 %v1344
      %v1477 = vunpack.c.l.b16 %v1345
      %v1478 = vunpack.c.h.b16 %v1345
      %v1479 = vunpack.c.l.b16 %v1346
      %v1480 = vunpack.c.h.b16 %v1346
      %v1481 = vunpack.c.l.b16 %v1347
      %v1482 = vunpack.c.h.b16 %v1347
      %v1483 = vunpack.c.l.b16 %v1348
      %v1484 = vunpack.c.h.b16 %v1348
      %v1485 = vunpack.c.l.b16 %v1349
      %v1486 = vunpack.c.h.b16 %v1349
      %v1487 = vpack.c.b16 %v1441, %v1439
      %v1488 = vpack.c.b16 %v1442, %v1440
      %v1489 = vpack.c.b16 %v1445, %v1443
      %v1490 = vpack.c.b16 %v1446, %v1444
      %v1491 = vpack.c.b16 %v1449, %v1447
      %v1492 = vpack.c.b16 %v1450, %v1448
      %v1493 = vpack.c.b16 %v1453, %v1451
      %v1494 = vpack.c.b16 %v1454, %v1452
      %v1495 = vpack.c.b16 %v1457, %v1455
      %v1496 = vpack.c.b16 %v1458, %v1456
      %v1497 = vpack.c.b16 %v1461, %v1459
      %v1498 = vpack.c.b16 %v1462, %v1460
      %v1499 = vpack.c.b16 %v1465, %v1463
      %v1500 = vpack.c.b16 %v1466, %v1464
      %v1501 = vpack.c.b16 %v1469, %v1467
      %v1502 = vpack.c.b16 %v1470, %v1468
      %v1503 = vpack.c.b16 %v1473, %v1471
      %v1504 = vpack.c.b16 %v1474, %v1472
      %v1505 = vpack.c.b16 %v1477, %v1475
      %v1506 = vpack.c.b16 %v1478, %v1476
      %v1507 = vpack.c.b16 %v1481, %v1479
      %v1508 = vpack.c.b16 %v1482, %v1480
      %v1509 = vpack.c.b16 %v1485, %v1483
      %v1510 = vpack.c.b16 %v1486, %v1484
      %1511 = vrot.lane.b32.xlu0 %v1487, 109
      %v1512 = vpop.permute.xlu0 %1511
      %1513 = vrot.lane.b32.xlu0 %v1488, 109
      %v1514 = vpop.permute.xlu0 %1513
      %1515 = vrot.lane.b32.xlu0 %v1489, 109
      %v1516 = vpop.permute.xlu0 %1515
      %1517 = vrot.lane.b32.xlu0 %v1490, 109
      %v1518 = vpop.permute.xlu0 %1517
      %1519 = vrot.lane.b32.xlu0 %v1491, 109
      %v1520 = vpop.permute.xlu0 %1519
      %1521 = vrot.lane.b32.xlu0 %v1492, 109
      %v1522 = vpop.permute.xlu0 %1521
      %1523 = vrot.lane.b32.xlu0 %v1493, 109
      %v1524 = vpop.permute.xlu0 %1523
      %1525 = vrot.lane.b32.xlu0 %v1494, 109
      %v1526 = vpop.permute.xlu0 %1525
      %1527 = vrot.lane.b32.xlu0 %v1495, 109
      %v1528 = vpop.permute.xlu0 %1527
      %1529 = vrot.lane.b32.xlu0 %v1496, 109
      %v1530 = vpop.permute.xlu0 %1529
      %1531 = vrot.lane.b32.xlu0 %v1497, 109
      %v1532 = vpop.permute.xlu0 %1531
      %1533 = vrot.lane.b32.xlu0 %v1498, 109
      %v1534 = vpop.permute.xlu0 %1533
      %1535 = vrot.lane.b32.xlu0 %v1499, 109
      %v1536 = vpop.permute.xlu0 %1535
      %1537 = vrot.lane.b32.xlu0 %v1500, 109
      %v1538 = vpop.permute.xlu0 %1537
      %1539 = vrot.lane.b32.xlu0 %v1501, 109
      %v1540 = vpop.permute.xlu0 %1539
      %1541 = vrot.lane.b32.xlu0 %v1502, 109
      %v1542 = vpop.permute.xlu0 %1541
      %1543 = vrot.lane.b32.xlu0 %v1503, 109
      %v1544 = vpop.permute.xlu0 %1543
      %1545 = vrot.lane.b32.xlu0 %v1504, 109
      %v1546 = vpop.permute.xlu0 %1545
      %1547 = vrot.lane.b32.xlu0 %v1505, 109
      %v1548 = vpop.permute.xlu0 %1547
      %1549 = vrot.lane.b32.xlu0 %v1506, 109
      %v1550 = vpop.permute.xlu0 %1549
      %1551 = vrot.lane.b32.xlu0 %v1507, 109
      %v1552 = vpop.permute.xlu0 %1551
      %1553 = vrot.lane.b32.xlu0 %v1508, 109
      %v1554 = vpop.permute.xlu0 %1553
      %1555 = vrot.lane.b32.xlu0 %v1509, 109
      %v1556 = vpop.permute.xlu0 %1555
      %1557 = vrot.lane.b32.xlu0 %v1510, 109
      %v1558 = vpop.permute.xlu0 %1557
      %vm1559 = vcmask 891904
      %v1560 = vsel %vm1559, %v1512, %v1514
      %v1561 = vsel %vm1559, %v1516, %v1518
      %v1562 = vsel %vm1559, %v1520, %v1522
      %v1563 = vsel %vm1559, %v1524, %v1526
      %v1564 = vsel %vm1559, %v1528, %v1530
      %v1565 = vsel %vm1559, %v1532, %v1534
      %v1566 = vsel %vm1559, %v1536, %v1538
      %v1567 = vsel %vm1559, %v1540, %v1542
      %v1568 = vsel %vm1559, %v1544, %v1546
      %v1569 = vsel %vm1559, %v1548, %v1550
      %v1570 = vsel %vm1559, %v1552, %v1554
      %v1571 = vsel %vm1559, %v1556, %v1558
      %vm1596 = vcmask 523264
      %v1598 = vsel %vm1596, %v1393, 0
      %v1601 = vsel %vm1596, %v1397, 0
      %v1604 = vsel %vm1596, %v1401, 0
      %v1607 = vsel %vm1596, %v1405, 0
      %1609 = vmatprep.subr.bf16.mxu0 %v1542
      %1610 = vmatpush1.bf16.msra.mxu0 %v1567
      %1611 = vmatprep.subr.bf16.mxu0 %v1538
      %1612 = vmatpush1.bf16.msra.mxu0 %v1566
      %1613 = vmatprep.subr.bf16.mxu0 %v1534
      %1614 = vmatpush1.bf16.msra.mxu0 %v1565
      %1615 = vmatprep.subr.bf16.mxu0 %v1530
      %1616 = vmatpush1.bf16.msra.mxu0 %v1564
      %1617 = vmatprep.subr.bf16.mxu0 %v1526
      %1618 = vmatpush1.bf16.msra.mxu0 %v1563
      %1619 = vmatprep.subr.bf16.mxu0 %v1522
      %1620 = vmatpush1.bf16.msra.mxu0 %v1562
      %1621 = vmatprep.subr.bf16.mxu0 %v1518
      %1622 = vmatpush1.bf16.msra.mxu0 %v1561
      %1623 = vmatprep.subr.bf16.mxu0 %v1514
      %1624 = vmatpush1.bf16.msra.mxu0 %v1560
      %1625 = vmatprep.subr.bf16.mxu0 0
      %1626 = vmatpush2.bf16.msra.mxu0 0
      %1627 = vmatprep.subr.bf16.mxu0 0
      %1628 = vmatpush2.bf16.msra.mxu0 0
      %1629 = vmatprep.subr.bf16.mxu0 0
      %1630 = vmatpush2.bf16.msra.mxu0 0
      %1631 = vmatprep.subr.bf16.mxu0 0
      %1632 = vmatpush2.bf16.msra.mxu0 0
      %1633 = vmatprep.subr.bf16.mxu0 %v1558
      %1634 = vmatpush2.bf16.msra.mxu0 %v1571
      %1635 = vmatprep.subr.bf16.mxu0 %v1554
      %1636 = vmatpush2.bf16.msra.mxu0 %v1570
      %1637 = vmatprep.subr.bf16.mxu0 %v1550
      %1638 = vmatpush2.bf16.msra.mxu0 %v1569
      %1639 = vmatprep.subr.bf16.mxu0 %v1546
      %1640 = vmatpush2.bf16.msra.mxu0 %v1568
      %1641 = vmatprep.mubr.bf16.mxu0 %v1598
      %1642 = vmatmul.mubr.bf16.gmra.mxu0 %v1407
      %v1643 = vpop.f32.mrf.mxu0
      %v1644 = vadd.f32 0.0, %v1643
      %v1645 = vpop.f32.mrf.mxu0
      %v1646 = vadd.f32 0.0, %v1645
      %v1647 = vpop.f32.mrf.mxu0
      %v1648 = vadd.f32 0.0, %v1647
      %v1649 = vpop.f32.mrf.mxu0
      %v1650 = vadd.f32 0.0, %v1649
      %1651 = vmatprep.mubr.bf16.mxu0 %v1601
      %1652 = vmatmul.mubr.bf16.gmra.mxu0 %v1408
      %v1653 = vpop.f32.mrf.mxu0
      %v1654 = vadd.f32 0.0, %v1653
      %v1655 = vpop.f32.mrf.mxu0
      %v1656 = vadd.f32 0.0, %v1655
      %v1657 = vpop.f32.mrf.mxu0
      %v1658 = vadd.f32 0.0, %v1657
      %v1659 = vpop.f32.mrf.mxu0
      %v1660 = vadd.f32 0.0, %v1659
      %1661 = vmatprep.mubr.bf16.mxu0 %v1604
      %1662 = vmatmul.mubr.bf16.gmra.mxu0 %v1409
      %v1663 = vpop.f32.mrf.mxu0
      %v1664 = vadd.f32 0.0, %v1663
      %v1665 = vpop.f32.mrf.mxu0
      %v1666 = vadd.f32 0.0, %v1665
      %v1667 = vpop.f32.mrf.mxu0
      %v1668 = vadd.f32 0.0, %v1667
      %v1669 = vpop.f32.mrf.mxu0
      %v1670 = vadd.f32 0.0, %v1669
      %1671 = vmatprep.mubr.bf16.mxu0 %v1607
      %1672 = vmatmul.mubr.bf16.gmra.mxu0 %v1410
      %v1673 = vpop.f32.mrf.mxu0
      %v1674 = vadd.f32 0.0, %v1673
      %v1675 = vpop.f32.mrf.mxu0
      %v1676 = vadd.f32 0.0, %v1675
      %v1677 = vpop.f32.mrf.mxu0
      %v1678 = vadd.f32 0.0, %v1677
      %v1679 = vpop.f32.mrf.mxu0
      %v1680 = vadd.f32 0.0, %v1679
      %1681 = vdwg.mxu0
      %v1690 = vunpack.c.l.b16 %v1318
      %v1691 = vunpack.c.h.b16 %v1318
      %v1692 = vunpack.c.l.b16 %v1319
      %v1693 = vunpack.c.h.b16 %v1319
      %v1694 = vunpack.c.l.b16 %v1320
      %v1695 = vunpack.c.h.b16 %v1320
      %v1696 = vunpack.c.l.b16 %v1321
      %v1697 = vunpack.c.h.b16 %v1321
      %v1698 = vunpack.c.l.b16 %v1322
      %v1699 = vunpack.c.h.b16 %v1322
      %v1700 = vunpack.c.l.b16 %v1323
      %v1701 = vunpack.c.h.b16 %v1323
      %v1702 = vunpack.c.l.b16 %v1324
      %v1703 = vunpack.c.h.b16 %v1324
      %v1704 = vunpack.c.l.b16 %v1325
      %v1705 = vunpack.c.h.b16 %v1325
      %v1706 = vpack.c.b16 %v1692, %v1690
      %v1707 = vpack.c.b16 %v1693, %v1691
      %v1708 = vpack.c.b16 %v1696, %v1694
      %v1709 = vpack.c.b16 %v1697, %v1695
      %v1710 = vpack.c.b16 %v1700, %v1698
      %v1711 = vpack.c.b16 %v1701, %v1699
      %v1712 = vpack.c.b16 %v1704, %v1702
      %v1713 = vpack.c.b16 %v1705, %v1703
      %1718 = vrot.lane.b32.xlu0 %v1487, 127
      %v1719 = vpop.permute.xlu0 %1718
      %1720 = vrot.lane.b32.xlu0 %v1488, 127
      %v1721 = vpop.permute.xlu0 %1720
      %1722 = vrot.lane.b32.xlu0 %v1489, 127
      %v1723 = vpop.permute.xlu0 %1722
      %1724 = vrot.lane.b32.xlu0 %v1490, 127
      %v1725 = vpop.permute.xlu0 %1724
      %1726 = vrot.lane.b32.xlu0 %v1491, 127
      %v1727 = vpop.permute.xlu0 %1726
      %1728 = vrot.lane.b32.xlu0 %v1492, 127
      %v1729 = vpop.permute.xlu0 %1728
      %1730 = vrot.lane.b32.xlu0 %v1493, 127
      %v1731 = vpop.permute.xlu0 %1730
      %1732 = vrot.lane.b32.xlu0 %v1494, 127
      %v1733 = vpop.permute.xlu0 %1732
      %1734 = vrot.lane.b32.xlu0 %v1495, 127
      %v1735 = vpop.permute.xlu0 %1734
      %1736 = vrot.lane.b32.xlu0 %v1496, 127
      %v1737 = vpop.permute.xlu0 %1736
      %1738 = vrot.lane.b32.xlu0 %v1497, 127
      %v1739 = vpop.permute.xlu0 %1738
      %1740 = vrot.lane.b32.xlu0 %v1498, 127
      %v1741 = vpop.permute.xlu0 %1740
      %1742 = vrot.lane.b32.xlu0 %v1499, 127
      %v1743 = vpop.permute.xlu0 %1742
      %1744 = vrot.lane.b32.xlu0 %v1500, 127
      %v1745 = vpop.permute.xlu0 %1744
      %1746 = vrot.lane.b32.xlu0 %v1501, 127
      %v1747 = vpop.permute.xlu0 %1746
      %1748 = vrot.lane.b32.xlu0 %v1502, 127
      %v1749 = vpop.permute.xlu0 %1748
      %1750 = vrot.lane.b32.xlu0 %v1503, 127
      %v1751 = vpop.permute.xlu0 %1750
      %1752 = vrot.lane.b32.xlu0 %v1504, 127
      %v1753 = vpop.permute.xlu0 %1752
      %1754 = vrot.lane.b32.xlu0 %v1505, 127
      %v1755 = vpop.permute.xlu0 %1754
      %1756 = vrot.lane.b32.xlu0 %v1506, 127
      %v1757 = vpop.permute.xlu0 %1756
      %1758 = vrot.lane.b32.xlu0 %v1507, 127
      %v1759 = vpop.permute.xlu0 %1758
      %1760 = vrot.lane.b32.xlu0 %v1508, 127
      %v1761 = vpop.permute.xlu0 %1760
      %1762 = vrot.lane.b32.xlu0 %v1509, 127
      %v1763 = vpop.permute.xlu0 %1762
      %1764 = vrot.lane.b32.xlu0 %v1510, 127
      %v1765 = vpop.permute.xlu0 %1764
      %vm1766 = vcmask 1039360
      %v1767 = vsel %vm1766, %v1719, %v1721
      %v1768 = vsel %vm1766, %v1723, %v1725
      %v1769 = vsel %vm1766, %v1727, %v1729
      %v1770 = vsel %vm1766, %v1731, %v1733
      %v1771 = vsel %vm1766, %v1735, %v1737
      %v1772 = vsel %vm1766, %v1739, %v1741
      %v1773 = vsel %vm1766, %v1743, %v1745
      %v1774 = vsel %vm1766, %v1747, %v1749
      %v1775 = vsel %vm1766, %v1751, %v1753
      %v1776 = vsel %vm1766, %v1755, %v1757
      %v1777 = vsel %vm1766, %v1759, %v1761
      %v1778 = vsel %vm1766, %v1763, %v1765
      %v1804 = vsel %vm1596, %v1707, 0
      %v1807 = vsel %vm1596, %v1709, 0
      %v1810 = vsel %vm1596, %v1711, 0
      %v1813 = vsel %vm1596, %v1713, 0
      %1815 = vmatprep.subr.bf16.mxu0 %v1749
      %1816 = vmatpush1.bf16.msra.mxu0 %v1774
      %1817 = vmatprep.subr.bf16.mxu0 %v1745
      %1818 = vmatpush1.bf16.msra.mxu0 %v1773
      %1819 = vmatprep.subr.bf16.mxu0 %v1741
      %1820 = vmatpush1.bf16.msra.mxu0 %v1772
      %1821 = vmatprep.subr.bf16.mxu0 %v1737
      %1822 = vmatpush1.bf16.msra.mxu0 %v1771
      %1823 = vmatprep.subr.bf16.mxu0 %v1733
      %1824 = vmatpush1.bf16.msra.mxu0 %v1770
      %1825 = vmatprep.subr.bf16.mxu0 %v1729
      %1826 = vmatpush1.bf16.msra.mxu0 %v1769
      %1827 = vmatprep.subr.bf16.mxu0 %v1725
      %1828 = vmatpush1.bf16.msra.mxu0 %v1768
      %1829 = vmatprep.subr.bf16.mxu0 %v1721
      %1830 = vmatpush1.bf16.msra.mxu0 %v1767
      %1831 = vmatprep.subr.bf16.mxu0 0
      %1832 = vmatpush2.bf16.msra.mxu0 0
      %1833 = vmatprep.subr.bf16.mxu0 0
      %1834 = vmatpush2.bf16.msra.mxu0 0
      %1835 = vmatprep.subr.bf16.mxu0 0
      %1836 = vmatpush2.bf16.msra.mxu0 0
      %1837 = vmatprep.subr.bf16.mxu0 0
      %1838 = vmatpush2.bf16.msra.mxu0 0
      %1839 = vmatprep.subr.bf16.mxu0 %v1765
      %1840 = vmatpush2.bf16.msra.mxu0 %v1778
      %1841 = vmatprep.subr.bf16.mxu0 %v1761
      %1842 = vmatpush2.bf16.msra.mxu0 %v1777
      %1843 = vmatprep.subr.bf16.mxu0 %v1757
      %1844 = vmatpush2.bf16.msra.mxu0 %v1776
      %1845 = vmatprep.subr.bf16.mxu0 %v1753
      %1846 = vmatpush2.bf16.msra.mxu0 %v1775
      %1847 = vmatprep.mubr.bf16.mxu0 %v1804
      %1848 = vmatmul.mubr.bf16.gmra.mxu0 %v1706
      %v1849 = vpop.f32.mrf.mxu0
      %v1850 = vadd.f32 %v1644, %v1849
      %v1851 = vpop.f32.mrf.mxu0
      %v1852 = vadd.f32 %v1646, %v1851
      %v1853 = vpop.f32.mrf.mxu0
      %v1854 = vadd.f32 %v1648, %v1853
      %v1855 = vpop.f32.mrf.mxu0
      %v1856 = vadd.f32 %v1650, %v1855
      %1857 = vmatprep.mubr.bf16.mxu0 %v1807
      %1858 = vmatmul.mubr.bf16.gmra.mxu0 %v1708
      %v1859 = vpop.f32.mrf.mxu0
      %v1860 = vadd.f32 %v1654, %v1859
      %v1861 = vpop.f32.mrf.mxu0
      %v1862 = vadd.f32 %v1656, %v1861
      %v1863 = vpop.f32.mrf.mxu0
      %v1864 = vadd.f32 %v1658, %v1863
      %v1865 = vpop.f32.mrf.mxu0
      %v1866 = vadd.f32 %v1660, %v1865
      %1867 = vmatprep.mubr.bf16.mxu0 %v1810
      %1868 = vmatmul.mubr.bf16.gmra.mxu0 %v1710
      %v1869 = vpop.f32.mrf.mxu0
      %v1870 = vadd.f32 %v1664, %v1869
      %v1871 = vpop.f32.mrf.mxu0
      %v1872 = vadd.f32 %v1666, %v1871
      %v1873 = vpop.f32.mrf.mxu0
      %v1874 = vadd.f32 %v1668, %v1873
      %v1875 = vpop.f32.mrf.mxu0
      %v1876 = vadd.f32 %v1670, %v1875
      %1877 = vmatprep.mubr.bf16.mxu0 %v1813
      %1878 = vmatmul.mubr.bf16.gmra.mxu0 %v1712
      %v1879 = vpop.f32.mrf.mxu0
      %v1880 = vadd.f32 %v1674, %v1879
      %v1881 = vpop.f32.mrf.mxu0
      %v1882 = vadd.f32 %v1676, %v1881
      %v1883 = vpop.f32.mrf.mxu0
      %v1884 = vadd.f32 %v1678, %v1883
      %v1885 = vpop.f32.mrf.mxu0
      %v1886 = vadd.f32 %v1680, %v1885
      %1887 = vdwg.mxu0
      %v1888 = vld [vmem:[%s4 + $0xc] sm:$0xff]
      %v1889 = vld [vmem:[%s4 + $0x20] sm:$0xff]
      %v1890 = vld [vmem:[%s4 + $0x34] sm:$0xff]
      %v1891 = vld [vmem:[%s4 + $0x48] sm:$0xff]
      %v1892 = vld [vmem:[%s4 + $0x5c] sm:$0xff]
      %v1893 = vld [vmem:[%s4 + $0x70] sm:$0xff]
      %v1894 = vld [vmem:[%s4 + $0x84] sm:$0xff]
      %v1895 = vld [vmem:[%s4 + $0x98] sm:$0xff]
      %v1904 = vunpack.c.l.b16 %v1888
      %v1905 = vunpack.c.h.b16 %v1888
      %v1906 = vunpack.c.l.b16 %v1889
      %v1907 = vunpack.c.h.b16 %v1889
      %v1908 = vunpack.c.l.b16 %v1890
      %v1909 = vunpack.c.h.b16 %v1890
      %v1910 = vunpack.c.l.b16 %v1891
      %v1911 = vunpack.c.h.b16 %v1891
      %v1912 = vunpack.c.l.b16 %v1892
      %v1913 = vunpack.c.h.b16 %v1892
      %v1914 = vunpack.c.l.b16 %v1893
      %v1915 = vunpack.c.h.b16 %v1893
      %v1916 = vunpack.c.l.b16 %v1894
      %v1917 = vunpack.c.h.b16 %v1894
      %v1918 = vunpack.c.l.b16 %v1895
      %v1919 = vunpack.c.h.b16 %v1895
      %v1920 = vpack.c.b16 %v1906, %v1904
      %v1921 = vpack.c.b16 %v1907, %v1905
      %v1922 = vpack.c.b16 %v1910, %v1908
      %v1923 = vpack.c.b16 %v1911, %v1909
      %v1924 = vpack.c.b16 %v1914, %v1912
      %v1925 = vpack.c.b16 %v1915, %v1913
      %v1926 = vpack.c.b16 %v1918, %v1916
      %v1927 = vpack.c.b16 %v1919, %v1917
      %1932 = vrot.lane.b32.xlu0 %v1487, 91
      %v1933 = vpop.permute.xlu0 %1932
      %1934 = vrot.lane.b32.xlu0 %v1488, 91
      %v1935 = vpop.permute.xlu0 %1934
      %1936 = vrot.lane.b32.xlu0 %v1489, 91
      %v1937 = vpop.permute.xlu0 %1936
      %1938 = vrot.lane.b32.xlu0 %v1490, 91
      %v1939 = vpop.permute.xlu0 %1938
      %1940 = vrot.lane.b32.xlu0 %v1491, 91
      %v1941 = vpop.permute.xlu0 %1940
      %1942 = vrot.lane.b32.xlu0 %v1492, 91
      %v1943 = vpop.permute.xlu0 %1942
      %1944 = vrot.lane.b32.xlu0 %v1493, 91
      %v1945 = vpop.permute.xlu0 %1944
      %1946 = vrot.lane.b32.xlu0 %v1494, 91
      %v1947 = vpop.permute.xlu0 %1946
      %1948 = vrot.lane.b32.xlu0 %v1495, 91
      %v1949 = vpop.permute.xlu0 %1948
      %1950 = vrot.lane.b32.xlu0 %v1496, 91
      %v1951 = vpop.permute.xlu0 %1950
      %1952 = vrot.lane.b32.xlu0 %v1497, 91
      %v1953 = vpop.permute.xlu0 %1952
      %1954 = vrot.lane.b32.xlu0 %v1498, 91
      %v1955 = vpop.permute.xlu0 %1954
      %1956 = vrot.lane.b32.xlu0 %v1499, 91
      %v1957 = vpop.permute.xlu0 %1956
      %1958 = vrot.lane.b32.xlu0 %v1500, 91
      %v1959 = vpop.permute.xlu0 %1958
      %1960 = vrot.lane.b32.xlu0 %v1501, 91
      %v1961 = vpop.permute.xlu0 %1960
      %1962 = vrot.lane.b32.xlu0 %v1502, 91
      %v1963 = vpop.permute.xlu0 %1962
      %1964 = vrot.lane.b32.xlu0 %v1503, 91
      %v1965 = vpop.permute.xlu0 %1964
      %1966 = vrot.lane.b32.xlu0 %v1504, 91
      %v1967 = vpop.permute.xlu0 %1966
      %1968 = vrot.lane.b32.xlu0 %v1505, 91
      %v1969 = vpop.permute.xlu0 %1968
      %1970 = vrot.lane.b32.xlu0 %v1506, 91
      %v1971 = vpop.permute.xlu0 %1970
      %1972 = vrot.lane.b32.xlu0 %v1507, 91
      %v1973 = vpop.permute.xlu0 %1972
      %1974 = vrot.lane.b32.xlu0 %v1508, 91
      %v1975 = vpop.permute.xlu0 %1974
      %1976 = vrot.lane.b32.xlu0 %v1509, 91
      %v1977 = vpop.permute.xlu0 %1976
      %1978 = vrot.lane.b32.xlu0 %v1510, 91
      %v1979 = vpop.permute.xlu0 %1978
      %v1980 = vsel %vm947, %v1933, %v1935
      %v1981 = vsel %vm947, %v1937, %v1939
      %v1982 = vsel %vm947, %v1941, %v1943
      %v1983 = vsel %vm947, %v1945, %v1947
      %v1984 = vsel %vm947, %v1949, %v1951
      %v1985 = vsel %vm947, %v1953, %v1955
      %v1986 = vsel %vm947, %v1957, %v1959
      %v1987 = vsel %vm947, %v1961, %v1963
      %v1988 = vsel %vm947, %v1965, %v1967
      %v1989 = vsel %vm947, %v1969, %v1971
      %v1990 = vsel %vm947, %v1973, %v1975
      %v1991 = vsel %vm947, %v1977, %v1979
      %v2017 = vsel %vm1596, %v1921, 0
      %v2020 = vsel %vm1596, %v1923, 0
      %v2023 = vsel %vm1596, %v1925, 0
      %v2026 = vsel %vm1596, %v1927, 0
      %2028 = vmatprep.subr.bf16.mxu0 %v1963
      %2029 = vmatpush1.bf16.msra.mxu0 %v1987
      %2030 = vmatprep.subr.bf16.mxu0 %v1959
      %2031 = vmatpush1.bf16.msra.mxu0 %v1986
      %2032 = vmatprep.subr.bf16.mxu0 %v1955
      %2033 = vmatpush1.bf16.msra.mxu0 %v1985
      %2034 = vmatprep.subr.bf16.mxu0 %v1951
      %2035 = vmatpush1.bf16.msra.mxu0 %v1984
      %2036 = vmatprep.subr.bf16.mxu0 %v1947
      %2037 = vmatpush1.bf16.msra.mxu0 %v1983
      %2038 = vmatprep.subr.bf16.mxu0 %v1943
      %2039 = vmatpush1.bf16.msra.mxu0 %v1982
      %2040 = vmatprep.subr.bf16.mxu0 %v1939
      %2041 = vmatpush1.bf16.msra.mxu0 %v1981
      %2042 = vmatprep.subr.bf16.mxu0 %v1935
      %2043 = vmatpush1.bf16.msra.mxu0 %v1980
      %2044 = vmatprep.subr.bf16.mxu0 0
      %2045 = vmatpush2.bf16.msra.mxu0 0
      %2046 = vmatprep.subr.bf16.mxu0 0
      %2047 = vmatpush2.bf16.msra.mxu0 0
      %2048 = vmatprep.subr.bf16.mxu0 0
      %2049 = vmatpush2.bf16.msra.mxu0 0
      %2050 = vmatprep.subr.bf16.mxu0 0
      %2051 = vmatpush2.bf16.msra.mxu0 0
      %2052 = vmatprep.subr.bf16.mxu0 %v1979
      %2053 = vmatpush2.bf16.msra.mxu0 %v1991
      %2054 = vmatprep.subr.bf16.mxu0 %v1975
      %2055 = vmatpush2.bf16.msra.mxu0 %v1990
      %2056 = vmatprep.subr.bf16.mxu0 %v1971
      %2057 = vmatpush2.bf16.msra.mxu0 %v1989
      %2058 = vmatprep.subr.bf16.mxu0 %v1967
      %2059 = vmatpush2.bf16.msra.mxu0 %v1988
      %2060 = vmatprep.mubr.bf16.mxu0 %v2017
      %2061 = vmatmul.mubr.bf16.gmra.mxu0 %v1920
      %v2062 = vpop.f32.mrf.mxu0
      %v2063 = vadd.f32 0.0, %v2062
      %v2064 = vpop.f32.mrf.mxu0
      %v2065 = vadd.f32 0.0, %v2064
      %v2066 = vpop.f32.mrf.mxu0
      %v2067 = vadd.f32 0.0, %v2066
      %v2068 = vpop.f32.mrf.mxu0
      %v2069 = vadd.f32 0.0, %v2068
      %2070 = vmatprep.mubr.bf16.mxu0 %v2020
      %2071 = vmatmul.mubr.bf16.gmra.mxu0 %v1922
      %v2072 = vpop.f32.mrf.mxu0
      %v2073 = vadd.f32 0.0, %v2072
      %v2074 = vpop.f32.mrf.mxu0
      %v2075 = vadd.f32 0.0, %v2074
      %v2076 = vpop.f32.mrf.mxu0
      %v2077 = vadd.f32 0.0, %v2076
      %v2078 = vpop.f32.mrf.mxu0
      %v2079 = vadd.f32 0.0, %v2078
      %2080 = vmatprep.mubr.bf16.mxu0 %v2023
      %2081 = vmatmul.mubr.bf16.gmra.mxu0 %v1924
      %v2082 = vpop.f32.mrf.mxu0
      %v2083 = vadd.f32 0.0, %v2082
      %v2084 = vpop.f32.mrf.mxu0
      %v2085 = vadd.f32 0.0, %v2084
      %v2086 = vpop.f32.mrf.mxu0
      %v2087 = vadd.f32 0.0, %v2086
      %v2088 = vpop.f32.mrf.mxu0
      %v2089 = vadd.f32 0.0, %v2088
      %2090 = vmatprep.mubr.bf16.mxu0 %v2026
      %2091 = vmatmul.mubr.bf16.gmra.mxu0 %v1926
      %v2092 = vpop.f32.mrf.mxu0
      %v2093 = vadd.f32 0.0, %v2092
      %v2094 = vpop.f32.mrf.mxu0
      %v2095 = vadd.f32 0.0, %v2094
      %v2096 = vpop.f32.mrf.mxu0
      %v2097 = vadd.f32 0.0, %v2096
      %v2098 = vpop.f32.mrf.mxu0
      %v2099 = vadd.f32 0.0, %v2098
      %2100 = vdwg.mxu0
      %v2101 = vadd.f32 %v1850, %v2063
      %v2102 = vadd.f32 %v1852, %v2065
      %v2103 = vadd.f32 %v1854, %v2067
      %v2104 = vadd.f32 %v1856, %v2069
      %v2105 = vadd.f32 %v1860, %v2073
      %v2106 = vadd.f32 %v1862, %v2075
      %v2107 = vadd.f32 %v1864, %v2077
      %v2108 = vadd.f32 %v1866, %v2079
      %v2109 = vadd.f32 %v1870, %v2083
      %v2110 = vadd.f32 %v1872, %v2085
      %v2111 = vadd.f32 %v1874, %v2087
      %v2112 = vadd.f32 %v1876, %v2089
      %v2113 = vadd.f32 %v1880, %v2093
      %v2114 = vadd.f32 %v1882, %v2095
      %v2115 = vadd.f32 %v1884, %v2097
      %v2116 = vadd.f32 %v1886, %v2099
      %v2117 = vld [vmem:[%s5] sm:$0xff]
      %v2118 = vld [vmem:[%s5 + $0x8] sm:$0xff]
      %v2119 = vld [vmem:[%s5 + $0x10] sm:$0xff]
      %v2120 = vld [vmem:[%s5 + $0x18] sm:$0xff]
      %v2121 = vld [vmem:[%s5 + $0x20] sm:$0xff]
      %v2122 = vld [vmem:[%s5 + $0x28] sm:$0xff]
      %v2123 = vld [vmem:[%s5 + $0x30] sm:$0xff]
      %v2124 = vld [vmem:[%s5 + $0x38] sm:$0xff]
      %2126 = vset.pattern.permute.xlu0 0
      %2127 = vperm.xlu0 %2126, %v2117
      %v2128 = vpop.permute.xlu0 %2127
      %2131 = vset.pattern.permute.xlu0 0
      %2132 = vperm.xlu0 %2131, %v2118
      %v2133 = vpop.permute.xlu0 %2132
      %2136 = vset.pattern.permute.xlu0 0
      %2137 = vperm.xlu0 %2136, %v2119
      %v2138 = vpop.permute.xlu0 %2137
      %2141 = vset.pattern.permute.xlu0 0
      %2142 = vperm.xlu0 %2141, %v2120
      %v2143 = vpop.permute.xlu0 %2142
      %2146 = vset.pattern.permute.xlu0 0
      %2147 = vperm.xlu0 %2146, %v2121
      %v2148 = vpop.permute.xlu0 %2147
      %2151 = vset.pattern.permute.xlu0 0
      %2152 = vperm.xlu0 %2151, %v2122
      %v2153 = vpop.permute.xlu0 %2152
      %2156 = vset.pattern.permute.xlu0 0
      %2157 = vperm.xlu0 %2156, %v2123
      %v2158 = vpop.permute.xlu0 %2157
      %2161 = vset.pattern.permute.xlu0 0
      %2162 = vperm.xlu0 %2161, %v2124
      %v2163 = vpop.permute.xlu0 %2162
      %v2165 = vadd.f32 %v2101, %v2128
      %v2166 = vadd.f32 %v2102, %v2128
      %v2167 = vadd.f32 %v2103, %v2133
      %v2168 = vadd.f32 %v2104, %v2133
      %v2169 = vadd.f32 %v2105, %v2138
      %v2170 = vadd.f32 %v2106, %v2138
      %v2171 = vadd.f32 %v2107, %v2143
      %v2172 = vadd.f32 %v2108, %v2143
      %v2173 = vadd.f32 %v2109, %v2148
      %v2174 = vadd.f32 %v2110, %v2148
      %v2175 = vadd.f32 %v2111, %v2153
      %v2176 = vadd.f32 %v2112, %v2153
      %v2177 = vadd.f32 %v2113, %v2158
      %v2178 = vadd.f32 %v2114, %v2158
      %v2179 = vadd.f32 %v2115, %v2163
      %v2180 = vadd.f32 %v2116, %v2163
      %v2181 = vld [vmem:[%s6] sm:$0xff]
      %v2182 = vld [vmem:[%s6 + $0x8] sm:$0xff]
      %v2183 = vld [vmem:[%s6 + $0x10] sm:$0xff]
      %v2184 = vld [vmem:[%s6 + $0x18] sm:$0xff]
      %v2185 = vld [vmem:[%s6 + $0x20] sm:$0xff]
      %v2186 = vld [vmem:[%s6 + $0x28] sm:$0xff]
      %v2187 = vld [vmem:[%s6 + $0x30] sm:$0xff]
      %v2188 = vld [vmem:[%s6 + $0x38] sm:$0xff]
      %vm2189 = vcmp.gt.f32.partialorder %v2165, 0.0
      %vm2190 = vcmp.gt.f32.partialorder %v2166, 0.0
      %vm2191 = vcmp.gt.f32.partialorder %v2167, 0.0
      %vm2192 = vcmp.gt.f32.partialorder %v2168, 0.0
      %vm2193 = vcmp.gt.f32.partialorder %v2169, 0.0
      %vm2194 = vcmp.gt.f32.partialorder %v2170, 0.0
      %vm2195 = vcmp.gt.f32.partialorder %v2171, 0.0
      %vm2196 = vcmp.gt.f32.partialorder %v2172, 0.0
      %vm2197 = vcmp.gt.f32.partialorder %v2173, 0.0
      %vm2198 = vcmp.gt.f32.partialorder %v2174, 0.0
      %vm2199 = vcmp.gt.f32.partialorder %v2175, 0.0
      %vm2200 = vcmp.gt.f32.partialorder %v2176, 0.0
      %vm2201 = vcmp.gt.f32.partialorder %v2177, 0.0
      %vm2202 = vcmp.gt.f32.partialorder %v2178, 0.0
      %vm2203 = vcmp.gt.f32.partialorder %v2179, 0.0
      %vm2204 = vcmp.gt.f32.partialorder %v2180, 0.0
      %2206 = vset.pattern.permute.xlu0 0
      %2207 = vperm.xlu0 %2206, %v2181
      %v2208 = vpop.permute.xlu0 %2207
      %2211 = vset.pattern.permute.xlu0 0
      %2212 = vperm.xlu0 %2211, %v2182
      %v2213 = vpop.permute.xlu0 %2212
      %2216 = vset.pattern.permute.xlu0 0
      %2217 = vperm.xlu0 %2216, %v2183
      %v2218 = vpop.permute.xlu0 %2217
      %2221 = vset.pattern.permute.xlu0 0
      %2222 = vperm.xlu0 %2221, %v2184
      %v2223 = vpop.permute.xlu0 %2222
      %2226 = vset.pattern.permute.xlu0 0
      %2227 = vperm.xlu0 %2226, %v2185
      %v2228 = vpop.permute.xlu0 %2227
      %2231 = vset.pattern.permute.xlu0 0
      %2232 = vperm.xlu0 %2231, %v2186
      %v2233 = vpop.permute.xlu0 %2232
      %2236 = vset.pattern.permute.xlu0 0
      %2237 = vperm.xlu0 %2236, %v2187
      %v2238 = vpop.permute.xlu0 %2237
      %2241 = vset.pattern.permute.xlu0 0
      %2242 = vperm.xlu0 %2241, %v2188
      %v2243 = vpop.permute.xlu0 %2242
      %v2245 = vmul.f32 %v2208, %v2165
      %v2246 = vmul.f32 %v2208, %v2166
      %v2247 = vmul.f32 %v2213, %v2167
      %v2248 = vmul.f32 %v2213, %v2168
      %v2249 = vmul.f32 %v2218, %v2169
      %v2250 = vmul.f32 %v2218, %v2170
      %v2251 = vmul.f32 %v2223, %v2171
      %v2252 = vmul.f32 %v2223, %v2172
      %v2253 = vmul.f32 %v2228, %v2173
      %v2254 = vmul.f32 %v2228, %v2174
      %v2255 = vmul.f32 %v2233, %v2175
      %v2256 = vmul.f32 %v2233, %v2176
      %v2257 = vmul.f32 %v2238, %v2177
      %v2258 = vmul.f32 %v2238, %v2178
      %v2259 = vmul.f32 %v2243, %v2179
      %v2260 = vmul.f32 %v2243, %v2180
      %v2261 = vsel %vm2189, %v2165, %v2245
      %v2262 = vsel %vm2190, %v2166, %v2246
      %v2263 = vsel %vm2191, %v2167, %v2247
      %v2264 = vsel %vm2192, %v2168, %v2248
      %v2265 = vsel %vm2193, %v2169, %v2249
      %v2266 = vsel %vm2194, %v2170, %v2250
      %v2267 = vsel %vm2195, %v2171, %v2251
      %v2268 = vsel %vm2196, %v2172, %v2252
      %v2269 = vsel %vm2197, %v2173, %v2253
      %v2270 = vsel %vm2198, %v2174, %v2254
      %v2271 = vsel %vm2199, %v2175, %v2255
      %v2272 = vsel %vm2200, %v2176, %v2256
      %v2273 = vsel %vm2201, %v2177, %v2257
      %v2274 = vsel %vm2202, %v2178, %v2258
      %v2275 = vsel %vm2203, %v2179, %v2259
      %v2276 = vsel %vm2204, %v2180, %v2260
      %v2277 = vsel %vm1079, %v2261, 0.0
      %v2278 = vsel %vm1080, %v2262, 0.0
      %v2279 = vsel %vm1079, %v2263, 0.0
      %v2280 = vsel %vm1080, %v2264, 0.0
      %v2281 = vsel %vm1079, %v2265, 0.0
      %v2282 = vsel %vm1080, %v2266, 0.0
      %v2283 = vsel %vm1079, %v2267, 0.0
      %v2284 = vsel %vm1080, %v2268, 0.0
      %v2285 = vsel %vm1079, %v2269, 0.0
      %v2286 = vsel %vm1080, %v2270, 0.0
      %v2287 = vsel %vm1079, %v2271, 0.0
      %v2288 = vsel %vm1080, %v2272, 0.0
      %v2289 = vsel %vm1079, %v2273, 0.0
      %v2290 = vsel %vm1080, %v2274, 0.0
      %v2291 = vsel %vm1079, %v2275, 0.0
      %v2292 = vsel %vm1080, %v2276, 0.0
      %v2293 = vpack.c.bf16 %v2279, %v2277
      %v2294 = vpack.c.bf16 %v2280, %v2278
      %v2295 = vpack.c.bf16 %v2283, %v2281
      %v2296 = vpack.c.bf16 %v2284, %v2282
      %v2297 = vpack.c.bf16 %v2287, %v2285
      %v2298 = vpack.c.bf16 %v2288, %v2286
      %v2299 = vpack.c.bf16 %v2291, %v2289
      %v2300 = vpack.c.bf16 %v2292, %v2290
      %v2309 = vunpack.c.l.b16 %v2293
      %v2310 = vunpack.c.l.b16 %v2294
      %v2311 = vunpack.c.h.b16 %v2293
      %v2312 = vunpack.c.h.b16 %v2294
      %v2313 = vunpack.c.l.b16 %v2295
      %v2314 = vunpack.c.l.b16 %v2296
      %v2315 = vunpack.c.h.b16 %v2295
      %v2316 = vunpack.c.h.b16 %v2296
      %v2317 = vunpack.c.l.b16 %v2297
      %v2318 = vunpack.c.l.b16 %v2298
      %v2319 = vunpack.c.h.b16 %v2297
      %v2320 = vunpack.c.h.b16 %v2298
      %v2321 = vunpack.c.l.b16 %v2299
      %v2322 = vunpack.c.l.b16 %v2300
      %v2323 = vunpack.c.h.b16 %v2299
      %v2324 = vunpack.c.h.b16 %v2300
      %v2325 = vpack.c.b16 %v2310, %v2309
      %v2326 = vpack.c.b16 %v2312, %v2311
      %v2327 = vpack.c.b16 %v2314, %v2313
      %v2328 = vpack.c.b16 %v2316, %v2315
      %v2329 = vpack.c.b16 %v2318, %v2317
      %v2330 = vpack.c.b16 %v2320, %v2319
      %v2331 = vpack.c.b16 %v2322, %v2321
      %v2332 = vpack.c.b16 %v2324, %v2323
      %2333 = vrot.lane.b32.xlu0 %v2325, 2
      %v2334 = vpop.permute.xlu0 %2333
      %2335 = vrot.lane.b32.xlu0 %v2326, 2
      %v2336 = vpop.permute.xlu0 %2335
      %2337 = vrot.lane.b32.xlu0 %v2327, 2
      %v2338 = vpop.permute.xlu0 %2337
      %2339 = vrot.lane.b32.xlu0 %v2328, 2
      %v2340 = vpop.permute.xlu0 %2339
      %2341 = vrot.lane.b32.xlu0 %v2329, 2
      %v2342 = vpop.permute.xlu0 %2341
      %2343 = vrot.lane.b32.xlu0 %v2330, 2
      %v2344 = vpop.permute.xlu0 %2343
      %2345 = vrot.lane.b32.xlu0 %v2331, 2
      %v2346 = vpop.permute.xlu0 %2345
      %2347 = vrot.lane.b32.xlu0 %v2332, 2
      %v2348 = vpop.permute.xlu0 %2347
      %v2349 = vrot.slane %v2334, 4
      %v2350 = vrot.slane %v2336, 4
      %v2351 = vrot.slane %v2338, 4
      %v2352 = vrot.slane %v2340, 4
      %v2353 = vrot.slane %v2342, 4
      %v2354 = vrot.slane %v2344, 4
      %v2355 = vrot.slane %v2346, 4
      %v2356 = vrot.slane %v2348, 4
      %v2357 = vsel %vm601, %v2349, %v2334
      %v2358 = vsel %vm601, %v2350, %v2336
      %v2359 = vsel %vm601, %v2351, %v2338
      %v2360 = vsel %vm601, %v2352, %v2340
      %v2361 = vsel %vm601, %v2353, %v2342
      %v2362 = vsel %vm601, %v2354, %v2344
      %v2363 = vsel %vm601, %v2355, %v2346
      %v2364 = vsel %vm601, %v2356, %v2348
      %vm2373 = vcmask 736260
      %vm2374 = vmor %vm2373, %vm610
      %2375 = vst.msk [vmem:[#allocation2] sm:$0xff] %vm2374, %v2357
      %2376 = vst.msk [vmem:[#allocation2 + $0xc] sm:$0xff] %vm2374, %v2358
      %2377 = vst.msk [vmem:[#allocation2 + $0x18] sm:$0xff] %vm2374, %v2359
      %2378 = vst.msk [vmem:[#allocation2 + $0x24] sm:$0xff] %vm2374, %v2360
      %2379 = vst.msk [vmem:[#allocation2 + $0x30] sm:$0xff] %vm2374, %v2361
      %2380 = vst.msk [vmem:[#allocation2 + $0x3c] sm:$0xff] %vm2374, %v2362
      %2381 = vst.msk [vmem:[#allocation2 + $0x48] sm:$0xff] %vm2374, %v2363
      %2382 = vst.msk [vmem:[#allocation2 + $0x54] sm:$0xff] %vm2374, %v2364
      %2383 = vrot.lane.b32.xlu0 %v2325, 1
      %v2384 = vpop.permute.xlu0 %2383
      %2385 = vrot.lane.b32.xlu0 %v2326, 1
      %v2386 = vpop.permute.xlu0 %2385
      %2387 = vrot.lane.b32.xlu0 %v2327, 1
      %v2388 = vpop.permute.xlu0 %2387
      %2389 = vrot.lane.b32.xlu0 %v2328, 1
      %v2390 = vpop.permute.xlu0 %2389
      %2391 = vrot.lane.b32.xlu0 %v2329, 1
      %v2392 = vpop.permute.xlu0 %2391
      %2393 = vrot.lane.b32.xlu0 %v2330, 1
      %v2394 = vpop.permute.xlu0 %2393
      %2395 = vrot.lane.b32.xlu0 %v2331, 1
      %v2396 = vpop.permute.xlu0 %2395
      %2397 = vrot.lane.b32.xlu0 %v2332, 1
      %v2398 = vpop.permute.xlu0 %2397
      %v2399 = vrot.slane %v2384, 4
      %v2400 = vrot.slane %v2386, 4
      %v2401 = vrot.slane %v2388, 4
      %v2402 = vrot.slane %v2390, 4
      %v2403 = vrot.slane %v2392, 4
      %v2404 = vrot.slane %v2394, 4
      %v2405 = vrot.slane %v2396, 4
      %v2406 = vrot.slane %v2398, 4
      %v2407 = vsel %vm627, %v2399, %v2384
      %v2408 = vsel %vm627, %v2400, %v2386
      %v2409 = vsel %vm627, %v2401, %v2388
      %v2410 = vsel %vm627, %v2402, %v2390
      %v2411 = vsel %vm627, %v2403, %v2392
      %v2412 = vsel %vm627, %v2404, %v2394
      %v2413 = vsel %vm627, %v2405, %v2396
      %v2414 = vsel %vm627, %v2406, %v2398
      %vm2423 = vcmask 728068
      %vm2424 = vmor %vm2423, %vm636
      %2425 = vst.msk [vmem:[#allocation2 + $0x60] sm:$0xff] %vm2424, %v2407
      %2426 = vst.msk [vmem:[#allocation2 + $0x6c] sm:$0xff] %vm2424, %v2408
      %2427 = vst.msk [vmem:[#allocation2 + $0x78] sm:$0xff] %vm2424, %v2409
      %2428 = vst.msk [vmem:[#allocation2 + $0x84] sm:$0xff] %vm2424, %v2410
      %2429 = vst.msk [vmem:[#allocation2 + $0x90] sm:$0xff] %vm2424, %v2411
      %2430 = vst.msk [vmem:[#allocation2 + $0x9c] sm:$0xff] %vm2424, %v2412
      %2431 = vst.msk [vmem:[#allocation2 + $0xa8] sm:$0xff] %vm2424, %v2413
      %2432 = vst.msk [vmem:[#allocation2 + $0xb4] sm:$0xff] %vm2424, %v2414
      %vm2441 = vcmask 719876
      %vm2442 = vmor %vm2441, %vm1245
      %2443 = vst.msk [vmem:[#allocation2 + $0xc0] sm:$0xff] %vm2442, %v2325
      %2444 = vst.msk [vmem:[#allocation2 + $0xcc] sm:$0xff] %vm2442, %v2326
      %2445 = vst.msk [vmem:[#allocation2 + $0xd8] sm:$0xff] %vm2442, %v2327
      %2446 = vst.msk [vmem:[#allocation2 + $0xe4] sm:$0xff] %vm2442, %v2328
      %2447 = vst.msk [vmem:[#allocation2 + $0xf0] sm:$0xff] %vm2442, %v2329
      %2448 = vst.msk [vmem:[#allocation2 + $0xfc] sm:$0xff] %vm2442, %v2330
      %2449 = vst.msk [vmem:[#allocation2 + $0x108] sm:$0xff] %vm2442, %v2331
      %2450 = vst.msk [vmem:[#allocation2 + $0x114] sm:$0xff] %vm2442, %v2332
      // Predicated region
      $region73: #{effvsr_forward.1} parent=63 // pred_check
        %p2451 = pneg %p1256
      $region74: #{effvsr_forward.1} parent=63 // pred_check_branch
        %2453 = sbr.rel (%p2451) target = $region76
      $region75: #{effvsr_forward.1} parent=63 // pred_region
        %vm2454 = vcmask 306192
        %2455 = vst.msk [vmem:[#allocation2] sm:$0xf] %vm2454, 0
        %2456 = vst.msk [vmem:[#allocation2 + $0xc] sm:$0xf] %vm2454, 0
        %2457 = vst.msk [vmem:[#allocation2 + $0x18] sm:$0xf] %vm2454, 0
        %2458 = vst.msk [vmem:[#allocation2 + $0x24] sm:$0xf] %vm2454, 0
        %2459 = vst.msk [vmem:[#allocation2 + $0x30] sm:$0xf] %vm2454, 0
        %2460 = vst.msk [vmem:[#allocation2 + $0x3c] sm:$0xf] %vm2454, 0
        %2461 = vst.msk [vmem:[#allocation2 + $0x48] sm:$0xf] %vm2454, 0
        %2462 = vst.msk [vmem:[#allocation2 + $0x54] sm:$0xf] %vm2454, 0
        %vm2463 = vcmask 297992
        %2464 = vst.msk [vmem:[#allocation2 + $0x60] sm:$0xf] %vm2463, 0
        %2465 = vst.msk [vmem:[#allocation2 + $0x6c] sm:$0xf] %vm2463, 0
        %2466 = vst.msk [vmem:[#allocation2 + $0x78] sm:$0xf] %vm2463, 0
        %2467 = vst.msk [vmem:[#allocation2 + $0x84] sm:$0xf] %vm2463, 0
        %2468 = vst.msk [vmem:[#allocation2 + $0x90] sm:$0xf] %vm2463, 0
        %2469 = vst.msk [vmem:[#allocation2 + $0x9c] sm:$0xf] %vm2463, 0
        %2470 = vst.msk [vmem:[#allocation2 + $0xa8] sm:$0xf] %vm2463, 0
        %2471 = vst.msk [vmem:[#allocation2 + $0xb4] sm:$0xf] %vm2463, 0
        %vm2472 = vcmask 289792
        %2473 = vst.msk [vmem:[#allocation2 + $0xc0] sm:$0xf] %vm2472, 0
        %2474 = vst.msk [vmem:[#allocation2 + $0xcc] sm:$0xf] %vm2472, 0
        %2475 = vst.msk [vmem:[#allocation2 + $0xd8] sm:$0xf] %vm2472, 0
        %2476 = vst.msk [vmem:[#allocation2 + $0xe4] sm:$0xf] %vm2472, 0
        %2477 = vst.msk [vmem:[#allocation2 + $0xf0] sm:$0xf] %vm2472, 0
        %2478 = vst.msk [vmem:[#allocation2 + $0xfc] sm:$0xf] %vm2472, 0
        %2479 = vst.msk [vmem:[#allocation2 + $0x108] sm:$0xf] %vm2472, 0
        %2480 = vst.msk [vmem:[#allocation2 + $0x114] sm:$0xf] %vm2472, 0
      $region76: #{effvsr_forward.1} parent=63 // pred_fallthru
        _
      // Predicated region
      $region77: #{effvsr_forward.1} parent=63 // pred_check
        %p2481 = pneg %p1287
      $region78: #{effvsr_forward.1} parent=63 // pred_check_branch
        %2483 = sbr.rel (%p2481) target = $region80
      $region79: #{effvsr_forward.1} parent=63 // pred_region
        %vm2484 = vcmask 732592
        %2485 = vst.msk [vmem:[#allocation2 + $0x4] sm:$0xf] %vm2484, 0
        %2486 = vst.msk [vmem:[#allocation2 + $0x10] sm:$0xf] %vm2484, 0
        %2487 = vst.msk [vmem:[#allocation2 + $0x1c] sm:$0xf] %vm2484, 0
        %2488 = vst.msk [vmem:[#allocation2 + $0x28] sm:$0xf] %vm2484, 0
        %2489 = vst.msk [vmem:[#allocation2 + $0x34] sm:$0xf] %vm2484, 0
        %2490 = vst.msk [vmem:[#allocation2 + $0x40] sm:$0xf] %vm2484, 0
        %2491 = vst.msk [vmem:[#allocation2 + $0x4c] sm:$0xf] %vm2484, 0
        %2492 = vst.msk [vmem:[#allocation2 + $0x58] sm:$0xf] %vm2484, 0
        %vm2493 = vcmask 724392
        %2494 = vst.msk [vmem:[#allocation2 + $0x64] sm:$0xf] %vm2493, 0
        %2495 = vst.msk [vmem:[#allocation2 + $0x70] sm:$0xf] %vm2493, 0
        %2496 = vst.msk [vmem:[#allocation2 + $0x7c] sm:$0xf] %vm2493, 0
        %2497 = vst.msk [vmem:[#allocation2 + $0x88] sm:$0xf] %vm2493, 0
        %2498 = vst.msk [vmem:[#allocation2 + $0x94] sm:$0xf] %vm2493, 0
        %2499 = vst.msk [vmem:[#allocation2 + $0xa0] sm:$0xf] %vm2493, 0
        %2500 = vst.msk [vmem:[#allocation2 + $0xac] sm:$0xf] %vm2493, 0
        %2501 = vst.msk [vmem:[#allocation2 + $0xb8] sm:$0xf] %vm2493, 0
        %vm2502 = vcmask 716192
        %2503 = vst.msk [vmem:[#allocation2 + $0xc4] sm:$0xf] %vm2502, 0
        %2504 = vst.msk [vmem:[#allocation2 + $0xd0] sm:$0xf] %vm2502, 0
        %2505 = vst.msk [vmem:[#allocation2 + $0xdc] sm:$0xf] %vm2502, 0
        %2506 = vst.msk [vmem:[#allocation2 + $0xe8] sm:$0xf] %vm2502, 0
        %2507 = vst.msk [vmem:[#allocation2 + $0xf4] sm:$0xf] %vm2502, 0
        %2508 = vst.msk [vmem:[#allocation2 + $0x100] sm:$0xf] %vm2502, 0
        %2509 = vst.msk [vmem:[#allocation2 + $0x10c] sm:$0xf] %vm2502, 0
        %2510 = vst.msk [vmem:[#allocation2 + $0x118] sm:$0xf] %vm2502, 0
      $region80: #{effvsr_forward.1} parent=63 // pred_fallthru
        _
      %v2511 = vld [vmem:[%s7] sm:$0xff]
      %v2512 = vld [vmem:[%s7 + $0x14] sm:$0xff]
      %v2513 = vld [vmem:[%s7 + $0x28] sm:$0xff]
      %v2514 = vld [vmem:[%s7 + $0x3c] sm:$0xff]
      %v2515 = vld [vmem:[%s7 + $0x50] sm:$0xff]
      %v2516 = vld [vmem:[%s7 + $0x64] sm:$0xff]
      %v2517 = vld [vmem:[%s7 + $0x78] sm:$0xff]
      %v2518 = vld [vmem:[%s7 + $0x8c] sm:$0xff]
      %v2519 = vld [vmem:[#allocation2] sm:$0xff]
      %v2520 = vld [vmem:[#allocation2 + $0xc] sm:$0xff]
      %v2521 = vld [vmem:[#allocation2 + $0x18] sm:$0xff]
      %v2522 = vld [vmem:[#allocation2 + $0x24] sm:$0xff]
      %v2523 = vld [vmem:[#allocation2 + $0x30] sm:$0xff]
      %v2524 = vld [vmem:[#allocation2 + $0x3c] sm:$0xff]
      %v2525 = vld [vmem:[#allocation2 + $0x48] sm:$0xff]
      %v2526 = vld [vmem:[#allocation2 + $0x54] sm:$0xff]
      %v2527 = vld [vmem:[#allocation2 + $0x60] sm:$0xff]
      %v2528 = vld [vmem:[#allocation2 + $0x6c] sm:$0xff]
      %v2529 = vld [vmem:[#allocation2 + $0x78] sm:$0xff]
      %v2530 = vld [vmem:[#allocation2 + $0x84] sm:$0xff]
      %v2531 = vld [vmem:[#allocation2 + $0x90] sm:$0xff]
      %v2532 = vld [vmem:[#allocation2 + $0x9c] sm:$0xff]
      %v2533 = vld [vmem:[#allocation2 + $0xa8] sm:$0xff]
      %v2534 = vld [vmem:[#allocation2 + $0xb4] sm:$0xff]
      %v2535 = vld [vmem:[#allocation2 + $0xc0] sm:$0xff]
      %v2536 = vld [vmem:[#allocation2 + $0xcc] sm:$0xff]
      %v2537 = vld [vmem:[#allocation2 + $0xd8] sm:$0xff]
      %v2538 = vld [vmem:[#allocation2 + $0xe4] sm:$0xff]
      %v2539 = vld [vmem:[#allocation2 + $0xf0] sm:$0xff]
      %v2540 = vld [vmem:[#allocation2 + $0xfc] sm:$0xff]
      %v2541 = vld [vmem:[#allocation2 + $0x108] sm:$0xff]
      %v2542 = vld [vmem:[#allocation2 + $0x114] sm:$0xff]
      %v2543 = vld [vmem:[%s7 + $0x4] sm:$0xff]
      %v2544 = vld [vmem:[%s7 + $0x18] sm:$0xff]
      %v2545 = vld [vmem:[%s7 + $0x2c] sm:$0xff]
      %v2546 = vld [vmem:[%s7 + $0x40] sm:$0xff]
      %v2547 = vld [vmem:[%s7 + $0x54] sm:$0xff]
      %v2548 = vld [vmem:[%s7 + $0x68] sm:$0xff]
      %v2549 = vld [vmem:[%s7 + $0x7c] sm:$0xff]
      %v2550 = vld [vmem:[%s7 + $0x90] sm:$0xff]
      %v2559 = vunpack.c.l.b16 %v2543
      %v2560 = vunpack.c.h.b16 %v2543
      %v2561 = vunpack.c.l.b16 %v2544
      %v2562 = vunpack.c.h.b16 %v2544
      %v2563 = vunpack.c.l.b16 %v2545
      %v2564 = vunpack.c.h.b16 %v2545
      %v2565 = vunpack.c.l.b16 %v2546
      %v2566 = vunpack.c.h.b16 %v2546
      %v2567 = vunpack.c.l.b16 %v2547
      %v2568 = vunpack.c.h.b16 %v2547
      %v2569 = vunpack.c.l.b16 %v2548
      %v2570 = vunpack.c.h.b16 %v2548
      %v2571 = vunpack.c.l.b16 %v2549
      %v2572 = vunpack.c.h.b16 %v2549
      %v2573 = vunpack.c.l.b16 %v2550
      %v2574 = vunpack.c.h.b16 %v2550
      %v2575 = vpack.c.b16 %v2561, %v2559
      %v2576 = vpack.c.b16 %v2562, %v2560
      %v2577 = vpack.c.b16 %v2565, %v2563
      %v2578 = vpack.c.b16 %v2566, %v2564
      %v2579 = vpack.c.b16 %v2569, %v2567
      %v2580 = vpack.c.b16 %v2570, %v2568
      %v2581 = vpack.c.b16 %v2573, %v2571
      %v2582 = vpack.c.b16 %v2574, %v2572
      %2583 = vrot.lane.b32.xlu0 %v2575, 64
      %v2584 = vpop.permute.xlu0 %2583
      %2585 = vrot.lane.b32.xlu0 %v2576, 64
      %v2586 = vpop.permute.xlu0 %2585
      %2587 = vrot.lane.b32.xlu0 %v2577, 64
      %v2588 = vpop.permute.xlu0 %2587
      %2589 = vrot.lane.b32.xlu0 %v2578, 64
      %v2590 = vpop.permute.xlu0 %2589
      %2591 = vrot.lane.b32.xlu0 %v2579, 64
      %v2592 = vpop.permute.xlu0 %2591
      %2593 = vrot.lane.b32.xlu0 %v2580, 64
      %v2594 = vpop.permute.xlu0 %2593
      %2595 = vrot.lane.b32.xlu0 %v2581, 64
      %v2596 = vpop.permute.xlu0 %2595
      %2597 = vrot.lane.b32.xlu0 %v2582, 64
      %v2598 = vpop.permute.xlu0 %2597
      %v2599 = vsel %vm1406, %v2584, %v2586
      %v2600 = vsel %vm1406, %v2588, %v2590
      %v2601 = vsel %vm1406, %v2592, %v2594
      %v2602 = vsel %vm1406, %v2596, %v2598
      %v2631 = vunpack.c.l.b16 %v2519
      %v2632 = vunpack.c.h.b16 %v2519
      %v2633 = vunpack.c.l.b16 %v2520
      %v2634 = vunpack.c.h.b16 %v2520
      %v2635 = vunpack.c.l.b16 %v2521
      %v2636 = vunpack.c.h.b16 %v2521
      %v2637 = vunpack.c.l.b16 %v2522
      %v2638 = vunpack.c.h.b16 %v2522
      %v2639 = vunpack.c.l.b16 %v2523
      %v2640 = vunpack.c.h.b16 %v2523
      %v2641 = vunpack.c.l.b16 %v2524
      %v2642 = vunpack.c.h.b16 %v2524
      %v2643 = vunpack.c.l.b16 %v2525
      %v2644 = vunpack.c.h.b16 %v2525
      %v2645 = vunpack.c.l.b16 %v2526
      %v2646 = vunpack.c.h.b16 %v2526
      %v2647 = vunpack.c.l.b16 %v2527
      %v2648 = vunpack.c.h.b16 %v2527
      %v2649 = vunpack.c.l.b16 %v2528
      %v2650 = vunpack.c.h.b16 %v2528
      %v2651 = vunpack.c.l.b16 %v2529
      %v2652 = vunpack.c.h.b16 %v2529
      %v2653 = vunpack.c.l.b16 %v2530
      %v2654 = vunpack.c.h.b16 %v2530
      %v2655 = vunpack.c.l.b16 %v2531
      %v2656 = vunpack.c.h.b16 %v2531
      %v2657 = vunpack.c.l.b16 %v2532
      %v2658 = vunpack.c.h.b16 %v2532
      %v2659 = vunpack.c.l.b16 %v2533
      %v2660 = vunpack.c.h.b16 %v2533
      %v2661 = vunpack.c.l.b16 %v2534
      %v2662 = vunpack.c.h.b16 %v2534
      %v2663 = vunpack.c.l.b16 %v2535
      %v2664 = vunpack.c.h.b16 %v2535
      %v2665 = vunpack.c.l.b16 %v2536
      %v2666 = vunpack.c.h.b16 %v2536
      %v2667 = vunpack.c.l.b16 %v2537
      %v2668 = vunpack.c.h.b16 %v2537
      %v2669 = vunpack.c.l.b16 %v2538
      %v2670 = vunpack.c.h.b16 %v2538
      %v2671 = vunpack.c.l.b16 %v2539
      %v2672 = vunpack.c.h.b16 %v2539
      %v2673 = vunpack.c.l.b16 %v2540
      %v2674 = vunpack.c.h.b16 %v2540
      %v2675 = vunpack.c.l.b16 %v2541
      %v2676 = vunpack.c.h.b16 %v2541
      %v2677 = vunpack.c.l.b16 %v2542
      %v2678 = vunpack.c.h.b16 %v2542
      %v2679 = vpack.c.b16 %v2633, %v2631
      %v2680 = vpack.c.b16 %v2634, %v2632
      %v2681 = vpack.c.b16 %v2637, %v2635
      %v2682 = vpack.c.b16 %v2638, %v2636
      %v2683 = vpack.c.b16 %v2641, %v2639
      %v2684 = vpack.c.b16 %v2642, %v2640
      %v2685 = vpack.c.b16 %v2645, %v2643
      %v2686 = vpack.c.b16 %v2646, %v2644
      %v2687 = vpack.c.b16 %v2649, %v2647
      %v2688 = vpack.c.b16 %v2650, %v2648
      %v2689 = vpack.c.b16 %v2653, %v2651
      %v2690 = vpack.c.b16 %v2654, %v2652
      %v2691 = vpack.c.b16 %v2657, %v2655
      %v2692 = vpack.c.b16 %v2658, %v2656
      %v2693 = vpack.c.b16 %v2661, %v2659
      %v2694 = vpack.c.b16 %v2662, %v2660
      %v2695 = vpack.c.b16 %v2665, %v2663
      %v2696 = vpack.c.b16 %v2666, %v2664
      %v2697 = vpack.c.b16 %v2669, %v2667
      %v2698 = vpack.c.b16 %v2670, %v2668
      %v2699 = vpack.c.b16 %v2673, %v2671
      %v2700 = vpack.c.b16 %v2674, %v2672
      %v2701 = vpack.c.b16 %v2677, %v2675
      %v2702 = vpack.c.b16 %v2678, %v2676
      %2703 = vrot.lane.b32.xlu0 %v2679, 109
      %v2704 = vpop.permute.xlu0 %2703
      %2705 = vrot.lane.b32.xlu0 %v2680, 109
      %v2706 = vpop.permute.xlu0 %2705
      %2707 = vrot.lane.b32.xlu0 %v2681, 109
      %v2708 = vpop.permute.xlu0 %2707
      %2709 = vrot.lane.b32.xlu0 %v2682, 109
      %v2710 = vpop.permute.xlu0 %2709
      %2711 = vrot.lane.b32.xlu0 %v2683, 109
      %v2712 = vpop.permute.xlu0 %2711
      %2713 = vrot.lane.b32.xlu0 %v2684, 109
      %v2714 = vpop.permute.xlu0 %2713
      %2715 = vrot.lane.b32.xlu0 %v2685, 109
      %v2716 = vpop.permute.xlu0 %2715
      %2717 = vrot.lane.b32.xlu0 %v2686, 109
      %v2718 = vpop.permute.xlu0 %2717
      %2719 = vrot.lane.b32.xlu0 %v2687, 109
      %v2720 = vpop.permute.xlu0 %2719
      %2721 = vrot.lane.b32.xlu0 %v2688, 109
      %v2722 = vpop.permute.xlu0 %2721
      %2723 = vrot.lane.b32.xlu0 %v2689, 109
      %v2724 = vpop.permute.xlu0 %2723
      %2725 = vrot.lane.b32.xlu0 %v2690, 109
      %v2726 = vpop.permute.xlu0 %2725
      %2727 = vrot.lane.b32.xlu0 %v2691, 109
      %v2728 = vpop.permute.xlu0 %2727
      %2729 = vrot.lane.b32.xlu0 %v2692, 109
      %v2730 = vpop.permute.xlu0 %2729
      %2731 = vrot.lane.b32.xlu0 %v2693, 109
      %v2732 = vpop.permute.xlu0 %2731
      %2733 = vrot.lane.b32.xlu0 %v2694, 109
      %v2734 = vpop.permute.xlu0 %2733
      %2735 = vrot.lane.b32.xlu0 %v2695, 109
      %v2736 = vpop.permute.xlu0 %2735
      %2737 = vrot.lane.b32.xlu0 %v2696, 109
      %v2738 = vpop.permute.xlu0 %2737
      %2739 = vrot.lane.b32.xlu0 %v2697, 109
      %v2740 = vpop.permute.xlu0 %2739
      %2741 = vrot.lane.b32.xlu0 %v2698, 109
      %v2742 = vpop.permute.xlu0 %2741
      %2743 = vrot.lane.b32.xlu0 %v2699, 109
      %v2744 = vpop.permute.xlu0 %2743
      %2745 = vrot.lane.b32.xlu0 %v2700, 109
      %v2746 = vpop.permute.xlu0 %2745
      %2747 = vrot.lane.b32.xlu0 %v2701, 109
      %v2748 = vpop.permute.xlu0 %2747
      %2749 = vrot.lane.b32.xlu0 %v2702, 109
      %v2750 = vpop.permute.xlu0 %2749
      %v2751 = vsel %vm1559, %v2704, %v2706
      %v2752 = vsel %vm1559, %v2708, %v2710
      %v2753 = vsel %vm1559, %v2712, %v2714
      %v2754 = vsel %vm1559, %v2716, %v2718
      %v2755 = vsel %vm1559, %v2720, %v2722
      %v2756 = vsel %vm1559, %v2724, %v2726
      %v2757 = vsel %vm1559, %v2728, %v2730
      %v2758 = vsel %vm1559, %v2732, %v2734
      %v2759 = vsel %vm1559, %v2736, %v2738
      %v2760 = vsel %vm1559, %v2740, %v2742
      %v2761 = vsel %vm1559, %v2744, %v2746
      %v2762 = vsel %vm1559, %v2748, %v2750
      %v2788 = vsel %vm1596, %v2586, 0
      %v2791 = vsel %vm1596, %v2590, 0
      %v2794 = vsel %vm1596, %v2594, 0
      %v2797 = vsel %vm1596, %v2598, 0
      %2799 = vmatprep.subr.bf16.mxu0 %v2734
      %2800 = vmatpush1.bf16.msra.mxu0 %v2758
      %2801 = vmatprep.subr.bf16.mxu0 %v2730
      %2802 = vmatpush1.bf16.msra.mxu0 %v2757
      %2803 = vmatprep.subr.bf16.mxu0 %v2726
      %2804 = vmatpush1.bf16.msra.mxu0 %v2756
      %2805 = vmatprep.subr.bf16.mxu0 %v2722
      %2806 = vmatpush1.bf16.msra.mxu0 %v2755
      %2807 = vmatprep.subr.bf16.mxu0 %v2718
      %2808 = vmatpush1.bf16.msra.mxu0 %v2754
      %2809 = vmatprep.subr.bf16.mxu0 %v2714
      %2810 = vmatpush1.bf16.msra.mxu0 %v2753
      %2811 = vmatprep.subr.bf16.mxu0 %v2710
      %2812 = vmatpush1.bf16.msra.mxu0 %v2752
      %2813 = vmatprep.subr.bf16.mxu0 %v2706
      %2814 = vmatpush1.bf16.msra.mxu0 %v2751
      %2815 = vmatprep.subr.bf16.mxu0 0
      %2816 = vmatpush2.bf16.msra.mxu0 0
      %2817 = vmatprep.subr.bf16.mxu0 0
      %2818 = vmatpush2.bf16.msra.mxu0 0
      %2819 = vmatprep.subr.bf16.mxu0 0
      %2820 = vmatpush2.bf16.msra.mxu0 0
      %2821 = vmatprep.subr.bf16.mxu0 0
      %2822 = vmatpush2.bf16.msra.mxu0 0
      %2823 = vmatprep.subr.bf16.mxu0 %v2750
      %2824 = vmatpush2.bf16.msra.mxu0 %v2762
      %2825 = vmatprep.subr.bf16.mxu0 %v2746
      %2826 = vmatpush2.bf16.msra.mxu0 %v2761
      %2827 = vmatprep.subr.bf16.mxu0 %v2742
      %2828 = vmatpush2.bf16.msra.mxu0 %v2760
      %2829 = vmatprep.subr.bf16.mxu0 %v2738
      %2830 = vmatpush2.bf16.msra.mxu0 %v2759
      %2831 = vmatprep.mubr.bf16.mxu0 %v2788
      %2832 = vmatmul.mubr.bf16.gmra.mxu0 %v2599
      %v2833 = vpop.f32.mrf.mxu0
      %v2834 = vadd.f32 0.0, %v2833
      %v2835 = vpop.f32.mrf.mxu0
      %v2836 = vadd.f32 0.0, %v2835
      %v2837 = vpop.f32.mrf.mxu0
      %v2838 = vadd.f32 0.0, %v2837
      %v2839 = vpop.f32.mrf.mxu0
      %v2840 = vadd.f32 0.0, %v2839
      %2841 = vmatprep.mubr.bf16.mxu0 %v2791
      %2842 = vmatmul.mubr.bf16.gmra.mxu0 %v2600
      %v2843 = vpop.f32.mrf.mxu0
      %v2844 = vadd.f32 0.0, %v2843
      %v2845 = vpop.f32.mrf.mxu0
      %v2846 = vadd.f32 0.0, %v2845
      %v2847 = vpop.f32.mrf.mxu0
      %v2848 = vadd.f32 0.0, %v2847
      %v2849 = vpop.f32.mrf.mxu0
      %v2850 = vadd.f32 0.0, %v2849
      %2851 = vmatprep.mubr.bf16.mxu0 %v2794
      %2852 = vmatmul.mubr.bf16.gmra.mxu0 %v2601
      %v2853 = vpop.f32.mrf.mxu0
      %v2854 = vadd.f32 0.0, %v2853
      %v2855 = vpop.f32.mrf.mxu0
      %v2856 = vadd.f32 0.0, %v2855
      %v2857 = vpop.f32.mrf.mxu0
      %v2858 = vadd.f32 0.0, %v2857
      %v2859 = vpop.f32.mrf.mxu0
      %v2860 = vadd.f32 0.0, %v2859
      %2861 = vmatprep.mubr.bf16.mxu0 %v2797
      %2862 = vmatmul.mubr.bf16.gmra.mxu0 %v2602
      %v2863 = vpop.f32.mrf.mxu0
      %v2864 = vadd.f32 0.0, %v2863
      %v2865 = vpop.f32.mrf.mxu0
      %v2866 = vadd.f32 0.0, %v2865
      %v2867 = vpop.f32.mrf.mxu0
      %v2868 = vadd.f32 0.0, %v2867
      %v2869 = vpop.f32.mrf.mxu0
      %v2870 = vadd.f32 0.0, %v2869
      %2871 = vdwg.mxu0
      %v2880 = vunpack.c.l.b16 %v2511
      %v2881 = vunpack.c.h.b16 %v2511
      %v2882 = vunpack.c.l.b16 %v2512
      %v2883 = vunpack.c.h.b16 %v2512
      %v2884 = vunpack.c.l.b16 %v2513
      %v2885 = vunpack.c.h.b16 %v2513
      %v2886 = vunpack.c.l.b16 %v2514
      %v2887 = vunpack.c.h.b16 %v2514
      %v2888 = vunpack.c.l.b16 %v2515
      %v2889 = vunpack.c.h.b16 %v2515
      %v2890 = vunpack.c.l.b16 %v2516
      %v2891 = vunpack.c.h.b16 %v2516
      %v2892 = vunpack.c.l.b16 %v2517
      %v2893 = vunpack.c.h.b16 %v2517
      %v2894 = vunpack.c.l.b16 %v2518
      %v2895 = vunpack.c.h.b16 %v2518
      %v2896 = vpack.c.b16 %v2882, %v2880
      %v2897 = vpack.c.b16 %v2883, %v2881
      %v2898 = vpack.c.b16 %v2886, %v2884
      %v2899 = vpack.c.b16 %v2887, %v2885
      %v2900 = vpack.c.b16 %v2890, %v2888
      %v2901 = vpack.c.b16 %v2891, %v2889
      %v2902 = vpack.c.b16 %v2894, %v2892
      %v2903 = vpack.c.b16 %v2895, %v2893
      %2908 = vrot.lane.b32.xlu0 %v2679, 127
      %v2909 = vpop.permute.xlu0 %2908
      %2910 = vrot.lane.b32.xlu0 %v2680, 127
      %v2911 = vpop.permute.xlu0 %2910
      %2912 = vrot.lane.b32.xlu0 %v2681, 127
      %v2913 = vpop.permute.xlu0 %2912
      %2914 = vrot.lane.b32.xlu0 %v2682, 127
      %v2915 = vpop.permute.xlu0 %2914
      %2916 = vrot.lane.b32.xlu0 %v2683, 127
      %v2917 = vpop.permute.xlu0 %2916
      %2918 = vrot.lane.b32.xlu0 %v2684, 127
      %v2919 = vpop.permute.xlu0 %2918
      %2920 = vrot.lane.b32.xlu0 %v2685, 127
      %v2921 = vpop.permute.xlu0 %2920
      %2922 = vrot.lane.b32.xlu0 %v2686, 127
      %v2923 = vpop.permute.xlu0 %2922
      %2924 = vrot.lane.b32.xlu0 %v2687, 127
      %v2925 = vpop.permute.xlu0 %2924
      %2926 = vrot.lane.b32.xlu0 %v2688, 127
      %v2927 = vpop.permute.xlu0 %2926
      %2928 = vrot.lane.b32.xlu0 %v2689, 127
      %v2929 = vpop.permute.xlu0 %2928
      %2930 = vrot.lane.b32.xlu0 %v2690, 127
      %v2931 = vpop.permute.xlu0 %2930
      %2932 = vrot.lane.b32.xlu0 %v2691, 127
      %v2933 = vpop.permute.xlu0 %2932
      %2934 = vrot.lane.b32.xlu0 %v2692, 127
      %v2935 = vpop.permute.xlu0 %2934
      %2936 = vrot.lane.b32.xlu0 %v2693, 127
      %v2937 = vpop.permute.xlu0 %2936
      %2938 = vrot.lane.b32.xlu0 %v2694, 127
      %v2939 = vpop.permute.xlu0 %2938
      %2940 = vrot.lane.b32.xlu0 %v2695, 127
      %v2941 = vpop.permute.xlu0 %2940
      %2942 = vrot.lane.b32.xlu0 %v2696, 127
      %v2943 = vpop.permute.xlu0 %2942
      %2944 = vrot.lane.b32.xlu0 %v2697, 127
      %v2945 = vpop.permute.xlu0 %2944
      %2946 = vrot.lane.b32.xlu0 %v2698, 127
      %v2947 = vpop.permute.xlu0 %2946
      %2948 = vrot.lane.b32.xlu0 %v2699, 127
      %v2949 = vpop.permute.xlu0 %2948
      %2950 = vrot.lane.b32.xlu0 %v2700, 127
      %v2951 = vpop.permute.xlu0 %2950
      %2952 = vrot.lane.b32.xlu0 %v2701, 127
      %v2953 = vpop.permute.xlu0 %2952
      %2954 = vrot.lane.b32.xlu0 %v2702, 127
      %v2955 = vpop.permute.xlu0 %2954
      %v2956 = vsel %vm1766, %v2909, %v2911
      %v2957 = vsel %vm1766, %v2913, %v2915
      %v2958 = vsel %vm1766, %v2917, %v2919
      %v2959 = vsel %vm1766, %v2921, %v2923
      %v2960 = vsel %vm1766, %v2925, %v2927
      %v2961 = vsel %vm1766, %v2929, %v2931
      %v2962 = vsel %vm1766, %v2933, %v2935
      %v2963 = vsel %vm1766, %v2937, %v2939
      %v2964 = vsel %vm1766, %v2941, %v2943
      %v2965 = vsel %vm1766, %v2945, %v2947
      %v2966 = vsel %vm1766, %v2949, %v2951
      %v2967 = vsel %vm1766, %v2953, %v2955
      %v2993 = vsel %vm1596, %v2897, 0
      %v2996 = vsel %vm1596, %v2899, 0
      %v2999 = vsel %vm1596, %v2901, 0
      %v3002 = vsel %vm1596, %v2903, 0
      %3004 = vmatprep.subr.bf16.mxu0 %v2939
      %3005 = vmatpush1.bf16.msra.mxu0 %v2963
      %3006 = vmatprep.subr.bf16.mxu0 %v2935
      %3007 = vmatpush1.bf16.msra.mxu0 %v2962
      %3008 = vmatprep.subr.bf16.mxu0 %v2931
      %3009 = vmatpush1.bf16.msra.mxu0 %v2961
      %3010 = vmatprep.subr.bf16.mxu0 %v2927
      %3011 = vmatpush1.bf16.msra.mxu0 %v2960
      %3012 = vmatprep.subr.bf16.mxu0 %v2923
      %3013 = vmatpush1.bf16.msra.mxu0 %v2959
      %3014 = vmatprep.subr.bf16.mxu0 %v2919
      %3015 = vmatpush1.bf16.msra.mxu0 %v2958
      %3016 = vmatprep.subr.bf16.mxu0 %v2915
      %3017 = vmatpush1.bf16.msra.mxu0 %v2957
      %3018 = vmatprep.subr.bf16.mxu0 %v2911
      %3019 = vmatpush1.bf16.msra.mxu0 %v2956
      %3020 = vmatprep.subr.bf16.mxu0 0
      %3021 = vmatpush2.bf16.msra.mxu0 0
      %3022 = vmatprep.subr.bf16.mxu0 0
      %3023 = vmatpush2.bf16.msra.mxu0 0
      %3024 = vmatprep.subr.bf16.mxu0 0
      %3025 = vmatpush2.bf16.msra.mxu0 0
      %3026 = vmatprep.subr.bf16.mxu0 0
      %3027 = vmatpush2.bf16.msra.mxu0 0
      %3028 = vmatprep.subr.bf16.mxu0 %v2955
      %3029 = vmatpush2.bf16.msra.mxu0 %v2967
      %3030 = vmatprep.subr.bf16.mxu0 %v2951
      %3031 = vmatpush2.bf16.msra.mxu0 %v2966
      %3032 = vmatprep.subr.bf16.mxu0 %v2947
      %3033 = vmatpush2.bf16.msra.mxu0 %v2965
      %3034 = vmatprep.subr.bf16.mxu0 %v2943
      %3035 = vmatpush2.bf16.msra.mxu0 %v2964
      %3036 = vmatprep.mubr.bf16.mxu0 %v2993
      %3037 = vmatmul.mubr.bf16.gmra.mxu0 %v2896
      %v3038 = vpop.f32.mrf.mxu0
      %v3039 = vadd.f32 %v2834, %v3038
      %v3040 = vpop.f32.mrf.mxu0
      %v3041 = vadd.f32 %v2836, %v3040
      %v3042 = vpop.f32.mrf.mxu0
      %v3043 = vadd.f32 %v2838, %v3042
      %v3044 = vpop.f32.mrf.mxu0
      %v3045 = vadd.f32 %v2840, %v3044
      %3046 = vmatprep.mubr.bf16.mxu0 %v2996
      %3047 = vmatmul.mubr.bf16.gmra.mxu0 %v2898
      %v3048 = vpop.f32.mrf.mxu0
      %v3049 = vadd.f32 %v2844, %v3048
      %v3050 = vpop.f32.mrf.mxu0
      %v3051 = vadd.f32 %v2846, %v3050
      %v3052 = vpop.f32.mrf.mxu0
      %v3053 = vadd.f32 %v2848, %v3052
      %v3054 = vpop.f32.mrf.mxu0
      %v3055 = vadd.f32 %v2850, %v3054
      %3056 = vmatprep.mubr.bf16.mxu0 %v2999
      %3057 = vmatmul.mubr.bf16.gmra.mxu0 %v2900
      %v3058 = vpop.f32.mrf.mxu0
      %v3059 = vadd.f32 %v2854, %v3058
      %v3060 = vpop.f32.mrf.mxu0
      %v3061 = vadd.f32 %v2856, %v3060
      %v3062 = vpop.f32.mrf.mxu0
      %v3063 = vadd.f32 %v2858, %v3062
      %v3064 = vpop.f32.mrf.mxu0
      %v3065 = vadd.f32 %v2860, %v3064
      %3066 = vmatprep.mubr.bf16.mxu0 %v3002
      %3067 = vmatmul.mubr.bf16.gmra.mxu0 %v2902
      %v3068 = vpop.f32.mrf.mxu0
      %v3069 = vadd.f32 %v2864, %v3068
      %v3070 = vpop.f32.mrf.mxu0
      %v3071 = vadd.f32 %v2866, %v3070
      %v3072 = vpop.f32.mrf.mxu0
      %v3073 = vadd.f32 %v2868, %v3072
      %v3074 = vpop.f32.mrf.mxu0
      %v3075 = vadd.f32 %v2870, %v3074
      %3076 = vdwg.mxu0
      %v3077 = vld [vmem:[%s7 + $0xc] sm:$0xff]
      %v3078 = vld [vmem:[%s7 + $0x20] sm:$0xff]
      %v3079 = vld [vmem:[%s7 + $0x34] sm:$0xff]
      %v3080 = vld [vmem:[%s7 + $0x48] sm:$0xff]
      %v3081 = vld [vmem:[%s7 + $0x5c] sm:$0xff]
      %v3082 = vld [vmem:[%s7 + $0x70] sm:$0xff]
      %v3083 = vld [vmem:[%s7 + $0x84] sm:$0xff]
      %v3084 = vld [vmem:[%s7 + $0x98] sm:$0xff]
      %v3093 = vunpack.c.l.b16 %v3077
      %v3094 = vunpack.c.h.b16 %v3077
      %v3095 = vunpack.c.l.b16 %v3078
      %v3096 = vunpack.c.h.b16 %v3078
      %v3097 = vunpack.c.l.b16 %v3079
      %v3098 = vunpack.c.h.b16 %v3079
      %v3099 = vunpack.c.l.b16 %v3080
      %v3100 = vunpack.c.h.b16 %v3080
      %v3101 = vunpack.c.l.b16 %v3081
      %v3102 = vunpack.c.h.b16 %v3081
      %v3103 = vunpack.c.l.b16 %v3082
      %v3104 = vunpack.c.h.b16 %v3082
      %v3105 = vunpack.c.l.b16 %v3083
      %v3106 = vunpack.c.h.b16 %v3083
      %v3107 = vunpack.c.l.b16 %v3084
      %v3108 = vunpack.c.h.b16 %v3084
      %v3109 = vpack.c.b16 %v3095, %v3093
      %v3110 = vpack.c.b16 %v3096, %v3094
      %v3111 = vpack.c.b16 %v3099, %v3097
      %v3112 = vpack.c.b16 %v3100, %v3098
      %v3113 = vpack.c.b16 %v3103, %v3101
      %v3114 = vpack.c.b16 %v3104, %v3102
      %v3115 = vpack.c.b16 %v3107, %v3105
      %v3116 = vpack.c.b16 %v3108, %v3106
      %3121 = vrot.lane.b32.xlu0 %v2679, 91
      %v3122 = vpop.permute.xlu0 %3121
      %3123 = vrot.lane.b32.xlu0 %v2680, 91
      %v3124 = vpop.permute.xlu0 %3123
      %3125 = vrot.lane.b32.xlu0 %v2681, 91
      %v3126 = vpop.permute.xlu0 %3125
      %3127 = vrot.lane.b32.xlu0 %v2682, 91
      %v3128 = vpop.permute.xlu0 %3127
      %3129 = vrot.lane.b32.xlu0 %v2683, 91
      %v3130 = vpop.permute.xlu0 %3129
      %3131 = vrot.lane.b32.xlu0 %v2684, 91
      %v3132 = vpop.permute.xlu0 %3131
      %3133 = vrot.lane.b32.xlu0 %v2685, 91
      %v3134 = vpop.permute.xlu0 %3133
      %3135 = vrot.lane.b32.xlu0 %v2686, 91
      %v3136 = vpop.permute.xlu0 %3135
      %3137 = vrot.lane.b32.xlu0 %v2687, 91
      %v3138 = vpop.permute.xlu0 %3137
      %3139 = vrot.lane.b32.xlu0 %v2688, 91
      %v3140 = vpop.permute.xlu0 %3139
      %3141 = vrot.lane.b32.xlu0 %v2689, 91
      %v3142 = vpop.permute.xlu0 %3141
      %3143 = vrot.lane.b32.xlu0 %v2690, 91
      %v3144 = vpop.permute.xlu0 %3143
      %3145 = vrot.lane.b32.xlu0 %v2691, 91
      %v3146 = vpop.permute.xlu0 %3145
      %3147 = vrot.lane.b32.xlu0 %v2692, 91
      %v3148 = vpop.permute.xlu0 %3147
      %3149 = vrot.lane.b32.xlu0 %v2693, 91
      %v3150 = vpop.permute.xlu0 %3149
      %3151 = vrot.lane.b32.xlu0 %v2694, 91
      %v3152 = vpop.permute.xlu0 %3151
      %3153 = vrot.lane.b32.xlu0 %v2695, 91
      %v3154 = vpop.permute.xlu0 %3153
      %3155 = vrot.lane.b32.xlu0 %v2696, 91
      %v3156 = vpop.permute.xlu0 %3155
      %3157 = vrot.lane.b32.xlu0 %v2697, 91
      %v3158 = vpop.permute.xlu0 %3157
      %3159 = vrot.lane.b32.xlu0 %v2698, 91
      %v3160 = vpop.permute.xlu0 %3159
      %3161 = vrot.lane.b32.xlu0 %v2699, 91
      %v3162 = vpop.permute.xlu0 %3161
      %3163 = vrot.lane.b32.xlu0 %v2700, 91
      %v3164 = vpop.permute.xlu0 %3163
      %3165 = vrot.lane.b32.xlu0 %v2701, 91
      %v3166 = vpop.permute.xlu0 %3165
      %3167 = vrot.lane.b32.xlu0 %v2702, 91
      %v3168 = vpop.permute.xlu0 %3167
      %v3169 = vsel %vm947, %v3122, %v3124
      %v3170 = vsel %vm947, %v3126, %v3128
      %v3171 = vsel %vm947, %v3130, %v3132
      %v3172 = vsel %vm947, %v3134, %v3136
      %v3173 = vsel %vm947, %v3138, %v3140
      %v3174 = vsel %vm947, %v3142, %v3144
      %v3175 = vsel %vm947, %v3146, %v3148
      %v3176 = vsel %vm947, %v3150, %v3152
      %v3177 = vsel %vm947, %v3154, %v3156
      %v3178 = vsel %vm947, %v3158, %v3160
      %v3179 = vsel %vm947, %v3162, %v3164
      %v3180 = vsel %vm947, %v3166, %v3168
      %v3206 = vsel %vm1596, %v3110, 0
      %v3209 = vsel %vm1596, %v3112, 0
      %v3212 = vsel %vm1596, %v3114, 0
      %v3215 = vsel %vm1596, %v3116, 0
      %3217 = vmatprep.subr.bf16.mxu0 %v3152
      %3218 = vmatpush1.bf16.msra.mxu0 %v3176
      %3219 = vmatprep.subr.bf16.mxu0 %v3148
      %3220 = vmatpush1.bf16.msra.mxu0 %v3175
      %3221 = vmatprep.subr.bf16.mxu0 %v3144
      %3222 = vmatpush1.bf16.msra.mxu0 %v3174
      %3223 = vmatprep.subr.bf16.mxu0 %v3140
      %3224 = vmatpush1.bf16.msra.mxu0 %v3173
      %3225 = vmatprep.subr.bf16.mxu0 %v3136
      %3226 = vmatpush1.bf16.msra.mxu0 %v3172
      %3227 = vmatprep.subr.bf16.mxu0 %v3132
      %3228 = vmatpush1.bf16.msra.mxu0 %v3171
      %3229 = vmatprep.subr.bf16.mxu0 %v3128
      %3230 = vmatpush1.bf16.msra.mxu0 %v3170
      %3231 = vmatprep.subr.bf16.mxu0 %v3124
      %3232 = vmatpush1.bf16.msra.mxu0 %v3169
      %3233 = vmatprep.subr.bf16.mxu0 0
      %3234 = vmatpush2.bf16.msra.mxu0 0
      %3235 = vmatprep.subr.bf16.mxu0 0
      %3236 = vmatpush2.bf16.msra.mxu0 0
      %3237 = vmatprep.subr.bf16.mxu0 0
      %3238 = vmatpush2.bf16.msra.mxu0 0
      %3239 = vmatprep.subr.bf16.mxu0 0
      %3240 = vmatpush2.bf16.msra.mxu0 0
      %3241 = vmatprep.subr.bf16.mxu0 %v3168
      %3242 = vmatpush2.bf16.msra.mxu0 %v3180
      %3243 = vmatprep.subr.bf16.mxu0 %v3164
      %3244 = vmatpush2.bf16.msra.mxu0 %v3179
      %3245 = vmatprep.subr.bf16.mxu0 %v3160
      %3246 = vmatpush2.bf16.msra.mxu0 %v3178
      %3247 = vmatprep.subr.bf16.mxu0 %v3156
      %3248 = vmatpush2.bf16.msra.mxu0 %v3177
      %3249 = vmatprep.mubr.bf16.mxu0 %v3206
      %3250 = vmatmul.mubr.bf16.gmra.mxu0 %v3109
      %v3251 = vpop.f32.mrf.mxu0
      %v3252 = vadd.f32 0.0, %v3251
      %v3253 = vpop.f32.mrf.mxu0
      %v3254 = vadd.f32 0.0, %v3253
      %v3255 = vpop.f32.mrf.mxu0
      %v3256 = vadd.f32 0.0, %v3255
      %v3257 = vpop.f32.mrf.mxu0
      %v3258 = vadd.f32 0.0, %v3257
      %3259 = vmatprep.mubr.bf16.mxu0 %v3209
      %3260 = vmatmul.mubr.bf16.gmra.mxu0 %v3111
      %v3261 = vpop.f32.mrf.mxu0
      %v3262 = vadd.f32 0.0, %v3261
      %v3263 = vpop.f32.mrf.mxu0
      %v3264 = vadd.f32 0.0, %v3263
      %v3265 = vpop.f32.mrf.mxu0
      %v3266 = vadd.f32 0.0, %v3265
      %v3267 = vpop.f32.mrf.mxu0
      %v3268 = vadd.f32 0.0, %v3267
      %3269 = vmatprep.mubr.bf16.mxu0 %v3212
      %3270 = vmatmul.mubr.bf16.gmra.mxu0 %v3113
      %v3271 = vpop.f32.mrf.mxu0
      %v3272 = vadd.f32 0.0, %v3271
      %v3273 = vpop.f32.mrf.mxu0
      %v3274 = vadd.f32 0.0, %v3273
      %v3275 = vpop.f32.mrf.mxu0
      %v3276 = vadd.f32 0.0, %v3275
      %v3277 = vpop.f32.mrf.mxu0
      %v3278 = vadd.f32 0.0, %v3277
      %3279 = vmatprep.mubr.bf16.mxu0 %v3215
      %3280 = vmatmul.mubr.bf16.gmra.mxu0 %v3115
      %v3281 = vpop.f32.mrf.mxu0
      %v3282 = vadd.f32 0.0, %v3281
      %v3283 = vpop.f32.mrf.mxu0
      %v3284 = vadd.f32 0.0, %v3283
      %v3285 = vpop.f32.mrf.mxu0
      %v3286 = vadd.f32 0.0, %v3285
      %v3287 = vpop.f32.mrf.mxu0
      %v3288 = vadd.f32 0.0, %v3287
      %3289 = vdwg.mxu0
      %v3290 = vadd.f32 %v3039, %v3252
      %v3291 = vadd.f32 %v3041, %v3254
      %v3292 = vadd.f32 %v3043, %v3256
      %v3293 = vadd.f32 %v3045, %v3258
      %v3294 = vadd.f32 %v3049, %v3262
      %v3295 = vadd.f32 %v3051, %v3264
      %v3296 = vadd.f32 %v3053, %v3266
      %v3297 = vadd.f32 %v3055, %v3268
      %v3298 = vadd.f32 %v3059, %v3272
      %v3299 = vadd.f32 %v3061, %v3274
      %v3300 = vadd.f32 %v3063, %v3276
      %v3301 = vadd.f32 %v3065, %v3278
      %v3302 = vadd.f32 %v3069, %v3282
      %v3303 = vadd.f32 %v3071, %v3284
      %v3304 = vadd.f32 %v3073, %v3286
      %v3305 = vadd.f32 %v3075, %v3288
      %v3306 = vld [vmem:[%s8] sm:$0xff]
      %v3307 = vld [vmem:[%s8 + $0x8] sm:$0xff]
      %v3308 = vld [vmem:[%s8 + $0x10] sm:$0xff]
      %v3309 = vld [vmem:[%s8 + $0x18] sm:$0xff]
      %v3310 = vld [vmem:[%s8 + $0x20] sm:$0xff]
      %v3311 = vld [vmem:[%s8 + $0x28] sm:$0xff]
      %v3312 = vld [vmem:[%s8 + $0x30] sm:$0xff]
      %v3313 = vld [vmem:[%s8 + $0x38] sm:$0xff]
      %3315 = vset.pattern.permute.xlu0 0
      %3316 = vperm.xlu0 %3315, %v3306
      %v3317 = vpop.permute.xlu0 %3316
      %3320 = vset.pattern.permute.xlu0 0
      %3321 = vperm.xlu0 %3320, %v3307
      %v3322 = vpop.permute.xlu0 %3321
      %3325 = vset.pattern.permute.xlu0 0
      %3326 = vperm.xlu0 %3325, %v3308
      %v3327 = vpop.permute.xlu0 %3326
      %3330 = vset.pattern.permute.xlu0 0
      %3331 = vperm.xlu0 %3330, %v3309
      %v3332 = vpop.permute.xlu0 %3331
      %3335 = vset.pattern.permute.xlu0 0
      %3336 = vperm.xlu0 %3335, %v3310
      %v3337 = vpop.permute.xlu0 %3336
      %3340 = vset.pattern.permute.xlu0 0
      %3341 = vperm.xlu0 %3340, %v3311
      %v3342 = vpop.permute.xlu0 %3341
      %3345 = vset.pattern.permute.xlu0 0
      %3346 = vperm.xlu0 %3345, %v3312
      %v3347 = vpop.permute.xlu0 %3346
      %3350 = vset.pattern.permute.xlu0 0
      %3351 = vperm.xlu0 %3350, %v3313
      %v3352 = vpop.permute.xlu0 %3351
      %v3354 = vadd.f32 %v3290, %v3317
      %v3355 = vadd.f32 %v3291, %v3317
      %v3356 = vadd.f32 %v3292, %v3322
      %v3357 = vadd.f32 %v3293, %v3322
      %v3358 = vadd.f32 %v3294, %v3327
      %v3359 = vadd.f32 %v3295, %v3327
      %v3360 = vadd.f32 %v3296, %v3332
      %v3361 = vadd.f32 %v3297, %v3332
      %v3362 = vadd.f32 %v3298, %v3337
      %v3363 = vadd.f32 %v3299, %v3337
      %v3364 = vadd.f32 %v3300, %v3342
      %v3365 = vadd.f32 %v3301, %v3342
      %v3366 = vadd.f32 %v3302, %v3347
      %v3367 = vadd.f32 %v3303, %v3347
      %v3368 = vadd.f32 %v3304, %v3352
      %v3369 = vadd.f32 %v3305, %v3352
      %v3370 = vunpack.c.l.bf16 %v1097
      %v3371 = vunpack.c.l.bf16 %v1098
      %v3372 = vunpack.c.h.bf16 %v1097
      %v3373 = vunpack.c.h.bf16 %v1098
      %v3374 = vunpack.c.l.bf16 %v1099
      %v3375 = vunpack.c.l.bf16 %v1100
      %v3376 = vunpack.c.h.bf16 %v1099
      %v3377 = vunpack.c.h.bf16 %v1100
      %v3378 = vunpack.c.l.bf16 %v1101
      %v3379 = vunpack.c.l.bf16 %v1102
      %v3380 = vunpack.c.h.bf16 %v1101
      %v3381 = vunpack.c.h.bf16 %v1102
      %v3382 = vunpack.c.l.bf16 %v1103
      %v3383 = vunpack.c.l.bf16 %v1104
      %v3384 = vunpack.c.h.bf16 %v1103
      %v3385 = vunpack.c.h.bf16 %v1104
      %3402 = vrot.lane.b32.xlu0 %v3370, 92
      %v3403 = vpop.permute.xlu0 %3402
      %3404 = vrot.lane.b32.xlu0 %v3371, 92
      %v3405 = vpop.permute.xlu0 %3404
      %3406 = vrot.lane.b32.xlu0 %v3372, 92
      %v3407 = vpop.permute.xlu0 %3406
      %3408 = vrot.lane.b32.xlu0 %v3373, 92
      %v3409 = vpop.permute.xlu0 %3408
      %3410 = vrot.lane.b32.xlu0 %v3374, 92
      %v3411 = vpop.permute.xlu0 %3410
      %3412 = vrot.lane.b32.xlu0 %v3375, 92
      %v3413 = vpop.permute.xlu0 %3412
      %3414 = vrot.lane.b32.xlu0 %v3376, 92
      %v3415 = vpop.permute.xlu0 %3414
      %3416 = vrot.lane.b32.xlu0 %v3377, 92
      %v3417 = vpop.permute.xlu0 %3416
      %3418 = vrot.lane.b32.xlu0 %v3378, 92
      %v3419 = vpop.permute.xlu0 %3418
      %3420 = vrot.lane.b32.xlu0 %v3379, 92
      %v3421 = vpop.permute.xlu0 %3420
      %3422 = vrot.lane.b32.xlu0 %v3380, 92
      %v3423 = vpop.permute.xlu0 %3422
      %3424 = vrot.lane.b32.xlu0 %v3381, 92
      %v3425 = vpop.permute.xlu0 %3424
      %3426 = vrot.lane.b32.xlu0 %v3382, 92
      %v3427 = vpop.permute.xlu0 %3426
      %3428 = vrot.lane.b32.xlu0 %v3383, 92
      %v3429 = vpop.permute.xlu0 %3428
      %3430 = vrot.lane.b32.xlu0 %v3384, 92
      %v3431 = vpop.permute.xlu0 %3430
      %3432 = vrot.lane.b32.xlu0 %v3385, 92
      %v3433 = vpop.permute.xlu0 %3432
      %vm3434 = vcmask 752640
      %v3435 = vsel %vm3434, %v3403, %v3405
      %v3436 = vsel %vm3434, %v3407, %v3409
      %v3437 = vsel %vm3434, %v3411, %v3413
      %v3438 = vsel %vm3434, %v3415, %v3417
      %v3439 = vsel %vm3434, %v3419, %v3421
      %v3440 = vsel %vm3434, %v3423, %v3425
      %v3441 = vsel %vm3434, %v3427, %v3429
      %v3442 = vsel %vm3434, %v3431, %v3433
      %v3459 = vadd.f32 %v3354, %v3435
      %v3460 = vadd.f32 %v3355, %v3405
      %v3461 = vadd.f32 %v3356, %v3436
      %v3462 = vadd.f32 %v3357, %v3409
      %v3463 = vadd.f32 %v3358, %v3437
      %v3464 = vadd.f32 %v3359, %v3413
      %v3465 = vadd.f32 %v3360, %v3438
      %v3466 = vadd.f32 %v3361, %v3417
      %v3467 = vadd.f32 %v3362, %v3439
      %v3468 = vadd.f32 %v3363, %v3421
      %v3469 = vadd.f32 %v3364, %v3440
      %v3470 = vadd.f32 %v3365, %v3425
      %v3471 = vadd.f32 %v3366, %v3441
      %v3472 = vadd.f32 %v3367, %v3429
      %v3473 = vadd.f32 %v3368, %v3442
      %v3474 = vadd.f32 %v3369, %v3433
      %v3475 = vsel %vm1079, %v3459, 0.0
      %v3476 = vsel %vm1080, %v3460, 0.0
      %v3477 = vsel %vm1079, %v3461, 0.0
      %v3478 = vsel %vm1080, %v3462, 0.0
      %v3479 = vsel %vm1079, %v3463, 0.0
      %v3480 = vsel %vm1080, %v3464, 0.0
      %v3481 = vsel %vm1079, %v3465, 0.0
      %v3482 = vsel %vm1080, %v3466, 0.0
      %v3483 = vsel %vm1079, %v3467, 0.0
      %v3484 = vsel %vm1080, %v3468, 0.0
      %v3485 = vsel %vm1079, %v3469, 0.0
      %v3486 = vsel %vm1080, %v3470, 0.0
      %v3487 = vsel %vm1079, %v3471, 0.0
      %v3488 = vsel %vm1080, %v3472, 0.0
      %v3489 = vsel %vm1079, %v3473, 0.0
      %v3490 = vsel %vm1080, %v3474, 0.0
      %v3491 = vpack.c.bf16 %v3477, %v3475
      %v3492 = vpack.c.bf16 %v3478, %v3476
      %v3493 = vpack.c.bf16 %v3481, %v3479
      %v3494 = vpack.c.bf16 %v3482, %v3480
      %v3495 = vpack.c.bf16 %v3485, %v3483
      %v3496 = vpack.c.bf16 %v3486, %v3484
      %v3497 = vpack.c.bf16 %v3489, %v3487
      %v3498 = vpack.c.bf16 %v3490, %v3488
      %v3507 = vunpack.c.l.b16 %v3491
      %v3508 = vunpack.c.l.b16 %v3492
      %v3509 = vunpack.c.h.b16 %v3491
      %v3510 = vunpack.c.h.b16 %v3492
      %v3511 = vunpack.c.l.b16 %v3493
      %v3512 = vunpack.c.l.b16 %v3494
      %v3513 = vunpack.c.h.b16 %v3493
      %v3514 = vunpack.c.h.b16 %v3494
      %v3515 = vunpack.c.l.b16 %v3495
      %v3516 = vunpack.c.l.b16 %v3496
      %v3517 = vunpack.c.h.b16 %v3495
      %v3518 = vunpack.c.h.b16 %v3496
      %v3519 = vunpack.c.l.b16 %v3497
      %v3520 = vunpack.c.l.b16 %v3498
      %v3521 = vunpack.c.h.b16 %v3497
      %v3522 = vunpack.c.h.b16 %v3498
      %v3523 = vpack.c.b16 %v3508, %v3507
      %v3524 = vpack.c.b16 %v3510, %v3509
      %v3525 = vpack.c.b16 %v3512, %v3511
      %v3526 = vpack.c.b16 %v3514, %v3513
      %v3527 = vpack.c.b16 %v3516, %v3515
      %v3528 = vpack.c.b16 %v3518, %v3517
      %v3529 = vpack.c.b16 %v3520, %v3519
      %v3530 = vpack.c.b16 %v3522, %v3521
      %3531 = vrot.lane.b32.xlu0 %v3523, 2
      %v3532 = vpop.permute.xlu0 %3531
      %3533 = vrot.lane.b32.xlu0 %v3524, 2
      %v3534 = vpop.permute.xlu0 %3533
      %3535 = vrot.lane.b32.xlu0 %v3525, 2
      %v3536 = vpop.permute.xlu0 %3535
      %3537 = vrot.lane.b32.xlu0 %v3526, 2
      %v3538 = vpop.permute.xlu0 %3537
      %3539 = vrot.lane.b32.xlu0 %v3527, 2
      %v3540 = vpop.permute.xlu0 %3539
      %3541 = vrot.lane.b32.xlu0 %v3528, 2
      %v3542 = vpop.permute.xlu0 %3541
      %3543 = vrot.lane.b32.xlu0 %v3529, 2
      %v3544 = vpop.permute.xlu0 %3543
      %3545 = vrot.lane.b32.xlu0 %v3530, 2
      %v3546 = vpop.permute.xlu0 %3545
      %v3547 = vrot.slane %v3532, 4
      %v3548 = vrot.slane %v3534, 4
      %v3549 = vrot.slane %v3536, 4
      %v3550 = vrot.slane %v3538, 4
      %v3551 = vrot.slane %v3540, 4
      %v3552 = vrot.slane %v3542, 4
      %v3553 = vrot.slane %v3544, 4
      %v3554 = vrot.slane %v3546, 4
      %v3555 = vsel %vm601, %v3547, %v3532
      %v3556 = vsel %vm601, %v3548, %v3534
      %v3557 = vsel %vm601, %v3549, %v3536
      %v3558 = vsel %vm601, %v3550, %v3538
      %v3559 = vsel %vm601, %v3551, %v3540
      %v3560 = vsel %vm601, %v3552, %v3542
      %v3561 = vsel %vm601, %v3553, %v3544
      %v3562 = vsel %vm601, %v3554, %v3546
      %vm3571 = vcmask 441348
      %vm3572 = vmor %vm3571, %vm610
      %3573 = vst.msk [vmem:[#allocation2] sm:$0xff] %vm3572, %v3555
      %3574 = vst.msk [vmem:[#allocation2 + $0xc] sm:$0xff] %vm3572, %v3556
      %3575 = vst.msk [vmem:[#allocation2 + $0x18] sm:$0xff] %vm3572, %v3557
      %3576 = vst.msk [vmem:[#allocation2 + $0x24] sm:$0xff] %vm3572, %v3558
      %3577 = vst.msk [vmem:[#allocation2 + $0x30] sm:$0xff] %vm3572, %v3559
      %3578 = vst.msk [vmem:[#allocation2 + $0x3c] sm:$0xff] %vm3572, %v3560
      %3579 = vst.msk [vmem:[#allocation2 + $0x48] sm:$0xff] %vm3572, %v3561
      %3580 = vst.msk [vmem:[#allocation2 + $0x54] sm:$0xff] %vm3572, %v3562
      %3581 = vrot.lane.b32.xlu0 %v3523, 1
      %v3582 = vpop.permute.xlu0 %3581
      %3583 = vrot.lane.b32.xlu0 %v3524, 1
      %v3584 = vpop.permute.xlu0 %3583
      %3585 = vrot.lane.b32.xlu0 %v3525, 1
      %v3586 = vpop.permute.xlu0 %3585
      %3587 = vrot.lane.b32.xlu0 %v3526, 1
      %v3588 = vpop.permute.xlu0 %3587
      %3589 = vrot.lane.b32.xlu0 %v3527, 1
      %v3590 = vpop.permute.xlu0 %3589
      %3591 = vrot.lane.b32.xlu0 %v3528, 1
      %v3592 = vpop.permute.xlu0 %3591
      %3593 = vrot.lane.b32.xlu0 %v3529, 1
      %v3594 = vpop.permute.xlu0 %3593
      %3595 = vrot.lane.b32.xlu0 %v3530, 1
      %v3596 = vpop.permute.xlu0 %3595
      %v3597 = vrot.slane %v3582, 4
      %v3598 = vrot.slane %v3584, 4
      %v3599 = vrot.slane %v3586, 4
      %v3600 = vrot.slane %v3588, 4
      %v3601 = vrot.slane %v3590, 4
      %v3602 = vrot.slane %v3592, 4
      %v3603 = vrot.slane %v3594, 4
      %v3604 = vrot.slane %v3596, 4
      %v3605 = vsel %vm627, %v3597, %v3582
      %v3606 = vsel %vm627, %v3598, %v3584
      %v3607 = vsel %vm627, %v3599, %v3586
      %v3608 = vsel %vm627, %v3600, %v3588
      %v3609 = vsel %vm627, %v3601, %v3590
      %v3610 = vsel %vm627, %v3602, %v3592
      %v3611 = vsel %vm627, %v3603, %v3594
      %v3612 = vsel %vm627, %v3604, %v3596
      %vm3621 = vcmask 433156
      %vm3622 = vmor %vm3621, %vm636
      %3623 = vst.msk [vmem:[#allocation2 + $0x60] sm:$0xff] %vm3622, %v3605
      %3624 = vst.msk [vmem:[#allocation2 + $0x6c] sm:$0xff] %vm3622, %v3606
      %3625 = vst.msk [vmem:[#allocation2 + $0x78] sm:$0xff] %vm3622, %v3607
      %3626 = vst.msk [vmem:[#allocation2 + $0x84] sm:$0xff] %vm3622, %v3608
      %3627 = vst.msk [vmem:[#allocation2 + $0x90] sm:$0xff] %vm3622, %v3609
      %3628 = vst.msk [vmem:[#allocation2 + $0x9c] sm:$0xff] %vm3622, %v3610
      %3629 = vst.msk [vmem:[#allocation2 + $0xa8] sm:$0xff] %vm3622, %v3611
      %3630 = vst.msk [vmem:[#allocation2 + $0xb4] sm:$0xff] %vm3622, %v3612
      %vm3639 = vcmask 424964
      %vm3640 = vmor %vm3639, %vm1245
      %3641 = vst.msk [vmem:[#allocation2 + $0xc0] sm:$0xff] %vm3640, %v3523
      %3642 = vst.msk [vmem:[#allocation2 + $0xcc] sm:$0xff] %vm3640, %v3524
      %3643 = vst.msk [vmem:[#allocation2 + $0xd8] sm:$0xff] %vm3640, %v3525
      %3644 = vst.msk [vmem:[#allocation2 + $0xe4] sm:$0xff] %vm3640, %v3526
      %3645 = vst.msk [vmem:[#allocation2 + $0xf0] sm:$0xff] %vm3640, %v3527
      %3646 = vst.msk [vmem:[#allocation2 + $0xfc] sm:$0xff] %vm3640, %v3528
      %3647 = vst.msk [vmem:[#allocation2 + $0x108] sm:$0xff] %vm3640, %v3529
      %3648 = vst.msk [vmem:[#allocation2 + $0x114] sm:$0xff] %vm3640, %v3530
      // Predicated region
      $region81: #{effvsr_forward.1} parent=63 // pred_check
        %p3649 = pneg %p1256
      $region82: #{effvsr_forward.1} parent=63 // pred_check_branch
        %3651 = sbr.rel (%p3649) target = $region84
      $region83: #{effvsr_forward.1} parent=63 // pred_region
        %vm3652 = vcmask 158736
        %3653 = vst.msk [vmem:[#allocation2] sm:$0xf] %vm3652, 0
        %3654 = vst.msk [vmem:[#allocation2 + $0xc] sm:$0xf] %vm3652, 0
        %3655 = vst.msk [vmem:[#allocation2 + $0x18] sm:$0xf] %vm3652, 0
        %3656 = vst.msk [vmem:[#allocation2 + $0x24] sm:$0xf] %vm3652, 0
        %3657 = vst.msk [vmem:[#allocation2 + $0x30] sm:$0xf] %vm3652, 0
        %3658 = vst.msk [vmem:[#allocation2 + $0x3c] sm:$0xf] %vm3652, 0
        %3659 = vst.msk [vmem:[#allocation2 + $0x48] sm:$0xf] %vm3652, 0
        %3660 = vst.msk [vmem:[#allocation2 + $0x54] sm:$0xf] %vm3652, 0
        %vm3661 = vcmask 150536
        %3662 = vst.msk [vmem:[#allocation2 + $0x60] sm:$0xf] %vm3661, 0
        %3663 = vst.msk [vmem:[#allocation2 + $0x6c] sm:$0xf] %vm3661, 0
        %3664 = vst.msk [vmem:[#allocation2 + $0x78] sm:$0xf] %vm3661, 0
        %3665 = vst.msk [vmem:[#allocation2 + $0x84] sm:$0xf] %vm3661, 0
        %3666 = vst.msk [vmem:[#allocation2 + $0x90] sm:$0xf] %vm3661, 0
        %3667 = vst.msk [vmem:[#allocation2 + $0x9c] sm:$0xf] %vm3661, 0
        %3668 = vst.msk [vmem:[#allocation2 + $0xa8] sm:$0xf] %vm3661, 0
        %3669 = vst.msk [vmem:[#allocation2 + $0xb4] sm:$0xf] %vm3661, 0
        %vm3670 = vcmask 142336
        %3671 = vst.msk [vmem:[#allocation2 + $0xc0] sm:$0xf] %vm3670, 0
        %3672 = vst.msk [vmem:[#allocation2 + $0xcc] sm:$0xf] %vm3670, 0
        %3673 = vst.msk [vmem:[#allocation2 + $0xd8] sm:$0xf] %vm3670, 0
        %3674 = vst.msk [vmem:[#allocation2 + $0xe4] sm:$0xf] %vm3670, 0
        %3675 = vst.msk [vmem:[#allocation2 + $0xf0] sm:$0xf] %vm3670, 0
        %3676 = vst.msk [vmem:[#allocation2 + $0xfc] sm:$0xf] %vm3670, 0
        %3677 = vst.msk [vmem:[#allocation2 + $0x108] sm:$0xf] %vm3670, 0
        %3678 = vst.msk [vmem:[#allocation2 + $0x114] sm:$0xf] %vm3670, 0
      $region84: #{effvsr_forward.1} parent=63 // pred_fallthru
        _
      // Predicated region
      $region85: #{effvsr_forward.1} parent=63 // pred_check
        %p3679 = pneg %p1287
      $region86: #{effvsr_forward.1} parent=63 // pred_check_branch
        %3681 = sbr.rel (%p3679) target = $region88
      $region87: #{effvsr_forward.1} parent=63 // pred_region
        %vm3682 = vcmask 437536
        %3683 = vst.msk [vmem:[#allocation2 + $0x4] sm:$0xf] %vm3682, 0
        %3684 = vst.msk [vmem:[#allocation2 + $0x10] sm:$0xf] %vm3682, 0
        %3685 = vst.msk [vmem:[#allocation2 + $0x1c] sm:$0xf] %vm3682, 0
        %3686 = vst.msk [vmem:[#allocation2 + $0x28] sm:$0xf] %vm3682, 0
        %3687 = vst.msk [vmem:[#allocation2 + $0x34] sm:$0xf] %vm3682, 0
        %3688 = vst.msk [vmem:[#allocation2 + $0x40] sm:$0xf] %vm3682, 0
        %3689 = vst.msk [vmem:[#allocation2 + $0x4c] sm:$0xf] %vm3682, 0
        %3690 = vst.msk [vmem:[#allocation2 + $0x58] sm:$0xf] %vm3682, 0
        %vm3691 = vcmask 429336
        %3692 = vst.msk [vmem:[#allocation2 + $0x64] sm:$0xf] %vm3691, 0
        %3693 = vst.msk [vmem:[#allocation2 + $0x70] sm:$0xf] %vm3691, 0
        %3694 = vst.msk [vmem:[#allocation2 + $0x7c] sm:$0xf] %vm3691, 0
        %3695 = vst.msk [vmem:[#allocation2 + $0x88] sm:$0xf] %vm3691, 0
        %3696 = vst.msk [vmem:[#allocation2 + $0x94] sm:$0xf] %vm3691, 0
        %3697 = vst.msk [vmem:[#allocation2 + $0xa0] sm:$0xf] %vm3691, 0
        %3698 = vst.msk [vmem:[#allocation2 + $0xac] sm:$0xf] %vm3691, 0
        %3699 = vst.msk [vmem:[#allocation2 + $0xb8] sm:$0xf] %vm3691, 0
        %vm3700 = vcmask 421136
        %3701 = vst.msk [vmem:[#allocation2 + $0xc4] sm:$0xf] %vm3700, 0
        %3702 = vst.msk [vmem:[#allocation2 + $0xd0] sm:$0xf] %vm3700, 0
        %3703 = vst.msk [vmem:[#allocation2 + $0xdc] sm:$0xf] %vm3700, 0
        %3704 = vst.msk [vmem:[#allocation2 + $0xe8] sm:$0xf] %vm3700, 0
        %3705 = vst.msk [vmem:[#allocation2 + $0xf4] sm:$0xf] %vm3700, 0
        %3706 = vst.msk [vmem:[#allocation2 + $0x100] sm:$0xf] %vm3700, 0
        %3707 = vst.msk [vmem:[#allocation2 + $0x10c] sm:$0xf] %vm3700, 0
        %3708 = vst.msk [vmem:[#allocation2 + $0x118] sm:$0xf] %vm3700, 0
      $region88: #{effvsr_forward.1} parent=63 // pred_fallthru
        _
      %v3709 = vld [vmem:[%s9] sm:$0xff]
      %v3710 = vld [vmem:[%s9 + $0x14] sm:$0xff]
      %v3711 = vld [vmem:[%s9 + $0x28] sm:$0xff]
      %v3712 = vld [vmem:[%s9 + $0x3c] sm:$0xff]
      %v3713 = vld [vmem:[%s9 + $0x50] sm:$0xff]
      %v3714 = vld [vmem:[%s9 + $0x64] sm:$0xff]
      %v3715 = vld [vmem:[#allocation2] sm:$0xff]
      %v3716 = vld [vmem:[#allocation2 + $0xc] sm:$0xff]
      %v3717 = vld [vmem:[#allocation2 + $0x18] sm:$0xff]
      %v3718 = vld [vmem:[#allocation2 + $0x24] sm:$0xff]
      %v3719 = vld [vmem:[#allocation2 + $0x30] sm:$0xff]
      %v3720 = vld [vmem:[#allocation2 + $0x3c] sm:$0xff]
      %v3721 = vld [vmem:[#allocation2 + $0x48] sm:$0xff]
      %v3722 = vld [vmem:[#allocation2 + $0x54] sm:$0xff]
      %v3723 = vld [vmem:[#allocation2 + $0x60] sm:$0xff]
      %v3724 = vld [vmem:[#allocation2 + $0x6c] sm:$0xff]
      %v3725 = vld [vmem:[#allocation2 + $0x78] sm:$0xff]
      %v3726 = vld [vmem:[#allocation2 + $0x84] sm:$0xff]
      %v3727 = vld [vmem:[#allocation2 + $0x90] sm:$0xff]
      %v3728 = vld [vmem:[#allocation2 + $0x9c] sm:$0xff]
      %v3729 = vld [vmem:[#allocation2 + $0xa8] sm:$0xff]
      %v3730 = vld [vmem:[#allocation2 + $0xb4] sm:$0xff]
      %v3731 = vld [vmem:[#allocation2 + $0xc0] sm:$0xff]
      %v3732 = vld [vmem:[#allocation2 + $0xcc] sm:$0xff]
      %v3733 = vld [vmem:[#allocation2 + $0xd8] sm:$0xff]
      %v3734 = vld [vmem:[#allocation2 + $0xe4] sm:$0xff]
      %v3735 = vld [vmem:[#allocation2 + $0xf0] sm:$0xff]
      %v3736 = vld [vmem:[#allocation2 + $0xfc] sm:$0xff]
      %v3737 = vld [vmem:[#allocation2 + $0x108] sm:$0xff]
      %v3738 = vld [vmem:[#allocation2 + $0x114] sm:$0xff]
      %v3739 = vld [vmem:[%s9 + $0x4] sm:$0xff]
      %v3740 = vld [vmem:[%s9 + $0x18] sm:$0xff]
      %v3741 = vld [vmem:[%s9 + $0x2c] sm:$0xff]
      %v3742 = vld [vmem:[%s9 + $0x40] sm:$0xff]
      %v3743 = vld [vmem:[%s9 + $0x54] sm:$0xff]
      %v3744 = vld [vmem:[%s9 + $0x68] sm:$0xff]
      %v3751 = vunpack.c.l.b16 %v3739
      %v3752 = vunpack.c.h.b16 %v3739
      %v3753 = vunpack.c.l.b16 %v3740
      %v3754 = vunpack.c.h.b16 %v3740
      %v3755 = vunpack.c.l.b16 %v3741
      %v3756 = vunpack.c.h.b16 %v3741
      %v3757 = vunpack.c.l.b16 %v3742
      %v3758 = vunpack.c.h.b16 %v3742
      %v3759 = vunpack.c.l.b16 %v3743
      %v3760 = vunpack.c.h.b16 %v3743
      %v3761 = vunpack.c.l.b16 %v3744
      %v3762 = vunpack.c.h.b16 %v3744
      %v3763 = vpack.c.b16 %v3753, %v3751
      %v3764 = vpack.c.b16 %v3754, %v3752
      %v3765 = vpack.c.b16 %v3757, %v3755
      %v3766 = vpack.c.b16 %v3758, %v3756
      %v3767 = vpack.c.b16 %v3761, %v3759
      %v3768 = vpack.c.b16 %v3762, %v3760
      %3769 = vrot.lane.b32.xlu0 %v3763, 64
      %v3770 = vpop.permute.xlu0 %3769
      %3771 = vrot.lane.b32.xlu0 %v3764, 64
      %v3772 = vpop.permute.xlu0 %3771
      %3773 = vrot.lane.b32.xlu0 %v3765, 64
      %v3774 = vpop.permute.xlu0 %3773
      %3775 = vrot.lane.b32.xlu0 %v3766, 64
      %v3776 = vpop.permute.xlu0 %3775
      %3777 = vrot.lane.b32.xlu0 %v3767, 64
      %v3778 = vpop.permute.xlu0 %3777
      %3779 = vrot.lane.b32.xlu0 %v3768, 64
      %v3780 = vpop.permute.xlu0 %3779
      %v3781 = vsel %vm1406, %v3770, %v3772
      %v3782 = vsel %vm1406, %v3774, %v3776
      %v3783 = vsel %vm1406, %v3778, %v3780
      %v3811 = vunpack.c.l.b16 %v3715
      %v3812 = vunpack.c.h.b16 %v3715
      %v3813 = vunpack.c.l.b16 %v3716
      %v3814 = vunpack.c.h.b16 %v3716
      %v3815 = vunpack.c.l.b16 %v3717
      %v3816 = vunpack.c.h.b16 %v3717
      %v3817 = vunpack.c.l.b16 %v3718
      %v3818 = vunpack.c.h.b16 %v3718
      %v3819 = vunpack.c.l.b16 %v3719
      %v3820 = vunpack.c.h.b16 %v3719
      %v3821 = vunpack.c.l.b16 %v3720
      %v3822 = vunpack.c.h.b16 %v3720
      %v3823 = vunpack.c.l.b16 %v3721
      %v3824 = vunpack.c.h.b16 %v3721
      %v3825 = vunpack.c.l.b16 %v3722
      %v3826 = vunpack.c.h.b16 %v3722
      %v3827 = vunpack.c.l.b16 %v3723
      %v3828 = vunpack.c.h.b16 %v3723
      %v3829 = vunpack.c.l.b16 %v3724
      %v3830 = vunpack.c.h.b16 %v3724
      %v3831 = vunpack.c.l.b16 %v3725
      %v3832 = vunpack.c.h.b16 %v3725
      %v3833 = vunpack.c.l.b16 %v3726
      %v3834 = vunpack.c.h.b16 %v3726
      %v3835 = vunpack.c.l.b16 %v3727
      %v3836 = vunpack.c.h.b16 %v3727
      %v3837 = vunpack.c.l.b16 %v3728
      %v3838 = vunpack.c.h.b16 %v3728
      %v3839 = vunpack.c.l.b16 %v3729
      %v3840 = vunpack.c.h.b16 %v3729
      %v3841 = vunpack.c.l.b16 %v3730
      %v3842 = vunpack.c.h.b16 %v3730
      %v3843 = vunpack.c.l.b16 %v3731
      %v3844 = vunpack.c.h.b16 %v3731
      %v3845 = vunpack.c.l.b16 %v3732
      %v3846 = vunpack.c.h.b16 %v3732
      %v3847 = vunpack.c.l.b16 %v3733
      %v3848 = vunpack.c.h.b16 %v3733
      %v3849 = vunpack.c.l.b16 %v3734
      %v3850 = vunpack.c.h.b16 %v3734
      %v3851 = vunpack.c.l.b16 %v3735
      %v3852 = vunpack.c.h.b16 %v3735
      %v3853 = vunpack.c.l.b16 %v3736
      %v3854 = vunpack.c.h.b16 %v3736
      %v3855 = vunpack.c.l.b16 %v3737
      %v3856 = vunpack.c.h.b16 %v3737
      %v3857 = vunpack.c.l.b16 %v3738
      %v3858 = vunpack.c.h.b16 %v3738
      %v3859 = vpack.c.b16 %v3813, %v3811
      %v3860 = vpack.c.b16 %v3814, %v3812
      %v3861 = vpack.c.b16 %v3817, %v3815
      %v3862 = vpack.c.b16 %v3818, %v3816
      %v3863 = vpack.c.b16 %v3821, %v3819
      %v3864 = vpack.c.b16 %v3822, %v3820
      %v3865 = vpack.c.b16 %v3825, %v3823
      %v3866 = vpack.c.b16 %v3826, %v3824
      %v3867 = vpack.c.b16 %v3829, %v3827
      %v3868 = vpack.c.b16 %v3830, %v3828
      %v3869 = vpack.c.b16 %v3833, %v3831
      %v3870 = vpack.c.b16 %v3834, %v3832
      %v3871 = vpack.c.b16 %v3837, %v3835
      %v3872 = vpack.c.b16 %v3838, %v3836
      %v3873 = vpack.c.b16 %v3841, %v3839
      %v3874 = vpack.c.b16 %v3842, %v3840
      %v3875 = vpack.c.b16 %v3845, %v3843
      %v3876 = vpack.c.b16 %v3846, %v3844
      %v3877 = vpack.c.b16 %v3849, %v3847
      %v3878 = vpack.c.b16 %v3850, %v3848
      %v3879 = vpack.c.b16 %v3853, %v3851
      %v3880 = vpack.c.b16 %v3854, %v3852
      %v3881 = vpack.c.b16 %v3857, %v3855
      %v3882 = vpack.c.b16 %v3858, %v3856
      %3883 = vrot.lane.b32.xlu0 %v3859, 109
      %v3884 = vpop.permute.xlu0 %3883
      %3885 = vrot.lane.b32.xlu0 %v3860, 109
      %v3886 = vpop.permute.xlu0 %3885
      %3887 = vrot.lane.b32.xlu0 %v3861, 109
      %v3888 = vpop.permute.xlu0 %3887
      %3889 = vrot.lane.b32.xlu0 %v3862, 109
      %v3890 = vpop.permute.xlu0 %3889
      %3891 = vrot.lane.b32.xlu0 %v3863, 109
      %v3892 = vpop.permute.xlu0 %3891
      %3893 = vrot.lane.b32.xlu0 %v3864, 109
      %v3894 = vpop.permute.xlu0 %3893
      %3895 = vrot.lane.b32.xlu0 %v3865, 109
      %v3896 = vpop.permute.xlu0 %3895
      %3897 = vrot.lane.b32.xlu0 %v3866, 109
      %v3898 = vpop.permute.xlu0 %3897
      %3899 = vrot.lane.b32.xlu0 %v3867, 109
      %v3900 = vpop.permute.xlu0 %3899
      %3901 = vrot.lane.b32.xlu0 %v3868, 109
      %v3902 = vpop.permute.xlu0 %3901
      %3903 = vrot.lane.b32.xlu0 %v3869, 109
      %v3904 = vpop.permute.xlu0 %3903
      %3905 = vrot.lane.b32.xlu0 %v3870, 109
      %v3906 = vpop.permute.xlu0 %3905
      %3907 = vrot.lane.b32.xlu0 %v3871, 109
      %v3908 = vpop.permute.xlu0 %3907
      %3909 = vrot.lane.b32.xlu0 %v3872, 109
      %v3910 = vpop.permute.xlu0 %3909
      %3911 = vrot.lane.b32.xlu0 %v3873, 109
      %v3912 = vpop.permute.xlu0 %3911
      %3913 = vrot.lane.b32.xlu0 %v3874, 109
      %v3914 = vpop.permute.xlu0 %3913
      %3915 = vrot.lane.b32.xlu0 %v3875, 109
      %v3916 = vpop.permute.xlu0 %3915
      %3917 = vrot.lane.b32.xlu0 %v3876, 109
      %v3918 = vpop.permute.xlu0 %3917
      %3919 = vrot.lane.b32.xlu0 %v3877, 109
      %v3920 = vpop.permute.xlu0 %3919
      %3921 = vrot.lane.b32.xlu0 %v3878, 109
      %v3922 = vpop.permute.xlu0 %3921
      %3923 = vrot.lane.b32.xlu0 %v3879, 109
      %v3924 = vpop.permute.xlu0 %3923
      %3925 = vrot.lane.b32.xlu0 %v3880, 109
      %v3926 = vpop.permute.xlu0 %3925
      %3927 = vrot.lane.b32.xlu0 %v3881, 109
      %v3928 = vpop.permute.xlu0 %3927
      %3929 = vrot.lane.b32.xlu0 %v3882, 109
      %v3930 = vpop.permute.xlu0 %3929
      %v3931 = vsel %vm1559, %v3884, %v3886
      %v3932 = vsel %vm1559, %v3888, %v3890
      %v3933 = vsel %vm1559, %v3892, %v3894
      %v3934 = vsel %vm1559, %v3896, %v3898
      %v3935 = vsel %vm1559, %v3900, %v3902
      %v3936 = vsel %vm1559, %v3904, %v3906
      %v3937 = vsel %vm1559, %v3908, %v3910
      %v3938 = vsel %vm1559, %v3912, %v3914
      %v3939 = vsel %vm1559, %v3916, %v3918
      %v3940 = vsel %vm1559, %v3920, %v3922
      %v3941 = vsel %vm1559, %v3924, %v3926
      %v3942 = vsel %vm1559, %v3928, %v3930
      %v3968 = vsel %vm1596, %v3772, 0
      %v3971 = vsel %vm1596, %v3776, 0
      %v3974 = vsel %vm1596, %v3780, 0
      %3976 = vmatprep.subr.bf16.mxu0 %v3914
      %3977 = vmatpush1.bf16.msra.mxu0 %v3938
      %3978 = vmatprep.subr.bf16.mxu0 %v3910
      %3979 = vmatpush1.bf16.msra.mxu0 %v3937
      %3980 = vmatprep.subr.bf16.mxu0 %v3906
      %3981 = vmatpush1.bf16.msra.mxu0 %v3936
      %3982 = vmatprep.subr.bf16.mxu0 %v3902
      %3983 = vmatpush1.bf16.msra.mxu0 %v3935
      %3984 = vmatprep.subr.bf16.mxu0 %v3898
      %3985 = vmatpush1.bf16.msra.mxu0 %v3934
      %3986 = vmatprep.subr.bf16.mxu0 %v3894
      %3987 = vmatpush1.bf16.msra.mxu0 %v3933
      %3988 = vmatprep.subr.bf16.mxu0 %v3890
      %3989 = vmatpush1.bf16.msra.mxu0 %v3932
      %3990 = vmatprep.subr.bf16.mxu0 %v3886
      %3991 = vmatpush1.bf16.msra.mxu0 %v3931
      %3992 = vmatprep.subr.bf16.mxu0 0
      %3993 = vmatpush2.bf16.msra.mxu0 0
      %3994 = vmatprep.subr.bf16.mxu0 0
      %3995 = vmatpush2.bf16.msra.mxu0 0
      %3996 = vmatprep.subr.bf16.mxu0 0
      %3997 = vmatpush2.bf16.msra.mxu0 0
      %3998 = vmatprep.subr.bf16.mxu0 0
      %3999 = vmatpush2.bf16.msra.mxu0 0
      %4000 = vmatprep.subr.bf16.mxu0 %v3930
      %4001 = vmatpush2.bf16.msra.mxu0 %v3942
      %4002 = vmatprep.subr.bf16.mxu0 %v3926
      %4003 = vmatpush2.bf16.msra.mxu0 %v3941
      %4004 = vmatprep.subr.bf16.mxu0 %v3922
      %4005 = vmatpush2.bf16.msra.mxu0 %v3940
      %4006 = vmatprep.subr.bf16.mxu0 %v3918
      %4007 = vmatpush2.bf16.msra.mxu0 %v3939
      %4008 = vmatprep.mubr.bf16.mxu0 %v3968
      %4009 = vmatmul.mubr.bf16.gmra.mxu0 %v3781
      %v4010 = vpop.f32.mrf.mxu0
      %v4011 = vadd.f32 0.0, %v4010
      %v4012 = vpop.f32.mrf.mxu0
      %v4013 = vadd.f32 0.0, %v4012
      %v4014 = vpop.f32.mrf.mxu0
      %v4015 = vadd.f32 0.0, %v4014
      %v4016 = vpop.f32.mrf.mxu0
      %v4017 = vadd.f32 0.0, %v4016
      %4018 = vmatprep.mubr.bf16.mxu0 %v3971
      %4019 = vmatmul.mubr.bf16.gmra.mxu0 %v3782
      %v4020 = vpop.f32.mrf.mxu0
      %v4021 = vadd.f32 0.0, %v4020
      %v4022 = vpop.f32.mrf.mxu0
      %v4023 = vadd.f32 0.0, %v4022
      %v4024 = vpop.f32.mrf.mxu0
      %v4025 = vadd.f32 0.0, %v4024
      %v4026 = vpop.f32.mrf.mxu0
      %v4027 = vadd.f32 0.0, %v4026
      %4028 = vmatprep.mubr.bf16.mxu0 %v3974
      %4029 = vmatmul.mubr.bf16.gmra.mxu0 %v3783
      %v4030 = vpop.f32.mrf.mxu0
      %v4031 = vadd.f32 0.0, %v4030
      %v4032 = vpop.f32.mrf.mxu0
      %v4033 = vadd.f32 0.0, %v4032
      %v4034 = vpop.f32.mrf.mxu0
      %v4035 = vadd.f32 0.0, %v4034
      %v4036 = vpop.f32.mrf.mxu0
      %v4037 = vadd.f32 0.0, %v4036
      %4038 = vdwg.mxu0
      %v4045 = vunpack.c.l.b16 %v3709
      %v4046 = vunpack.c.h.b16 %v3709
      %v4047 = vunpack.c.l.b16 %v3710
      %v4048 = vunpack.c.h.b16 %v3710
      %v4049 = vunpack.c.l.b16 %v3711
      %v4050 = vunpack.c.h.b16 %v3711
      %v4051 = vunpack.c.l.b16 %v3712
      %v4052 = vunpack.c.h.b16 %v3712
      %v4053 = vunpack.c.l.b16 %v3713
      %v4054 = vunpack.c.h.b16 %v3713
      %v4055 = vunpack.c.l.b16 %v3714
      %v4056 = vunpack.c.h.b16 %v3714
      %v4057 = vpack.c.b16 %v4047, %v4045
      %v4058 = vpack.c.b16 %v4048, %v4046
      %v4059 = vpack.c.b16 %v4051, %v4049
      %v4060 = vpack.c.b16 %v4052, %v4050
      %v4061 = vpack.c.b16 %v4055, %v4053
      %v4062 = vpack.c.b16 %v4056, %v4054
      %4066 = vrot.lane.b32.xlu0 %v3859, 127
      %v4067 = vpop.permute.xlu0 %4066
      %4068 = vrot.lane.b32.xlu0 %v3860, 127
      %v4069 = vpop.permute.xlu0 %4068
      %4070 = vrot.lane.b32.xlu0 %v3861, 127
      %v4071 = vpop.permute.xlu0 %4070
      %4072 = vrot.lane.b32.xlu0 %v3862, 127
      %v4073 = vpop.permute.xlu0 %4072
      %4074 = vrot.lane.b32.xlu0 %v3863, 127
      %v4075 = vpop.permute.xlu0 %4074
      %4076 = vrot.lane.b32.xlu0 %v3864, 127
      %v4077 = vpop.permute.xlu0 %4076
      %4078 = vrot.lane.b32.xlu0 %v3865, 127
      %v4079 = vpop.permute.xlu0 %4078
      %4080 = vrot.lane.b32.xlu0 %v3866, 127
      %v4081 = vpop.permute.xlu0 %4080
      %4082 = vrot.lane.b32.xlu0 %v3867, 127
      %v4083 = vpop.permute.xlu0 %4082
      %4084 = vrot.lane.b32.xlu0 %v3868, 127
      %v4085 = vpop.permute.xlu0 %4084
      %4086 = vrot.lane.b32.xlu0 %v3869, 127
      %v4087 = vpop.permute.xlu0 %4086
      %4088 = vrot.lane.b32.xlu0 %v3870, 127
      %v4089 = vpop.permute.xlu0 %4088
      %4090 = vrot.lane.b32.xlu0 %v3871, 127
      %v4091 = vpop.permute.xlu0 %4090
      %4092 = vrot.lane.b32.xlu0 %v3872, 127
      %v4093 = vpop.permute.xlu0 %4092
      %4094 = vrot.lane.b32.xlu0 %v3873, 127
      %v4095 = vpop.permute.xlu0 %4094
      %4096 = vrot.lane.b32.xlu0 %v3874, 127
      %v4097 = vpop.permute.xlu0 %4096
      %4098 = vrot.lane.b32.xlu0 %v3875, 127
      %v4099 = vpop.permute.xlu0 %4098
      %4100 = vrot.lane.b32.xlu0 %v3876, 127
      %v4101 = vpop.permute.xlu0 %4100
      %4102 = vrot.lane.b32.xlu0 %v3877, 127
      %v4103 = vpop.permute.xlu0 %4102
      %4104 = vrot.lane.b32.xlu0 %v3878, 127
      %v4105 = vpop.permute.xlu0 %4104
      %4106 = vrot.lane.b32.xlu0 %v3879, 127
      %v4107 = vpop.permute.xlu0 %4106
      %4108 = vrot.lane.b32.xlu0 %v3880, 127
      %v4109 = vpop.permute.xlu0 %4108
      %4110 = vrot.lane.b32.xlu0 %v3881, 127
      %v4111 = vpop.permute.xlu0 %4110
      %4112 = vrot.lane.b32.xlu0 %v3882, 127
      %v4113 = vpop.permute.xlu0 %4112
      %v4114 = vsel %vm1766, %v4067, %v4069
      %v4115 = vsel %vm1766, %v4071, %v4073
      %v4116 = vsel %vm1766, %v4075, %v4077
      %v4117 = vsel %vm1766, %v4079, %v4081
      %v4118 = vsel %vm1766, %v4083, %v4085
      %v4119 = vsel %vm1766, %v4087, %v4089
      %v4120 = vsel %vm1766, %v4091, %v4093
      %v4121 = vsel %vm1766, %v4095, %v4097
      %v4122 = vsel %vm1766, %v4099, %v4101
      %v4123 = vsel %vm1766, %v4103, %v4105
      %v4124 = vsel %vm1766, %v4107, %v4109
      %v4125 = vsel %vm1766, %v4111, %v4113
      %v4151 = vsel %vm1596, %v4058, 0
      %v4154 = vsel %vm1596, %v4060, 0
      %v4157 = vsel %vm1596, %v4062, 0
      %4159 = vmatprep.subr.bf16.mxu0 %v4097
      %4160 = vmatpush1.bf16.msra.mxu0 %v4121
      %4161 = vmatprep.subr.bf16.mxu0 %v4093
      %4162 = vmatpush1.bf16.msra.mxu0 %v4120
      %4163 = vmatprep.subr.bf16.mxu0 %v4089
      %4164 = vmatpush1.bf16.msra.mxu0 %v4119
      %4165 = vmatprep.subr.bf16.mxu0 %v4085
      %4166 = vmatpush1.bf16.msra.mxu0 %v4118
      %4167 = vmatprep.subr.bf16.mxu0 %v4081
      %4168 = vmatpush1.bf16.msra.mxu0 %v4117
      %4169 = vmatprep.subr.bf16.mxu0 %v4077
      %4170 = vmatpush1.bf16.msra.mxu0 %v4116
      %4171 = vmatprep.subr.bf16.mxu0 %v4073
      %4172 = vmatpush1.bf16.msra.mxu0 %v4115
      %4173 = vmatprep.subr.bf16.mxu0 %v4069
      %4174 = vmatpush1.bf16.msra.mxu0 %v4114
      %4175 = vmatprep.subr.bf16.mxu0 0
      %4176 = vmatpush2.bf16.msra.mxu0 0
      %4177 = vmatprep.subr.bf16.mxu0 0
      %4178 = vmatpush2.bf16.msra.mxu0 0
      %4179 = vmatprep.subr.bf16.mxu0 0
      %4180 = vmatpush2.bf16.msra.mxu0 0
      %4181 = vmatprep.subr.bf16.mxu0 0
      %4182 = vmatpush2.bf16.msra.mxu0 0
      %4183 = vmatprep.subr.bf16.mxu0 %v4113
      %4184 = vmatpush2.bf16.msra.mxu0 %v4125
      %4185 = vmatprep.subr.bf16.mxu0 %v4109
      %4186 = vmatpush2.bf16.msra.mxu0 %v4124
      %4187 = vmatprep.subr.bf16.mxu0 %v4105
      %4188 = vmatpush2.bf16.msra.mxu0 %v4123
      %4189 = vmatprep.subr.bf16.mxu0 %v4101
      %4190 = vmatpush2.bf16.msra.mxu0 %v4122
      %4191 = vmatprep.mubr.bf16.mxu0 %v4151
      %4192 = vmatmul.mubr.bf16.gmra.mxu0 %v4057
      %v4193 = vpop.f32.mrf.mxu0
      %v4194 = vadd.f32 %v4011, %v4193
      %v4195 = vpop.f32.mrf.mxu0
      %v4196 = vadd.f32 %v4013, %v4195
      %v4197 = vpop.f32.mrf.mxu0
      %v4198 = vadd.f32 %v4015, %v4197
      %v4199 = vpop.f32.mrf.mxu0
      %v4200 = vadd.f32 %v4017, %v4199
      %4201 = vmatprep.mubr.bf16.mxu0 %v4154
      %4202 = vmatmul.mubr.bf16.gmra.mxu0 %v4059
      %v4203 = vpop.f32.mrf.mxu0
      %v4204 = vadd.f32 %v4021, %v4203
      %v4205 = vpop.f32.mrf.mxu0
      %v4206 = vadd.f32 %v4023, %v4205
      %v4207 = vpop.f32.mrf.mxu0
      %v4208 = vadd.f32 %v4025, %v4207
      %v4209 = vpop.f32.mrf.mxu0
      %v4210 = vadd.f32 %v4027, %v4209
      %4211 = vmatprep.mubr.bf16.mxu0 %v4157
      %4212 = vmatmul.mubr.bf16.gmra.mxu0 %v4061
      %v4213 = vpop.f32.mrf.mxu0
      %v4214 = vadd.f32 %v4031, %v4213
      %v4215 = vpop.f32.mrf.mxu0
      %v4216 = vadd.f32 %v4033, %v4215
      %v4217 = vpop.f32.mrf.mxu0
      %v4218 = vadd.f32 %v4035, %v4217
      %v4219 = vpop.f32.mrf.mxu0
      %v4220 = vadd.f32 %v4037, %v4219
      %4221 = vdwg.mxu0
      %v4222 = vld [vmem:[%s9 + $0xc] sm:$0xff]
      %v4223 = vld [vmem:[%s9 + $0x20] sm:$0xff]
      %v4224 = vld [vmem:[%s9 + $0x34] sm:$0xff]
      %v4225 = vld [vmem:[%s9 + $0x48] sm:$0xff]
      %v4226 = vld [vmem:[%s9 + $0x5c] sm:$0xff]
      %v4227 = vld [vmem:[%s9 + $0x70] sm:$0xff]
      %v4234 = vunpack.c.l.b16 %v4222
      %v4235 = vunpack.c.h.b16 %v4222
      %v4236 = vunpack.c.l.b16 %v4223
      %v4237 = vunpack.c.h.b16 %v4223
      %v4238 = vunpack.c.l.b16 %v4224
      %v4239 = vunpack.c.h.b16 %v4224
      %v4240 = vunpack.c.l.b16 %v4225
      %v4241 = vunpack.c.h.b16 %v4225
      %v4242 = vunpack.c.l.b16 %v4226
      %v4243 = vunpack.c.h.b16 %v4226
      %v4244 = vunpack.c.l.b16 %v4227
      %v4245 = vunpack.c.h.b16 %v4227
      %v4246 = vpack.c.b16 %v4236, %v4234
      %v4247 = vpack.c.b16 %v4237, %v4235
      %v4248 = vpack.c.b16 %v4240, %v4238
      %v4249 = vpack.c.b16 %v4241, %v4239
      %v4250 = vpack.c.b16 %v4244, %v4242
      %v4251 = vpack.c.b16 %v4245, %v4243
      %4255 = vrot.lane.b32.xlu0 %v3859, 91
      %v4256 = vpop.permute.xlu0 %4255
      %4257 = vrot.lane.b32.xlu0 %v3860, 91
      %v4258 = vpop.permute.xlu0 %4257
      %4259 = vrot.lane.b32.xlu0 %v3861, 91
      %v4260 = vpop.permute.xlu0 %4259
      %4261 = vrot.lane.b32.xlu0 %v3862, 91
      %v4262 = vpop.permute.xlu0 %4261
      %4263 = vrot.lane.b32.xlu0 %v3863, 91
      %v4264 = vpop.permute.xlu0 %4263
      %4265 = vrot.lane.b32.xlu0 %v3864, 91
      %v4266 = vpop.permute.xlu0 %4265
      %4267 = vrot.lane.b32.xlu0 %v3865, 91
      %v4268 = vpop.permute.xlu0 %4267
      %4269 = vrot.lane.b32.xlu0 %v3866, 91
      %v4270 = vpop.permute.xlu0 %4269
      %4271 = vrot.lane.b32.xlu0 %v3867, 91
      %v4272 = vpop.permute.xlu0 %4271
      %4273 = vrot.lane.b32.xlu0 %v3868, 91
      %v4274 = vpop.permute.xlu0 %4273
      %4275 = vrot.lane.b32.xlu0 %v3869, 91
      %v4276 = vpop.permute.xlu0 %4275
      %4277 = vrot.lane.b32.xlu0 %v3870, 91
      %v4278 = vpop.permute.xlu0 %4277
      %4279 = vrot.lane.b32.xlu0 %v3871, 91
      %v4280 = vpop.permute.xlu0 %4279
      %4281 = vrot.lane.b32.xlu0 %v3872, 91
      %v4282 = vpop.permute.xlu0 %4281
      %4283 = vrot.lane.b32.xlu0 %v3873, 91
      %v4284 = vpop.permute.xlu0 %4283
      %4285 = vrot.lane.b32.xlu0 %v3874, 91
      %v4286 = vpop.permute.xlu0 %4285
      %4287 = vrot.lane.b32.xlu0 %v3875, 91
      %v4288 = vpop.permute.xlu0 %4287
      %4289 = vrot.lane.b32.xlu0 %v3876, 91
      %v4290 = vpop.permute.xlu0 %4289
      %4291 = vrot.lane.b32.xlu0 %v3877, 91
      %v4292 = vpop.permute.xlu0 %4291
      %4293 = vrot.lane.b32.xlu0 %v3878, 91
      %v4294 = vpop.permute.xlu0 %4293
      %4295 = vrot.lane.b32.xlu0 %v3879, 91
      %v4296 = vpop.permute.xlu0 %4295
      %4297 = vrot.lane.b32.xlu0 %v3880, 91
      %v4298 = vpop.permute.xlu0 %4297
      %4299 = vrot.lane.b32.xlu0 %v3881, 91
      %v4300 = vpop.permute.xlu0 %4299
      %4301 = vrot.lane.b32.xlu0 %v3882, 91
      %v4302 = vpop.permute.xlu0 %4301
      %v4303 = vsel %vm947, %v4256, %v4258
      %v4304 = vsel %vm947, %v4260, %v4262
      %v4305 = vsel %vm947, %v4264, %v4266
      %v4306 = vsel %vm947, %v4268, %v4270
      %v4307 = vsel %vm947, %v4272, %v4274
      %v4308 = vsel %vm947, %v4276, %v4278
      %v4309 = vsel %vm947, %v4280, %v4282
      %v4310 = vsel %vm947, %v4284, %v4286
      %v4311 = vsel %vm947, %v4288, %v4290
      %v4312 = vsel %vm947, %v4292, %v4294
      %v4313 = vsel %vm947, %v4296, %v4298
      %v4314 = vsel %vm947, %v4300, %v4302
      %v4340 = vsel %vm1596, %v4247, 0
      %v4343 = vsel %vm1596, %v4249, 0
      %v4346 = vsel %vm1596, %v4251, 0
      %4348 = vmatprep.subr.bf16.mxu0 %v4286
      %4349 = vmatpush1.bf16.msra.mxu0 %v4310
      %4350 = vmatprep.subr.bf16.mxu0 %v4282
      %4351 = vmatpush1.bf16.msra.mxu0 %v4309
      %4352 = vmatprep.subr.bf16.mxu0 %v4278
      %4353 = vmatpush1.bf16.msra.mxu0 %v4308
      %4354 = vmatprep.subr.bf16.mxu0 %v4274
      %4355 = vmatpush1.bf16.msra.mxu0 %v4307
      %4356 = vmatprep.subr.bf16.mxu0 %v4270
      %4357 = vmatpush1.bf16.msra.mxu0 %v4306
      %4358 = vmatprep.subr.bf16.mxu0 %v4266
      %4359 = vmatpush1.bf16.msra.mxu0 %v4305
      %4360 = vmatprep.subr.bf16.mxu0 %v4262
      %4361 = vmatpush1.bf16.msra.mxu0 %v4304
      %4362 = vmatprep.subr.bf16.mxu0 %v4258
      %4363 = vmatpush1.bf16.msra.mxu0 %v4303
      %4364 = vmatprep.subr.bf16.mxu0 0
      %4365 = vmatpush2.bf16.msra.mxu0 0
      %4366 = vmatprep.subr.bf16.mxu0 0
      %4367 = vmatpush2.bf16.msra.mxu0 0
      %4368 = vmatprep.subr.bf16.mxu0 0
      %4369 = vmatpush2.bf16.msra.mxu0 0
      %4370 = vmatprep.subr.bf16.mxu0 0
      %4371 = vmatpush2.bf16.msra.mxu0 0
      %4372 = vmatprep.subr.bf16.mxu0 %v4302
      %4373 = vmatpush2.bf16.msra.mxu0 %v4314
      %4374 = vmatprep.subr.bf16.mxu0 %v4298
      %4375 = vmatpush2.bf16.msra.mxu0 %v4313
      %4376 = vmatprep.subr.bf16.mxu0 %v4294
      %4377 = vmatpush2.bf16.msra.mxu0 %v4312
      %4378 = vmatprep.subr.bf16.mxu0 %v4290
      %4379 = vmatpush2.bf16.msra.mxu0 %v4311
      %4380 = vmatprep.mubr.bf16.mxu0 %v4340
      %4381 = vmatmul.mubr.bf16.gmra.mxu0 %v4246
      %v4382 = vpop.f32.mrf.mxu0
      %v4383 = vadd.f32 0.0, %v4382
      %v4384 = vpop.f32.mrf.mxu0
      %v4385 = vadd.f32 0.0, %v4384
      %v4386 = vpop.f32.mrf.mxu0
      %v4387 = vadd.f32 0.0, %v4386
      %v4388 = vpop.f32.mrf.mxu0
      %v4389 = vadd.f32 0.0, %v4388
      %4390 = vmatprep.mubr.bf16.mxu0 %v4343
      %4391 = vmatmul.mubr.bf16.gmra.mxu0 %v4248
      %v4392 = vpop.f32.mrf.mxu0
      %v4393 = vadd.f32 0.0, %v4392
      %v4394 = vpop.f32.mrf.mxu0
      %v4395 = vadd.f32 0.0, %v4394
      %v4396 = vpop.f32.mrf.mxu0
      %v4397 = vadd.f32 0.0, %v4396
      %v4398 = vpop.f32.mrf.mxu0
      %v4399 = vadd.f32 0.0, %v4398
      %4400 = vmatprep.mubr.bf16.mxu0 %v4346
      %4401 = vmatmul.mubr.bf16.gmra.mxu0 %v4250
      %v4402 = vpop.f32.mrf.mxu0
      %v4403 = vadd.f32 0.0, %v4402
      %v4404 = vpop.f32.mrf.mxu0
      %v4405 = vadd.f32 0.0, %v4404
      %v4406 = vpop.f32.mrf.mxu0
      %v4407 = vadd.f32 0.0, %v4406
      %v4408 = vpop.f32.mrf.mxu0
      %v4409 = vadd.f32 0.0, %v4408
      %4410 = vdwg.mxu0
      %v4411 = vadd.f32 %v4194, %v4383
      %v4412 = vadd.f32 %v4196, %v4385
      %v4413 = vadd.f32 %v4198, %v4387
      %v4414 = vadd.f32 %v4200, %v4389
      %v4415 = vadd.f32 %v4204, %v4393
      %v4416 = vadd.f32 %v4206, %v4395
      %v4417 = vadd.f32 %v4208, %v4397
      %v4418 = vadd.f32 %v4210, %v4399
      %v4419 = vadd.f32 %v4214, %v4403
      %v4420 = vadd.f32 %v4216, %v4405
      %v4421 = vadd.f32 %v4218, %v4407
      %v4422 = vadd.f32 %v4220, %v4409
      %v4423 = vld [vmem:[%s10] sm:$0xff]
      %v4424 = vld [vmem:[%s10 + $0x8] sm:$0xff]
      %v4425 = vld [vmem:[%s10 + $0x10] sm:$0xff]
      %v4426 = vld [vmem:[%s10 + $0x18] sm:$0xff]
      %v4427 = vld [vmem:[%s10 + $0x20] sm:$0xff]
      %v4428 = vld [vmem:[%s10 + $0x28] sm:$0xff]
      %4430 = vset.pattern.permute.xlu0 0
      %4431 = vperm.xlu0 %4430, %v4423
      %v4432 = vpop.permute.xlu0 %4431
      %4435 = vset.pattern.permute.xlu0 0
      %4436 = vperm.xlu0 %4435, %v4424
      %v4437 = vpop.permute.xlu0 %4436
      %4440 = vset.pattern.permute.xlu0 0
      %4441 = vperm.xlu0 %4440, %v4425
      %v4442 = vpop.permute.xlu0 %4441
      %4445 = vset.pattern.permute.xlu0 0
      %4446 = vperm.xlu0 %4445, %v4426
      %v4447 = vpop.permute.xlu0 %4446
      %4450 = vset.pattern.permute.xlu0 0
      %4451 = vperm.xlu0 %4450, %v4427
      %v4452 = vpop.permute.xlu0 %4451
      %4455 = vset.pattern.permute.xlu0 0
      %4456 = vperm.xlu0 %4455, %v4428
      %v4457 = vpop.permute.xlu0 %4456
      %v4459 = vadd.f32 %v4411, %v4432
      %v4460 = vadd.f32 %v4412, %v4432
      %v4461 = vadd.f32 %v4413, %v4437
      %v4462 = vadd.f32 %v4414, %v4437
      %v4463 = vadd.f32 %v4415, %v4442
      %v4464 = vadd.f32 %v4416, %v4442
      %v4465 = vadd.f32 %v4417, %v4447
      %v4466 = vadd.f32 %v4418, %v4447
      %v4467 = vadd.f32 %v4419, %v4452
      %v4468 = vadd.f32 %v4420, %v4452
      %v4469 = vadd.f32 %v4421, %v4457
      %v4470 = vadd.f32 %v4422, %v4457
      %v4471 = vpack.c.bf16 %v4461, %v4459
      %v4472 = vpack.c.bf16 %v4462, %v4460
      %v4473 = vpack.c.bf16 %v4465, %v4463
      %v4474 = vpack.c.bf16 %v4466, %v4464
      %v4475 = vpack.c.bf16 %v4469, %v4467
      %v4476 = vpack.c.bf16 %v4470, %v4468
      %v4483 = vunpack.c.l.b16 %v4471
      %v4484 = vunpack.c.l.b16 %v4472
      %v4485 = vunpack.c.h.b16 %v4471
      %v4486 = vunpack.c.h.b16 %v4472
      %v4487 = vunpack.c.l.b16 %v4473
      %v4488 = vunpack.c.l.b16 %v4474
      %v4489 = vunpack.c.h.b16 %v4473
      %v4490 = vunpack.c.h.b16 %v4474
      %v4491 = vunpack.c.l.b16 %v4475
      %v4492 = vunpack.c.l.b16 %v4476
      %v4493 = vunpack.c.h.b16 %v4475
      %v4494 = vunpack.c.h.b16 %v4476
      %v4495 = vpack.c.b16 %v4484, %v4483
      %v4496 = vpack.c.b16 %v4486, %v4485
      %v4497 = vpack.c.b16 %v4488, %v4487
      %v4498 = vpack.c.b16 %v4490, %v4489
      %v4499 = vpack.c.b16 %v4492, %v4491
      %v4500 = vpack.c.b16 %v4494, %v4493
      %vm4507 = vcmask 130052
      %vm4508 = vmor %vm4507, %vm1245
      %4509 = vst.msk [vmem:[%s422] sm:$0xff] %vm4508, %v4495
      %4510 = vst.msk [vmem:[%s422 + $0x8] sm:$0xff] %vm4508, %v4496
      %4511 = vst.msk [vmem:[%s422 + $0x10] sm:$0xff] %vm4508, %v4497
      %4512 = vst.msk [vmem:[%s422 + $0x18] sm:$0xff] %vm4508, %v4498
      %4513 = vst.msk [vmem:[%s422 + $0x20] sm:$0xff] %vm4508, %v4499
      %4514 = vst.msk [vmem:[%s422 + $0x28] sm:$0xff] %vm4508, %v4500
      %p4515 = scmp.lt.s32.totalorder %s26, 3
      %s4516 = scalar_select %p4515, %s26, 3
      %p4517 = scmp.lt.s32.totalorder %s27, 1
      %s4518 = scalar_select %p4517, %s27, 1
      %s4519 = smul.addr %s4518, 12
      %s4520 = smul.addr %s4516, 24
      %s4521 = sadd.s32 %s4519, %s4520
      %s4522 = smul.addr %s4521, 4
      %s4523 = scalar_lea.vmem %s11, %s4522
      // Predicated region
      $region89: #{effvsr_forward.1} parent=63 // pred_check
        %p4524 = pneg %p292
      $region90: #{effvsr_forward.1} parent=63 // pred_check_branch
        %4526 = sbr.rel (%p4524) target = $region92
      $region91: #{effvsr_forward.1} parent=63 // pred_region
        _
      $region92: #{effvsr_forward.1} parent=63 // pred_fallthru
        _
    $region64: #{effvsr_forward.1} parent=5 // pred_fallthru
      _
    %p4527 = scmp.le.s32.totalorder 2, %s17
    // Predicated region
    $region93: #{effvsr_forward.1} parent=5 // pred_check
      %p4528 = pneg %p4527
    $region94: #{effvsr_forward.1} parent=5 // pred_check_branch
      %4530 = sbr.rel (%p4528) target = $region96
    $region95: #{effvsr_forward.1} parent=5 // pred_region
      %s4531 = ssub.s32 %s17, 2
      // Predicated region
      $region97: #{effvsr_forward.1} parent=95 // pred_check
        %p4532 = pneg %p298
      $region98: #{effvsr_forward.1} parent=95 // pred_check_branch
        %4534 = sbr.rel (%p4532) target = $region100
      $region99: #{effvsr_forward.1} parent=95 // pred_region
        %p4535 = scmp.lt.s32.totalorder %s28, 3
        %s4536 = scalar_select %p4535, %s28, 3
        %p4537 = scmp.lt.s32.totalorder %s29, 1
        %s4538 = scalar_select %p4537, %s29, 1
        %s4539 = smul.addr %s4538, 12
        %s4540 = smul.addr %s4536, 24
        %s4541 = sadd.s32 %s4539, %s4540
        %s4542 = smul.addr %s4541, 4
        %s4543 = scalar_lea.vmem %s11, %s4542
      $region100: #{effvsr_forward.1} parent=95 // pred_fallthru
        _
    $region96: #{effvsr_forward.1} parent=5 // pred_fallthru
      _
  $region6: #{effvsr_forward.1} parent=0 // loop_footer
    %s21 = sadd.s32 1, %s17
  $region7: #{effvsr_forward.1} parent=0 // loop_footer_branch
    %16 = sbr.rel target = $region3
  $region8: #{effvsr_forward.1} parent=0 // loop_exit
    _

</llo_original>
